<compile_context>
chip_gen: v7x
topology: tpu7x:2x2x1
jax: 0.10.0
libtpu: 0.0.40
codegen_flags: <defaults>
</compile_context>

<pallas_src>
import functools

import jax
import jax.numpy as jnp
import numpy as np
from jax.experimental import pallas as pl
from jax.experimental.pallas import tpu as pltpu


def _basic_block_kernel(x_ref, w1_ref, w2_ref, s1_ref, b1_ref, s2_ref, b2_ref,
                        o_ref, col_scr, acc_scr, *, H, W, C):
    """Fused BasicBlock for one batch element (NHWC, stride=1, no downsample).

    x_ref  : (1, H, W, C)   bf16 unpadded input block (also the residual)
    w*_ref : (3, 3*C, C)    conv weights, layout (kh, kw*Cin, Cout), bf16
    s*,b*  : (1, C)         fused BatchNorm scale / bias, fp32
    o_ref  : (1, H, W, C)   bf16
    col_scr: (H+2, W, 3*C)  bf16 packed dw-shift slabs feeding the MXU
    acc_scr: (H*W, C)       fp32 conv accumulator
    """
    Hp = H + 2
    f32, bf16 = jnp.float32, jnp.bfloat16

    # ---- zero only what the interior packing never rewrites: the two halo
    # rows and the border column of the dw=0 / dw=2 slabs.  Done once per grid
    # step (cheap), so it stays correct under "parallel" megacore sharding and
    # both convs can reuse the zeros.
    zrow = jnp.zeros((1, W, 3 * C), bf16)
    col_scr[0:1, :, :] = zrow
    col_scr[Hp - 1:Hp, :, :] = zrow
    zcol = jnp.zeros((Hp, 1, C), bf16)
    col_scr[:, 0:1, 0:C] = zcol                       # dw=0 slab, w == 0
    col_scr[:, W - 1:W, 2 * C:3 * C] = zcol           # dw=2 slab, w == W-1

    def pack_interior(full, left, right):
        # col_scr[hp, w, dw*C:(dw+1)*C] == zero-padded input[hp, w+dw, :]
        col_scr[1:H + 1, 1:W, 0:C] = left             # dw=0
        col_scr[1:H + 1, :, C:2 * C] = full           # dw=1
        col_scr[1:H + 1, 0:W - 1, 2 * C:3 * C] = right  # dw=2

    def conv3x3(w_ref):
        # dh shifts are slices of the untiled leading dim (free); the conv is
        # 3 MXU matmuls of depth K = 3*C accumulated in fp32 VMEM scratch.
        acc_scr[...] = jnp.dot(col_scr[0:H].reshape(H * W, 3 * C), w_ref[0],
                               preferred_element_type=f32)
        acc_scr[...] += jnp.dot(col_scr[1:H + 1].reshape(H * W, 3 * C),
                                w_ref[1], preferred_element_type=f32)
        acc_scr[...] += jnp.dot(col_scr[2:H + 2].reshape(H * W, 3 * C),
                                w_ref[2], preferred_element_type=f32)

    # ---- conv1 -> bn1 -> SiLU  (packing reads x_ref slices directly; x is
    # not kept live across the convs)
    pack_interior(x_ref[0],
                  x_ref[0, :, 0:W - 1, :],
                  x_ref[0, :, 1:W, :])
    conv3x3(w1_ref)
    y1 = acc_scr[...] * s1_ref[...] + b1_ref[...]     # (H*W, C) fp32
    y1 = y1 * jax.nn.sigmoid(y1)

    # ---- conv2 -> bn2 -> +identity residual -> SiLU
    y1b = y1.reshape(H, W, C).astype(bf16)
    pack_interior(y1b, y1b[:, 0:W - 1, :], y1b[:, 1:W, :])
    conv3x3(w2_ref)
    y2 = acc_scr[...] * s2_ref[...] + b2_ref[...]
    res = x_ref[0].astype(f32).reshape(H * W, C)      # re-read residual, fp32
    out = y2 + res
    out = out * jax.nn.sigmoid(out)
    o_ref[0] = out.reshape(H, W, C).astype(o_ref.dtype)


def basic_block_pallas(x_nchw, w1, w2, bn1, bn2, eps=1e-5):
    """x_nchw: (N, C, H, W); w1, w2: (Cout, Cin, 3, 3) PyTorch layout.
    bn1, bn2: tuples (gamma, beta, running_mean, running_var), each (C,).
    Assumes in_channels == out_channels, stride=1, downsample=None."""
    N, C, H, W = x_nchw.shape
    assert w1.shape == (C, C, 3, 3) and w2.shape == (C, C, 3, 3), (
        "kernel supports Cin == Cout, stride=1, downsample=None only")

    # TODO(synk): keep the surrounding model NHWC/bf16 end-to-end so these
    # boundary transposes / casts disappear.
    x = jnp.transpose(x_nchw, (0, 2, 3, 1)).astype(jnp.bfloat16)  # NHWC bf16

    # conv weights: (Cout, Cin, kh, kw) -> (kh, kw*Cin, Cout), bf16 for the MXU
    def prep_w(w):
        w_t = jnp.transpose(w, (2, 3, 1, 0))           # (kh, kw, Cin, Cout)
        return w_t.reshape(3, 3 * C, C).astype(jnp.bfloat16)

    w1_p, w2_p = prep_w(w1), prep_w(w2)

    # fold eval-mode BatchNorm into a per-channel affine (fp32)
    def fuse_bn(bn):
        gamma, beta, mean, var = bn
        s = gamma / jnp.sqrt(var + eps)
        b = beta - mean * s
        return (s.reshape(1, C).astype(jnp.float32),
                b.reshape(1, C).astype(jnp.float32))

    s1, b1 = fuse_bn(bn1)
    s2, b2 = fuse_bn(bn2)

    kernel = functools.partial(_basic_block_kernel, H=H, W=W, C=C)

    out_nhwc = pl.pallas_call(
        kernel,
        out_shape=jax.ShapeDtypeStruct((N, H, W, C), jnp.bfloat16),
        grid_spec=pltpu.PrefetchScalarGridSpec(
            num_scalar_prefetch=0,
            grid=(N,),
            in_specs=[
                pl.BlockSpec((1, H, W, C), lambda n: (n, 0, 0, 0)),   # x
                pl.BlockSpec((3, 3 * C, C), lambda n: (0, 0, 0)),     # w1
                pl.BlockSpec((3, 3 * C, C), lambda n: (0, 0, 0)),     # w2
                pl.BlockSpec((1, C), lambda n: (0, 0)),               # s1
                pl.BlockSpec((1, C), lambda n: (0, 0)),               # b1
                pl.BlockSpec((1, C), lambda n: (0, 0)),               # s2
                pl.BlockSpec((1, C), lambda n: (0, 0)),               # b2
            ],
            out_specs=pl.BlockSpec((1, H, W, C), lambda n: (n, 0, 0, 0)),
            scratch_shapes=[
                pltpu.VMEM((H + 2, W, 3 * C), jnp.bfloat16),          # col_scr
                pltpu.VMEM((H * W, C), jnp.float32),                  # acc_scr
            ],
        ),
        compiler_params=pltpu.CompilerParams(
            dimension_semantics=("parallel",),         # shard batch over TCs
            vmem_limit_bytes=32 * 1024 * 1024),
    )(x, w1_p, w2_p, s1, b1, s2, b2)

    # back to NCHW in the caller's dtype (API compatibility with the module)
    return jnp.transpose(out_nhwc, (0, 3, 1, 2)).astype(x_nchw.dtype)


def basic_block_ref(x, w1, w2, bn1, bn2, eps=1e-5):
    """Pure-JAX reference (NCHW, matches the PyTorch forward, BN eval mode)."""
    def conv(t, w):
        return jax.lax.conv_general_dilated(
            t, w, window_strides=(1, 1), padding=((1, 1), (1, 1)),
            dimension_numbers=("NCHW", "OIHW", "NCHW"))

    def bn(t, p):
        g, b, m, v = p
        inv = g / jnp.sqrt(v + eps)
        return (t - m[None, :, None, None]) * inv[None, :, None, None] \
            + b[None, :, None, None]

    silu = lambda t: t * jax.nn.sigmoid(t)
    out = silu(bn(conv(x, w1), bn1))
    out = bn(conv(out, w2), bn2)
    out = out + x                        # downsample is None, stride=1
    return silu(out)


if __name__ == "__main__":
    key = jax.random.PRNGKey(0)
    N, C, H, W = 2, 4, 16, 16            # in_channels == out_channels, stride=1

    keys = jax.random.split(key, 11)
    x = jax.random.normal(keys[0], (N, C, H, W), jnp.float32)
    w1 = jax.random.normal(keys[1], (C, C, 3, 3), jnp.float32) * 0.2
    w2 = jax.random.normal(keys[2], (C, C, 3, 3), jnp.float32) * 0.2

    bn1 = (jax.random.uniform(keys[3], (C,), minval=0.5, maxval=1.5),
           jax.random.normal(keys[4], (C,)) * 0.1,
           jax.random.normal(keys[5], (C,)) * 0.1,
           jax.random.uniform(keys[6], (C,), minval=0.5, maxval=1.5))
    bn2 = (jax.random.uniform(keys[7], (C,), minval=0.5, maxval=1.5),
           jax.random.normal(keys[8], (C,)) * 0.1,
           jax.random.normal(keys[9], (C,)) * 0.1,
           jax.random.uniform(keys[10], (C,), minval=0.5, maxval=1.5))

    out = basic_block_pallas(x, w1, w2, bn1, bn2)
    out = jax.block_until_ready(out)

    ref = jax.block_until_ready(basic_block_ref(x, w1, w2, bn1, bn2))
    # Activations are transported / staged in bf16 (fp32 accumulation and
    # epilogue), so tolerances are looser than a pure-fp32 implementation.
    np.testing.assert_allclose(np.asarray(out), np.asarray(ref),
                               rtol=5e-2, atol=5e-2)
    print("KERNEL_OK")
</pallas_src>

<mosaic_0001>
module attributes {stable_mosaic.version = 11 : i64} {
  func.func @_basic_block_kernel(%arg0: i32, %arg1: memref<1x16x16x4xbf16, #tpu.memory_space<vmem>>, %arg2: memref<3x12x4xbf16, #tpu.memory_space<vmem>>, %arg3: memref<3x12x4xbf16, #tpu.memory_space<vmem>>, %arg4: memref<1x4xf32, #tpu.memory_space<vmem>>, %arg5: memref<1x4xf32, #tpu.memory_space<vmem>>, %arg6: memref<1x4xf32, #tpu.memory_space<vmem>>, %arg7: memref<1x4xf32, #tpu.memory_space<vmem>>, %arg8: memref<1x16x16x4xbf16, #tpu.memory_space<vmem>>, %arg9: memref<18x16x12xbf16, #tpu.memory_space<vmem>>, %arg10: memref<256x4xf32, #tpu.memory_space<vmem>>) attributes {dimension_semantics = [#tpu.dimension_semantics<parallel>], iteration_bounds = array<i64: 2>, scalar_prefetch = 0 : i64, scratch_operands = 2 : i64, tpu.core_type = #tpu.core_type<tc>, window_params = [{transform_indices = @transform_0, window_bounds = array<i64: 1, 16, 16, 4>}, {pipeline_mode = #tpu.pipeline_mode<synchronous>, transform_indices = @transform_1, window_bounds = array<i64: 3, 12, 4>}, {pipeline_mode = #tpu.pipeline_mode<synchronous>, transform_indices = @transform_2, window_bounds = array<i64: 3, 12, 4>}, {pipeline_mode = #tpu.pipeline_mode<synchronous>, transform_indices = @transform_3, window_bounds = array<i64: 1, 4>}, {pipeline_mode = #tpu.pipeline_mode<synchronous>, transform_indices = @transform_4, window_bounds = array<i64: 1, 4>}, {pipeline_mode = #tpu.pipeline_mode<synchronous>, transform_indices = @transform_5, window_bounds = array<i64: 1, 4>}, {pipeline_mode = #tpu.pipeline_mode<synchronous>, transform_indices = @transform_6, window_bounds = array<i64: 1, 4>}, {transform_indices = @transform_7, window_bounds = array<i64: 1, 16, 16, 4>}]} {
    %cst = arith.constant 0.000000e+00 : bf16
    %0 = vector.broadcast %cst : bf16 to vector<1x16x12xbf16>
    %c0 = arith.constant 0 : index
    %c0_0 = arith.constant 0 : index
    %c0_1 = arith.constant 0 : index
    %1 = vector.load %arg9[%c0, %c0_0, %c0_1] : memref<18x16x12xbf16, #tpu.memory_space<vmem>>, vector<1x16x12xbf16>
    tpu.vector_store %arg9[%c0, %c0_0, %c0_1], %0 {strides = array<i32>} : memref<18x16x12xbf16, #tpu.memory_space<vmem>>, vector<1x16x12xbf16>,
    %c17 = arith.constant 17 : index
    %c0_2 = arith.constant 0 : index
    %c0_3 = arith.constant 0 : index
    %2 = vector.load %arg9[%c17, %c0_2, %c0_3] : memref<18x16x12xbf16, #tpu.memory_space<vmem>>, vector<1x16x12xbf16>
    tpu.vector_store %arg9[%c17, %c0_2, %c0_3], %0 {strides = array<i32>} : memref<18x16x12xbf16, #tpu.memory_space<vmem>>, vector<1x16x12xbf16>,
    %cst_4 = arith.constant 0.000000e+00 : bf16
    %3 = vector.broadcast %cst_4 : bf16 to vector<18x1x4xbf16>
    %c0_5 = arith.constant 0 : index
    %c0_6 = arith.constant 0 : index
    %c0_7 = arith.constant 0 : index
    %4 = vector.load %arg9[%c0_5, %c0_6, %c0_7] : memref<18x16x12xbf16, #tpu.memory_space<vmem>>, vector<18x1x4xbf16>
    tpu.vector_store %arg9[%c0_5, %c0_6, %c0_7], %3 {strides = array<i32>} : memref<18x16x12xbf16, #tpu.memory_space<vmem>>, vector<18x1x4xbf16>,
    %c0_8 = arith.constant 0 : index
    %c15 = arith.constant 15 : index
    %c8 = arith.constant 8 : index
    %5 = vector.load %arg9[%c0_8, %c15, %c8] : memref<18x16x12xbf16, #tpu.memory_space<vmem>>, vector<18x1x4xbf16>
    tpu.vector_store %arg9[%c0_8, %c15, %c8], %3 {strides = array<i32>} : memref<18x16x12xbf16, #tpu.memory_space<vmem>>, vector<18x1x4xbf16>,
    %c0_9 = arith.constant 0 : index
    %c0_10 = arith.constant 0 : index
    %c0_11 = arith.constant 0 : index
    %c0_12 = arith.constant 0 : index
    %6 = vector.load %arg1[%c0_9, %c0_10, %c0_11, %c0_12] : memref<1x16x16x4xbf16, #tpu.memory_space<vmem>>, vector<1x16x16x4xbf16>
    %7 = vector.shape_cast %6 : vector<1x16x16x4xbf16> to vector<16x16x4xbf16>
    %c0_13 = arith.constant 0 : index
    %c0_14 = arith.constant 0 : index
    %c0_15 = arith.constant 0 : index
    %c0_16 = arith.constant 0 : index
    %8 = vector.load %arg1[%c0_13, %c0_14, %c0_15, %c0_16] : memref<1x16x16x4xbf16, #tpu.memory_space<vmem>>, vector<1x16x15x4xbf16>
    %9 = vector.shape_cast %8 : vector<1x16x15x4xbf16> to vector<16x15x4xbf16>
    %c0_17 = arith.constant 0 : index
    %c0_18 = arith.constant 0 : index
    %c1 = arith.constant 1 : index
    %c0_19 = arith.constant 0 : index
    %10 = vector.load %arg1[%c0_17, %c0_18, %c1, %c0_19] : memref<1x16x16x4xbf16, #tpu.memory_space<vmem>>, vector<1x16x15x4xbf16>
    %11 = vector.shape_cast %10 : vector<1x16x15x4xbf16> to vector<16x15x4xbf16>
    %c1_20 = arith.constant 1 : index
    %c1_21 = arith.constant 1 : index
    %c0_22 = arith.constant 0 : index
    %12 = vector.load %arg9[%c1_20, %c1_21, %c0_22] : memref<18x16x12xbf16, #tpu.memory_space<vmem>>, vector<16x15x4xbf16>
    tpu.vector_store %arg9[%c1_20, %c1_21, %c0_22], %9 {strides = array<i32>} : memref<18x16x12xbf16, #tpu.memory_space<vmem>>, vector<16x15x4xbf16>,
    %c1_23 = arith.constant 1 : index
    %c0_24 = arith.constant 0 : index
    %c4 = arith.constant 4 : index
    %13 = vector.load %arg9[%c1_23, %c0_24, %c4] : memref<18x16x12xbf16, #tpu.memory_space<vmem>>, vector<16x16x4xbf16>
    tpu.vector_store %arg9[%c1_23, %c0_24, %c4], %7 {strides = array<i32>} : memref<18x16x12xbf16, #tpu.memory_space<vmem>>, vector<16x16x4xbf16>,
    %c1_25 = arith.constant 1 : index
    %c0_26 = arith.constant 0 : index
    %c8_27 = arith.constant 8 : index
    %14 = vector.load %arg9[%c1_25, %c0_26, %c8_27] : memref<18x16x12xbf16, #tpu.memory_space<vmem>>, vector<16x15x4xbf16>
    tpu.vector_store %arg9[%c1_25, %c0_26, %c8_27], %11 {strides = array<i32>} : memref<18x16x12xbf16, #tpu.memory_space<vmem>>, vector<16x15x4xbf16>,
    %c0_28 = arith.constant 0 : index
    %c0_29 = arith.constant 0 : index
    %c0_30 = arith.constant 0 : index
    %15 = vector.load %arg9[%c0_28, %c0_29, %c0_30] : memref<18x16x12xbf16, #tpu.memory_space<vmem>>, vector<16x16x12xbf16>
    %16 = vector.shape_cast %15 : vector<16x16x12xbf16> to vector<256x12xbf16>
    %c0_31 = arith.constant 0 : index
    %c0_32 = arith.constant 0 : index
    %c0_33 = arith.constant 0 : index
    %17 = vector.load %arg2[%c0_31, %c0_32, %c0_33] : memref<3x12x4xbf16, #tpu.memory_space<vmem>>, vector<1x12x4xbf16>
    %18 = vector.shape_cast %17 : vector<1x12x4xbf16> to vector<12x4xbf16>
    %cst_34 = arith.constant dense<0.000000e+00> : vector<256x4xf32>
    %19 = tpu.matmul %16, %18, %cst_34 {dimension_numbers = #tpu.dot_dimension_numbers<[1], [0], [0], [1], [0, 0, 1, 1], [], []>} : vector<256x12xbf16>, vector<12x4xbf16>, vector<256x4xf32> -> vector<256x4xf32>
    %c0_35 = arith.constant 0 : index
    %c0_36 = arith.constant 0 : index
    %20 = vector.load %arg10[%c0_35, %c0_36] : memref<256x4xf32, #tpu.memory_space<vmem>>, vector<256x4xf32>
    tpu.vector_store %arg10[%c0_35, %c0_36], %19 {strides = array<i32>} : memref<256x4xf32, #tpu.memory_space<vmem>>, vector<256x4xf32>,
    %c0_37 = arith.constant 0 : index
    %c0_38 = arith.constant 0 : index
    %21 = vector.load %arg10[%c0_37, %c0_38] : memref<256x4xf32, #tpu.memory_space<vmem>>, vector<256x4xf32>
    %c1_39 = arith.constant 1 : index
    %c0_40 = arith.constant 0 : index
    %c0_41 = arith.constant 0 : index
    %22 = vector.load %arg9[%c1_39, %c0_40, %c0_41] : memref<18x16x12xbf16, #tpu.memory_space<vmem>>, vector<16x16x12xbf16>
    %23 = vector.shape_cast %22 : vector<16x16x12xbf16> to vector<256x12xbf16>
    %c1_42 = arith.constant 1 : index
    %c0_43 = arith.constant 0 : index
    %c0_44 = arith.constant 0 : index
    %24 = vector.load %arg2[%c1_42, %c0_43, %c0_44] : memref<3x12x4xbf16, #tpu.memory_space<vmem>>, vector<1x12x4xbf16>
    %25 = vector.shape_cast %24 : vector<1x12x4xbf16> to vector<12x4xbf16>
    %cst_45 = arith.constant dense<0.000000e+00> : vector<256x4xf32>
    %26 = tpu.matmul %23, %25, %cst_45 {dimension_numbers = #tpu.dot_dimension_numbers<[1], [0], [0], [1], [0, 0, 1, 1], [], []>} : vector<256x12xbf16>, vector<12x4xbf16>, vector<256x4xf32> -> vector<256x4xf32>
    %27 = arith.addf %21, %26 : vector<256x4xf32>
    %c0_46 = arith.constant 0 : index
    %c0_47 = arith.constant 0 : index
    %28 = vector.load %arg10[%c0_46, %c0_47] : memref<256x4xf32, #tpu.memory_space<vmem>>, vector<256x4xf32>
    tpu.vector_store %arg10[%c0_46, %c0_47], %27 {strides = array<i32>} : memref<256x4xf32, #tpu.memory_space<vmem>>, vector<256x4xf32>,
    %c0_48 = arith.constant 0 : index
    %c0_49 = arith.constant 0 : index
    %29 = vector.load %arg10[%c0_48, %c0_49] : memref<256x4xf32, #tpu.memory_space<vmem>>, vector<256x4xf32>
    %c2 = arith.constant 2 : index
    %c0_50 = arith.constant 0 : index
    %c0_51 = arith.constant 0 : index
    %30 = vector.load %arg9[%c2, %c0_50, %c0_51] : memref<18x16x12xbf16, #tpu.memory_space<vmem>>, vector<16x16x12xbf16>
    %31 = vector.shape_cast %30 : vector<16x16x12xbf16> to vector<256x12xbf16>
    %c2_52 = arith.constant 2 : index
    %c0_53 = arith.constant 0 : index
    %c0_54 = arith.constant 0 : index
    %32 = vector.load %arg2[%c2_52, %c0_53, %c0_54] : memref<3x12x4xbf16, #tpu.memory_space<vmem>>, vector<1x12x4xbf16>
    %33 = vector.shape_cast %32 : vector<1x12x4xbf16> to vector<12x4xbf16>
    %cst_55 = arith.constant dense<0.000000e+00> : vector<256x4xf32>
    %34 = tpu.matmul %31, %33, %cst_55 {dimension_numbers = #tpu.dot_dimension_numbers<[1], [0], [0], [1], [0, 0, 1, 1], [], []>} : vector<256x12xbf16>, vector<12x4xbf16>, vector<256x4xf32> -> vector<256x4xf32>
    %35 = arith.addf %29, %34 : vector<256x4xf32>
    %c0_56 = arith.constant 0 : index
    %c0_57 = arith.constant 0 : index
    %36 = vector.load %arg10[%c0_56, %c0_57] : memref<256x4xf32, #tpu.memory_space<vmem>>, vector<256x4xf32>
    tpu.vector_store %arg10[%c0_56, %c0_57], %35 {strides = array<i32>} : memref<256x4xf32, #tpu.memory_space<vmem>>, vector<256x4xf32>,
    %c0_58 = arith.constant 0 : index
    %c0_59 = arith.constant 0 : index
    %37 = vector.load %arg10[%c0_58, %c0_59] : memref<256x4xf32, #tpu.memory_space<vmem>>, vector<256x4xf32>
    %c0_60 = arith.constant 0 : index
    %c0_61 = arith.constant 0 : index
    %38 = vector.load %arg4[%c0_60, %c0_61] : memref<1x4xf32, #tpu.memory_space<vmem>>, vector<1x4xf32>
    %39 = vector.broadcast %38 : vector<1x4xf32> to vector<256x4xf32>
    %40 = arith.mulf %37, %39 : vector<256x4xf32>
    %c0_62 = arith.constant 0 : index
    %c0_63 = arith.constant 0 : index
    %41 = vector.load %arg5[%c0_62, %c0_63] : memref<1x4xf32, #tpu.memory_space<vmem>>, vector<1x4xf32>
    %42 = vector.broadcast %41 : vector<1x4xf32> to vector<256x4xf32>
    %43 = arith.addf %40, %42 : vector<256x4xf32>
    %44 = arith.negf %43 : vector<256x4xf32>
    %45 = math.exp %44 : vector<256x4xf32>
    %cst_64 = arith.constant 1.000000e+00 : f32
    %46 = vector.broadcast %cst_64 : f32 to vector<256x4xf32>
    %47 = arith.addf %46, %45 : vector<256x4xf32>
    %48 = arith.divf %46, %47 : vector<256x4xf32>
    %49 = arith.mulf %43, %48 : vector<256x4xf32>
    %50 = vector.shape_cast %49 : vector<256x4xf32> to vector<16x16x4xf32>
    %51 = arith.truncf %50 : vector<16x16x4xf32> to vector<16x16x4xbf16>
    %52 = vector.extract_strided_slice %51 {offsets = [0, 0, 0], sizes = [16, 15, 4], strides = [1, 1, 1]} : vector<16x16x4xbf16> to vector<16x15x4xbf16>
    %53 = vector.extract_strided_slice %51 {offsets = [0, 1, 0], sizes = [16, 15, 4], strides = [1, 1, 1]} : vector<16x16x4xbf16> to vector<16x15x4xbf16>
    %c1_65 = arith.constant 1 : index
    %c1_66 = arith.constant 1 : index
    %c0_67 = arith.constant 0 : index
    %54 = vector.load %arg9[%c1_65, %c1_66, %c0_67] : memref<18x16x12xbf16, #tpu.memory_space<vmem>>, vector<16x15x4xbf16>
    tpu.vector_store %arg9[%c1_65, %c1_66, %c0_67], %52 {strides = array<i32>} : memref<18x16x12xbf16, #tpu.memory_space<vmem>>, vector<16x15x4xbf16>,
    %c1_68 = arith.constant 1 : index
    %c0_69 = arith.constant 0 : index
    %c4_70 = arith.constant 4 : index
    %55 = vector.load %arg9[%c1_68, %c0_69, %c4_70] : memref<18x16x12xbf16, #tpu.memory_space<vmem>>, vector<16x16x4xbf16>
    tpu.vector_store %arg9[%c1_68, %c0_69, %c4_70], %51 {strides = array<i32>} : memref<18x16x12xbf16, #tpu.memory_space<vmem>>, vector<16x16x4xbf16>,
    %c1_71 = arith.constant 1 : index
    %c0_72 = arith.constant 0 : index
    %c8_73 = arith.constant 8 : index
    %56 = vector.load %arg9[%c1_71, %c0_72, %c8_73] : memref<18x16x12xbf16, #tpu.memory_space<vmem>>, vector<16x15x4xbf16>
    tpu.vector_store %arg9[%c1_71, %c0_72, %c8_73], %53 {strides = array<i32>} : memref<18x16x12xbf16, #tpu.memory_space<vmem>>, vector<16x15x4xbf16>,
    %c0_74 = arith.constant 0 : index
    %c0_75 = arith.constant 0 : index
    %c0_76 = arith.constant 0 : index
    %57 = vector.load %arg9[%c0_74, %c0_75, %c0_76] : memref<18x16x12xbf16, #tpu.memory_space<vmem>>, vector<16x16x12xbf16>
    %58 = vector.shape_cast %57 : vector<16x16x12xbf16> to vector<256x12xbf16>
    %c0_77 = arith.constant 0 : index
    %c0_78 = arith.constant 0 : index
    %c0_79 = arith.constant 0 : index
    %59 = vector.load %arg3[%c0_77, %c0_78, %c0_79] : memref<3x12x4xbf16, #tpu.memory_space<vmem>>, vector<1x12x4xbf16>
    %60 = vector.shape_cast %59 : vector<1x12x4xbf16> to vector<12x4xbf16>
    %cst_80 = arith.constant dense<0.000000e+00> : vector<256x4xf32>
    %61 = tpu.matmul %58, %60, %cst_80 {dimension_numbers = #tpu.dot_dimension_numbers<[1], [0], [0], [1], [0, 0, 1, 1], [], []>} : vector<256x12xbf16>, vector<12x4xbf16>, vector<256x4xf32> -> vector<256x4xf32>
    %c0_81 = arith.constant 0 : index
    %c0_82 = arith.constant 0 : index
    %62 = vector.load %arg10[%c0_81, %c0_82] : memref<256x4xf32, #tpu.memory_space<vmem>>, vector<256x4xf32>
    tpu.vector_store %arg10[%c0_81, %c0_82], %61 {strides = array<i32>} : memref<256x4xf32, #tpu.memory_space<vmem>>, vector<256x4xf32>,
    %c0_83 = arith.constant 0 : index
    %c0_84 = arith.constant 0 : index
    %63 = vector.load %arg10[%c0_83, %c0_84] : memref<256x4xf32, #tpu.memory_space<vmem>>, vector<256x4xf32>
    %c1_85 = arith.constant 1 : index
    %c0_86 = arith.constant 0 : index
    %c0_87 = arith.constant 0 : index
    %64 = vector.load %arg9[%c1_85, %c0_86, %c0_87] : memref<18x16x12xbf16, #tpu.memory_space<vmem>>, vector<16x16x12xbf16>
    %65 = vector.shape_cast %64 : vector<16x16x12xbf16> to vector<256x12xbf16>
    %c1_88 = arith.constant 1 : index
    %c0_89 = arith.constant 0 : index
    %c0_90 = arith.constant 0 : index
    %66 = vector.load %arg3[%c1_88, %c0_89, %c0_90] : memref<3x12x4xbf16, #tpu.memory_space<vmem>>, vector<1x12x4xbf16>
    %67 = vector.shape_cast %66 : vector<1x12x4xbf16> to vector<12x4xbf16>
    %cst_91 = arith.constant dense<0.000000e+00> : vector<256x4xf32>
    %68 = tpu.matmul %65, %67, %cst_91 {dimension_numbers = #tpu.dot_dimension_numbers<[1], [0], [0], [1], [0, 0, 1, 1], [], []>} : vector<256x12xbf16>, vector<12x4xbf16>, vector<256x4xf32> -> vector<256x4xf32>
    %69 = arith.addf %63, %68 : vector<256x4xf32>
    %c0_92 = arith.constant 0 : index
    %c0_93 = arith.constant 0 : index
    %70 = vector.load %arg10[%c0_92, %c0_93] : memref<256x4xf32, #tpu.memory_space<vmem>>, vector<256x4xf32>
    tpu.vector_store %arg10[%c0_92, %c0_93], %69 {strides = array<i32>} : memref<256x4xf32, #tpu.memory_space<vmem>>, vector<256x4xf32>,
    %c0_94 = arith.constant 0 : index
    %c0_95 = arith.constant 0 : index
    %71 = vector.load %arg10[%c0_94, %c0_95] : memref<256x4xf32, #tpu.memory_space<vmem>>, vector<256x4xf32>
    %c2_96 = arith.constant 2 : index
    %c0_97 = arith.constant 0 : index
    %c0_98 = arith.constant 0 : index
    %72 = vector.load %arg9[%c2_96, %c0_97, %c0_98] : memref<18x16x12xbf16, #tpu.memory_space<vmem>>, vector<16x16x12xbf16>
    %73 = vector.shape_cast %72 : vector<16x16x12xbf16> to vector<256x12xbf16>
    %c2_99 = arith.constant 2 : index
    %c0_100 = arith.constant 0 : index
    %c0_101 = arith.constant 0 : index
    %74 = vector.load %arg3[%c2_99, %c0_100, %c0_101] : memref<3x12x4xbf16, #tpu.memory_space<vmem>>, vector<1x12x4xbf16>
    %75 = vector.shape_cast %74 : vector<1x12x4xbf16> to vector<12x4xbf16>
    %cst_102 = arith.constant dense<0.000000e+00> : vector<256x4xf32>
    %76 = tpu.matmul %73, %75, %cst_102 {dimension_numbers = #tpu.dot_dimension_numbers<[1], [0], [0], [1], [0, 0, 1, 1], [], []>} : vector<256x12xbf16>, vector<12x4xbf16>, vector<256x4xf32> -> vector<256x4xf32>
    %77 = arith.addf %71, %76 : vector<256x4xf32>
    %c0_103 = arith.constant 0 : index
    %c0_104 = arith.constant 0 : index
    %78 = vector.load %arg10[%c0_103, %c0_104] : memref<256x4xf32, #tpu.memory_space<vmem>>, vector<256x4xf32>
    tpu.vector_store %arg10[%c0_103, %c0_104], %77 {strides = array<i32>} : memref<256x4xf32, #tpu.memory_space<vmem>>, vector<256x4xf32>,
    %c0_105 = arith.constant 0 : index
    %c0_106 = arith.constant 0 : index
    %79 = vector.load %arg10[%c0_105, %c0_106] : memref<256x4xf32, #tpu.memory_space<vmem>>, vector<256x4xf32>
    %c0_107 = arith.constant 0 : index
    %c0_108 = arith.constant 0 : index
    %80 = vector.load %arg6[%c0_107, %c0_108] : memref<1x4xf32, #tpu.memory_space<vmem>>, vector<1x4xf32>
    %81 = vector.broadcast %80 : vector<1x4xf32> to vector<256x4xf32>
    %82 = arith.mulf %79, %81 : vector<256x4xf32>
    %c0_109 = arith.constant 0 : index
    %c0_110 = arith.constant 0 : index
    %83 = vector.load %arg7[%c0_109, %c0_110] : memref<1x4xf32, #tpu.memory_space<vmem>>, vector<1x4xf32>
    %84 = vector.broadcast %83 : vector<1x4xf32> to vector<256x4xf32>
    %85 = arith.addf %82, %84 : vector<256x4xf32>
    %c0_111 = arith.constant 0 : index
    %c0_112 = arith.constant 0 : index
    %c0_113 = arith.constant 0 : index
    %c0_114 = arith.constant 0 : index
    %86 = vector.load %arg1[%c0_111, %c0_112, %c0_113, %c0_114] : memref<1x16x16x4xbf16, #tpu.memory_space<vmem>>, vector<1x16x16x4xbf16>
    %87 = vector.shape_cast %86 : vector<1x16x16x4xbf16> to vector<16x16x4xbf16>
    %88 = arith.extf %87 : vector<16x16x4xbf16> to vector<16x16x4xf32>
    %89 = vector.shape_cast %88 : vector<16x16x4xf32> to vector<256x4xf32>
    %90 = arith.addf %85, %89 : vector<256x4xf32>
    %91 = arith.negf %90 : vector<256x4xf32>
    %92 = math.exp %91 : vector<256x4xf32>
    %cst_115 = arith.constant 1.000000e+00 : f32
    %93 = vector.broadcast %cst_115 : f32 to vector<256x4xf32>
    %94 = arith.addf %93, %92 : vector<256x4xf32>
    %95 = arith.divf %93, %94 : vector<256x4xf32>
    %96 = arith.mulf %90, %95 : vector<256x4xf32>
    %97 = vector.shape_cast %96 : vector<256x4xf32> to vector<16x16x4xf32>
    %98 = arith.truncf %97 : vector<16x16x4xf32> to vector<16x16x4xbf16>
    %c0_116 = arith.constant 0 : index
    %c0_117 = arith.constant 0 : index
    %c0_118 = arith.constant 0 : index
    %c0_119 = arith.constant 0 : index
    %99 = vector.load %arg8[%c0_116, %c0_117, %c0_118, %c0_119] : memref<1x16x16x4xbf16, #tpu.memory_space<vmem>>, vector<1x16x16x4xbf16>
    %100 = vector.shape_cast %99 : vector<1x16x16x4xbf16> to vector<16x16x4xbf16>
    %101 = vector.shape_cast %98 : vector<16x16x4xbf16> to vector<1x16x16x4xbf16>
    tpu.vector_store %arg8[%c0_116, %c0_117, %c0_118, %c0_119], %101 {strides = array<i32>} : memref<1x16x16x4xbf16, #tpu.memory_space<vmem>>, vector<1x16x16x4xbf16>,
    return
  }
  func.func @transform_0(%arg0: i32) -> (i32, i32, i32, i32) {
    %c0_i32 = arith.constant 0 : i32
    %c0_i32_0 = arith.constant 0 : i32
    %c0_i32_1 = arith.constant 0 : i32
    %c0_i32_2 = arith.constant 0 : i32
    return %arg0, %c0_i32, %c0_i32_0, %c0_i32_1 : i32, i32, i32, i32
  }
  func.func @transform_1(%arg0: i32) -> (i32, i32, i32) {
    %c0_i32 = arith.constant 0 : i32
    %c0_i32_0 = arith.constant 0 : i32
    %c0_i32_1 = arith.constant 0 : i32
    %c0_i32_2 = arith.constant 0 : i32
    return %c0_i32, %c0_i32_0, %c0_i32_1 : i32, i32, i32
  }
  func.func @transform_2(%arg0: i32) -> (i32, i32, i32) {
    %c0_i32 = arith.constant 0 : i32
    %c0_i32_0 = arith.constant 0 : i32
    %c0_i32_1 = arith.constant 0 : i32
    %c0_i32_2 = arith.constant 0 : i32
    return %c0_i32, %c0_i32_0, %c0_i32_1 : i32, i32, i32
  }
  func.func @transform_3(%arg0: i32) -> (i32, i32) {
    %c0_i32 = arith.constant 0 : i32
    %c0_i32_0 = arith.constant 0 : i32
    %c0_i32_1 = arith.constant 0 : i32
    return %c0_i32, %c0_i32_0 : i32, i32
  }
  func.func @transform_4(%arg0: i32) -> (i32, i32) {
    %c0_i32 = arith.constant 0 : i32
    %c0_i32_0 = arith.constant 0 : i32
    %c0_i32_1 = arith.constant 0 : i32
    return %c0_i32, %c0_i32_0 : i32, i32
  }
  func.func @transform_5(%arg0: i32) -> (i32, i32) {
    %c0_i32 = arith.constant 0 : i32
    %c0_i32_0 = arith.constant 0 : i32
    %c0_i32_1 = arith.constant 0 : i32
    return %c0_i32, %c0_i32_0 : i32, i32
  }
  func.func @transform_6(%arg0: i32) -> (i32, i32) {
    %c0_i32 = arith.constant 0 : i32
    %c0_i32_0 = arith.constant 0 : i32
    %c0_i32_1 = arith.constant 0 : i32
    return %c0_i32, %c0_i32_0 : i32, i32
  }
  func.func @transform_7(%arg0: i32) -> (i32, i32, i32, i32) {
    %c0_i32 = arith.constant 0 : i32
    %c0_i32_0 = arith.constant 0 : i32
    %c0_i32_1 = arith.constant 0 : i32
    %c0_i32_2 = arith.constant 0 : i32
    return %arg0, %c0_i32, %c0_i32_0, %c0_i32_1 : i32, i32, i32, i32
  }
}

</mosaic_0001>

<llo_original>
// kernel: tpu_custom_call.1
$region0: #{tpu_custom_call.1}
  #allocation0 [shape = 'u32[]', space=smem, size = 0x4, offset = 0x4, fixed_abs, tag = 'smem constant byte address 0x4 - core index']
  #allocation1 [shape = 'u32[144,128]{1,0:T(1,128)}', space=vmem, size = 0x12000, scoped, tag = 'internal scratch']
  #allocation2 [shape = 'bf16[18,16,12]{2,1,0:T(16,128)(2,1)}', space=vmem, size = 0x12000, scoped, tag = 'scratch operand']
  #allocation3 [shape = 'f32[256,4]{1,0:T(8,128)}', space=vmem, size = 0x20000, scoped, tag = 'scratch operand']
  %s0 = inlined_call_operand.vmem [shape: bf16[2,16,16,4], index: 0, kind: input, shape index: {}]
  %s1 = inlined_call_operand.vmem [shape: bf16[3,12,4], index: 1, kind: input, shape index: {}]
  %s2 = inlined_call_operand.vmem [shape: bf16[3,12,4], index: 2, kind: input, shape index: {}]
  %s3 = inlined_call_operand.vmem [shape: f32[1,4], index: 3, kind: input, shape index: {}]
  %s4 = inlined_call_operand.vmem [shape: f32[1,4], index: 4, kind: input, shape index: {}]
  %s5 = inlined_call_operand.vmem [shape: f32[1,4], index: 5, kind: input, shape index: {}]
  %s6 = inlined_call_operand.vmem [shape: f32[1,4], index: 6, kind: input, shape index: {}]
  %s7 = inlined_call_operand.vmem [shape: bf16[2,16,16,4], index: 7, kind: output, shape index: {}]
  %s8 = sld [smem:[#allocation0]]
  $region61: #{tpu_custom_call.1} parent=0
    _
  %s10 = ssub.s32 1, %s8
  %s11 = scalar_select 0, %s10, %s8
  loop: start=0, step=1, limit=4
  $region2: #{tpu_custom_call.1} parent=0 // loop_pre_header
    _
  $region3: #{tpu_custom_call.1} parent=0 // loop_header
    %s13 = sphi 0, %s17
    %p14 = scmp.ge.s32.totalorder %s13, 4
    %s23 = sphi 0, %s25
    %s26 = sphi 0, %s23
    %s27 = sphi 0, %s26
    %s43 = sphi 0, %s27
    %s47 = sphi 0, %s47
    %s49 = sphi 0, %s47
    %s50 = sphi 0, %s49
    %s64 = sphi 0, %s50
    %s68 = sphi 0, %s68
    %s70 = sphi 0, %s68
    %s71 = sphi 0, %s70
    %s85 = sphi 0, %s71
    %s89 = sphi 0, %s89
    %s91 = sphi 0, %s89
    %s92 = sphi 0, %s91
    %s106 = sphi 0, %s92
    %s110 = sphi 0, %s110
    %s112 = sphi 0, %s110
    %s113 = sphi 0, %s112
    %s127 = sphi 0, %s113
    %s131 = sphi 0, %s131
    %s133 = sphi 0, %s131
    %s134 = sphi 0, %s133
    %s148 = sphi 0, %s134
    %s152 = sphi 0, %s152
    %s154 = sphi 0, %s152
    %s155 = sphi 0, %s154
    %s169 = sphi 0, %s155
    %s175 = sphi 0, %s177
    %s178 = sphi 0, %s175
    %s179 = sphi 0, %s178
    %s195 = sphi 0, %s179
  $region4: #{tpu_custom_call.1} parent=0 // loop_header_branch
    %16 = sbr.rel (%p14) target = $region8
  $region5: #{tpu_custom_call.1} parent=0 // loop_body
    %s18 = ssub.s32 %s13, 1
    %s19 = ssub.s32 %s13, 2
    %s20 = sadd.s32 %s13, 1
    %s21 = ssub.s32 %s13, %s20
    %p22 = scmp.eq.s32.totalorder %s21, 0
    %s24 = sadd.s32 %s23, 1
    %s25 = scalar_select %p22, %s23, %s24
    %p28 = pneg %p22
    %p29 = scmp.eq.s32.totalorder %s13, 1
    %p30 = por %p28, %p29
    %p31 = scmp.ne.s32.totalorder %s23, %s26
    %p32 = scmp.eq.s32.totalorder %s13, 0
    %p33 = por %p31, %p32
    %p34 = scmp.ne.s32.totalorder %s23, %s26
    %p35 = scmp.eq.s32.totalorder %s18, 1
    %p36 = por %p34, %p35
    %p37 = scmp.ne.s32.totalorder %s26, %s27
    %p38 = scmp.eq.s32.totalorder %s18, 0
    %p39 = por %p37, %p38
    %p40 = scmp.ne.s32.totalorder %s26, %s27
    %p41 = scmp.eq.s32.totalorder %s19, 1
    %p42 = por %p40, %p41
    %p44 = scmp.ne.s32.totalorder %s27, %s43
    %p45 = scmp.eq.s32.totalorder %s19, 0
    %p46 = por %p44, %p45
    %s48 = sadd.s32 %s47, 1
    %p51 = scmp.eq.s32.totalorder %s13, 1
    %p52 = scmp.ne.s32.totalorder %s47, %s49
    %p53 = scmp.eq.s32.totalorder %s13, 0
    %p54 = por %p52, %p53
    %p55 = scmp.ne.s32.totalorder %s47, %s49
    %p56 = scmp.eq.s32.totalorder %s18, 1
    %p57 = por %p55, %p56
    %p58 = scmp.ne.s32.totalorder %s49, %s50
    %p59 = scmp.eq.s32.totalorder %s18, 0
    %p60 = por %p58, %p59
    %p61 = scmp.ne.s32.totalorder %s49, %s50
    %p62 = scmp.eq.s32.totalorder %s19, 1
    %p63 = por %p61, %p62
    %p65 = scmp.ne.s32.totalorder %s50, %s64
    %p66 = scmp.eq.s32.totalorder %s19, 0
    %p67 = por %p65, %p66
    %s69 = sadd.s32 %s68, 1
    %p72 = scmp.eq.s32.totalorder %s13, 1
    %p73 = scmp.ne.s32.totalorder %s68, %s70
    %p74 = scmp.eq.s32.totalorder %s13, 0
    %p75 = por %p73, %p74
    %p76 = scmp.ne.s32.totalorder %s68, %s70
    %p77 = scmp.eq.s32.totalorder %s18, 1
    %p78 = por %p76, %p77
    %p79 = scmp.ne.s32.totalorder %s70, %s71
    %p80 = scmp.eq.s32.totalorder %s18, 0
    %p81 = por %p79, %p80
    %p82 = scmp.ne.s32.totalorder %s70, %s71
    %p83 = scmp.eq.s32.totalorder %s19, 1
    %p84 = por %p82, %p83
    %p86 = scmp.ne.s32.totalorder %s71, %s85
    %p87 = scmp.eq.s32.totalorder %s19, 0
    %p88 = por %p86, %p87
    %s90 = sadd.s32 %s89, 1
    %p93 = scmp.eq.s32.totalorder %s13, 1
    %p94 = scmp.ne.s32.totalorder %s89, %s91
    %p95 = scmp.eq.s32.totalorder %s13, 0
    %p96 = por %p94, %p95
    %p97 = scmp.ne.s32.totalorder %s89, %s91
    %p98 = scmp.eq.s32.totalorder %s18, 1
    %p99 = por %p97, %p98
    %p100 = scmp.ne.s32.totalorder %s91, %s92
    %p101 = scmp.eq.s32.totalorder %s18, 0
    %p102 = por %p100, %p101
    %p103 = scmp.ne.s32.totalorder %s91, %s92
    %p104 = scmp.eq.s32.totalorder %s19, 1
    %p105 = por %p103, %p104
    %p107 = scmp.ne.s32.totalorder %s92, %s106
    %p108 = scmp.eq.s32.totalorder %s19, 0
    %p109 = por %p107, %p108
    %s111 = sadd.s32 %s110, 1
    %p114 = scmp.eq.s32.totalorder %s13, 1
    %p115 = scmp.ne.s32.totalorder %s110, %s112
    %p116 = scmp.eq.s32.totalorder %s13, 0
    %p117 = por %p115, %p116
    %p118 = scmp.ne.s32.totalorder %s110, %s112
    %p119 = scmp.eq.s32.totalorder %s18, 1
    %p120 = por %p118, %p119
    %p121 = scmp.ne.s32.totalorder %s112, %s113
    %p122 = scmp.eq.s32.totalorder %s18, 0
    %p123 = por %p121, %p122
    %p124 = scmp.ne.s32.totalorder %s112, %s113
    %p125 = scmp.eq.s32.totalorder %s19, 1
    %p126 = por %p124, %p125
    %p128 = scmp.ne.s32.totalorder %s113, %s127
    %p129 = scmp.eq.s32.totalorder %s19, 0
    %p130 = por %p128, %p129
    %s132 = sadd.s32 %s131, 1
    %p135 = scmp.eq.s32.totalorder %s13, 1
    %p136 = scmp.ne.s32.totalorder %s131, %s133
    %p137 = scmp.eq.s32.totalorder %s13, 0
    %p138 = por %p136, %p137
    %p139 = scmp.ne.s32.totalorder %s131, %s133
    %p140 = scmp.eq.s32.totalorder %s18, 1
    %p141 = por %p139, %p140
    %p142 = scmp.ne.s32.totalorder %s133, %s134
    %p143 = scmp.eq.s32.totalorder %s18, 0
    %p144 = por %p142, %p143
    %p145 = scmp.ne.s32.totalorder %s133, %s134
    %p146 = scmp.eq.s32.totalorder %s19, 1
    %p147 = por %p145, %p146
    %p149 = scmp.ne.s32.totalorder %s134, %s148
    %p150 = scmp.eq.s32.totalorder %s19, 0
    %p151 = por %p149, %p150
    %s153 = sadd.s32 %s152, 1
    %p156 = scmp.eq.s32.totalorder %s13, 1
    %p157 = scmp.ne.s32.totalorder %s152, %s154
    %p158 = scmp.eq.s32.totalorder %s13, 0
    %p159 = por %p157, %p158
    %p160 = scmp.ne.s32.totalorder %s152, %s154
    %p161 = scmp.eq.s32.totalorder %s18, 1
    %p162 = por %p160, %p161
    %p163 = scmp.ne.s32.totalorder %s154, %s155
    %p164 = scmp.eq.s32.totalorder %s18, 0
    %p165 = por %p163, %p164
    %p166 = scmp.ne.s32.totalorder %s154, %s155
    %p167 = scmp.eq.s32.totalorder %s19, 1
    %p168 = por %p166, %p167
    %p170 = scmp.ne.s32.totalorder %s155, %s169
    %p171 = scmp.eq.s32.totalorder %s19, 0
    %p172 = por %p170, %p171
    %s173 = ssub.s32 %s13, %s20
    %p174 = scmp.eq.s32.totalorder %s173, 0
    %s176 = sadd.s32 %s175, 1
    %s177 = scalar_select %p174, %s175, %s176
    %p180 = pneg %p174
    %p181 = scmp.eq.s32.totalorder %s13, 1
    %p182 = por %p180, %p181
    %p183 = scmp.ne.s32.totalorder %s175, %s178
    %p184 = scmp.eq.s32.totalorder %s13, 0
    %p185 = por %p183, %p184
    %p186 = scmp.ne.s32.totalorder %s175, %s178
    %p187 = scmp.eq.s32.totalorder %s18, 1
    %p188 = por %p186, %p187
    %p189 = scmp.ne.s32.totalorder %s178, %s179
    %p190 = scmp.eq.s32.totalorder %s18, 0
    %p191 = por %p189, %p190
    %p192 = scmp.ne.s32.totalorder %s178, %s179
    %p193 = scmp.eq.s32.totalorder %s19, 1
    %p194 = por %p192, %p193
    %p196 = scmp.ne.s32.totalorder %s179, %s195
    %p197 = scmp.eq.s32.totalorder %s19, 0
    %p198 = por %p196, %p197
    %p199 = scmp.le.s32.totalorder 1, %s13
    %p200 = scmp.lt.s32.totalorder %s13, 3
    %p201 = pnand %p199, %p200
    %p202 = pneg %p201
    // Predicated region
    $region9: #{tpu_custom_call.1} parent=5 // pred_check
      _
    $region10: #{tpu_custom_call.1} parent=5 // pred_check_branch
      %204 = sbr.rel (%p201) target = $region12
    $region11: #{tpu_custom_call.1} parent=5 // pred_region
      %s205 = ssub.s32 %s13, 1
      // Predicated region
      $region13: #{tpu_custom_call.1} parent=11 // pred_check
        %p206 = pneg %p60
      $region14: #{tpu_custom_call.1} parent=11 // pred_check_branch
        %208 = sbr.rel (%p206) target = $region16
      $region15: #{tpu_custom_call.1} parent=11 // pred_region
        _
      $region16: #{tpu_custom_call.1} parent=11 // pred_fallthru
        _
      // Predicated region
      $region17: #{tpu_custom_call.1} parent=11 // pred_check
        %p209 = pneg %p81
      $region18: #{tpu_custom_call.1} parent=11 // pred_check_branch
        %211 = sbr.rel (%p209) target = $region20
      $region19: #{tpu_custom_call.1} parent=11 // pred_region
        _
      $region20: #{tpu_custom_call.1} parent=11 // pred_fallthru
        _
      // Predicated region
      $region21: #{tpu_custom_call.1} parent=11 // pred_check
        %p212 = pneg %p102
      $region22: #{tpu_custom_call.1} parent=11 // pred_check_branch
        %214 = sbr.rel (%p212) target = $region24
      $region23: #{tpu_custom_call.1} parent=11 // pred_region
        _
      $region24: #{tpu_custom_call.1} parent=11 // pred_fallthru
        _
      // Predicated region
      $region25: #{tpu_custom_call.1} parent=11 // pred_check
        %p215 = pneg %p123
      $region26: #{tpu_custom_call.1} parent=11 // pred_check_branch
        %217 = sbr.rel (%p215) target = $region28
      $region27: #{tpu_custom_call.1} parent=11 // pred_region
        _
      $region28: #{tpu_custom_call.1} parent=11 // pred_fallthru
        _
      // Predicated region
      $region29: #{tpu_custom_call.1} parent=11 // pred_check
        %p218 = pneg %p144
      $region30: #{tpu_custom_call.1} parent=11 // pred_check_branch
        %220 = sbr.rel (%p218) target = $region32
      $region31: #{tpu_custom_call.1} parent=11 // pred_region
        _
      $region32: #{tpu_custom_call.1} parent=11 // pred_fallthru
        _
      // Predicated region
      $region33: #{tpu_custom_call.1} parent=11 // pred_check
        %p221 = pneg %p165
      $region34: #{tpu_custom_call.1} parent=11 // pred_check_branch
        %223 = sbr.rel (%p221) target = $region36
      $region35: #{tpu_custom_call.1} parent=11 // pred_region
        _
      $region36: #{tpu_custom_call.1} parent=11 // pred_fallthru
        _
    $region12: #{tpu_custom_call.1} parent=5 // pred_fallthru
      _
    %p224 = scmp.lt.s32.totalorder %s13, 2
    // Predicated region
    $region37: #{tpu_custom_call.1} parent=5 // pred_check
      %p225 = pneg %p224
    $region38: #{tpu_custom_call.1} parent=5 // pred_check_branch
      %227 = sbr.rel (%p225) target = $region40
    $region39: #{tpu_custom_call.1} parent=5 // pred_region
      // Predicated region
      $region41: #{tpu_custom_call.1} parent=39 // pred_check
        %p228 = pneg %p33
      $region42: #{tpu_custom_call.1} parent=39 // pred_check_branch
        %230 = sbr.rel (%p228) target = $region44
      $region43: #{tpu_custom_call.1} parent=39 // pred_region
        %p231 = scmp.lt.s32.totalorder %s13, 1
        %s232 = scalar_select %p231, %s13, 1
        %s233 = smul.addr %s232, 32
        %s234 = smul.addr %s233, 4
        %s235 = scalar_lea.vmem %s0, %s234
      $region44: #{tpu_custom_call.1} parent=39 // pred_fallthru
        _
    $region40: #{tpu_custom_call.1} parent=5 // pred_fallthru
      _
    %p236 = scmp.le.s32.totalorder 1, %s13
    %p237 = scmp.lt.s32.totalorder %s13, 3
    %p238 = pnand %p236, %p237
    %p239 = pneg %p238
    // Predicated region
    $region45: #{tpu_custom_call.1} parent=5 // pred_check
      _
    $region46: #{tpu_custom_call.1} parent=5 // pred_check_branch
      %241 = sbr.rel (%p238) target = $region48
    $region47: #{tpu_custom_call.1} parent=5 // pred_region
      %s242 = ssub.s32 %s13, 1
      %p243 = scmp.lt.s32.totalorder %s18, 1
      %s244 = scalar_select %p243, %s18, 1
      %s245 = smul.addr %s244, 32
      %s246 = smul.addr %s245, 4
      %s247 = scalar_lea.vmem %s0, %s246
      %p248 = pneg %p39
      %p249 = pneg %p36
      %p250 = pneg %p60
      %p251 = pneg %p57
      %p252 = pneg %p81
      %p253 = pneg %p78
      %p254 = pneg %p102
      %p255 = pneg %p99
      %p256 = pneg %p123
      %p257 = pneg %p120
      %p258 = pneg %p144
      %p259 = pneg %p141
      %p260 = pneg %p165
      %p261 = pneg %p162
      %p262 = pneg %p191
      %p263 = pneg %p188
      %p264 = scmp.lt.s32.totalorder %s18, 1
      %s265 = scalar_select %p264, %s18, 1
      %s266 = smul.addr %s265, 32
      %s267 = smul.addr %s266, 4
      %s268 = scalar_lea.vmem %s7, %s267
      %p269 = scmp.lt.s32.totalorder %s18, 1
      %s270 = scalar_select %p269, %s18, 1
      %s271 = smul.addr %s270, 32
      %s272 = smul.addr %s271, 4
      %s273 = scalar_lea.vmem %s0, %s272
      %p274 = scmp.lt.s32.totalorder %s18, 1
      %s275 = scalar_select %p274, %s18, 1
      %s276 = smul.addr %s275, 32
      %s277 = smul.addr %s276, 4
      %s278 = scalar_lea.vmem %s7, %s277
      %vm280 = vcmask 97280
      %281 = vst.msk [vmem:[#allocation2] sm:$0xff] %vm280, 0
      %s282 = scalar_lea.vmem [#allocation2], 136
      %283 = vst.msk [vmem:[%s282] sm:$0xff] %vm280, 0
      %vm284 = vcmask 24576
      %vm285 = vsmask.f32 256
      %vm286 = vmand %vm284, %vm285
      %v287 = vld [vmem:[#allocation2] sm:$0x1]
      %v288 = vsel %vm286, 0, %v287
      %289 = vst [vmem:[#allocation2] sm:$0x1] %v288
      %v290 = vld [vmem:[#allocation2 + $0x8] sm:$0x1]
      %v291 = vsel %vm286, 0, %v290
      %292 = vst [vmem:[#allocation2 + $0x8] sm:$0x1] %v291
      %v293 = vld [vmem:[#allocation2 + $0x10] sm:$0x1]
      %v294 = vsel %vm286, 0, %v293
      %295 = vst [vmem:[#allocation2 + $0x10] sm:$0x1] %v294
      %v296 = vld [vmem:[#allocation2 + $0x18] sm:$0x1]
      %v297 = vsel %vm286, 0, %v296
      %298 = vst [vmem:[#allocation2 + $0x18] sm:$0x1] %v297
      %v299 = vld [vmem:[#allocation2 + $0x20] sm:$0x1]
      %v300 = vsel %vm286, 0, %v299
      %301 = vst [vmem:[#allocation2 + $0x20] sm:$0x1] %v300
      %v302 = vld [vmem:[#allocation2 + $0x28] sm:$0x1]
      %v303 = vsel %vm286, 0, %v302
      %304 = vst [vmem:[#allocation2 + $0x28] sm:$0x1] %v303
      %v305 = vld [vmem:[#allocation2 + $0x30] sm:$0x1]
      %v306 = vsel %vm286, 0, %v305
      %307 = vst [vmem:[#allocation2 + $0x30] sm:$0x1] %v306
      %v308 = vld [vmem:[#allocation2 + $0x38] sm:$0x1]
      %v309 = vsel %vm286, 0, %v308
      %310 = vst [vmem:[#allocation2 + $0x38] sm:$0x1] %v309
      %v311 = vld [vmem:[#allocation2 + $0x40] sm:$0x1]
      %v312 = vsel %vm286, 0, %v311
      %313 = vst [vmem:[#allocation2 + $0x40] sm:$0x1] %v312
      %v314 = vld [vmem:[#allocation2 + $0x48] sm:$0x1]
      %v315 = vsel %vm286, 0, %v314
      %316 = vst [vmem:[#allocation2 + $0x48] sm:$0x1] %v315
      %v317 = vld [vmem:[#allocation2 + $0x50] sm:$0x1]
      %v318 = vsel %vm286, 0, %v317
      %319 = vst [vmem:[#allocation2 + $0x50] sm:$0x1] %v318
      %v320 = vld [vmem:[#allocation2 + $0x58] sm:$0x1]
      %v321 = vsel %vm286, 0, %v320
      %322 = vst [vmem:[#allocation2 + $0x58] sm:$0x1] %v321
      %v323 = vld [vmem:[#allocation2 + $0x60] sm:$0x1]
      %v324 = vsel %vm286, 0, %v323
      %325 = vst [vmem:[#allocation2 + $0x60] sm:$0x1] %v324
      %v326 = vld [vmem:[#allocation2 + $0x68] sm:$0x1]
      %v327 = vsel %vm286, 0, %v326
      %328 = vst [vmem:[#allocation2 + $0x68] sm:$0x1] %v327
      %v329 = vld [vmem:[#allocation2 + $0x70] sm:$0x1]
      %v330 = vsel %vm286, 0, %v329
      %331 = vst [vmem:[#allocation2 + $0x70] sm:$0x1] %v330
      %v332 = vld [vmem:[#allocation2 + $0x78] sm:$0x1]
      %v333 = vsel %vm286, 0, %v332
      %334 = vst [vmem:[#allocation2 + $0x78] sm:$0x1] %v333
      %v335 = vld [vmem:[#allocation2 + $0x80] sm:$0x1]
      %v336 = vsel %vm286, 0, %v335
      %337 = vst [vmem:[#allocation2 + $0x80] sm:$0x1] %v336
      %v338 = vld [vmem:[#allocation2 + $0x88] sm:$0x1]
      %v339 = vsel %vm286, 0, %v338
      %340 = vst [vmem:[#allocation2 + $0x88] sm:$0x1] %v339
      %vm341 = vcmask 97351
      %vm342 = vsmask.f32 7966
      %vm343 = vmand %vm341, %vm342
      %v344 = vld [vmem:[#allocation2] sm:$0x80]
      %v345 = vsel %vm343, 0, %v344
      %346 = vst [vmem:[#allocation2] sm:$0x80] %v345
      %v347 = vld [vmem:[#allocation2 + $0x8] sm:$0x80]
      %v348 = vsel %vm343, 0, %v347
      %349 = vst [vmem:[#allocation2 + $0x8] sm:$0x80] %v348
      %v350 = vld [vmem:[#allocation2 + $0x10] sm:$0x80]
      %v351 = vsel %vm343, 0, %v350
      %352 = vst [vmem:[#allocation2 + $0x10] sm:$0x80] %v351
      %v353 = vld [vmem:[#allocation2 + $0x18] sm:$0x80]
      %v354 = vsel %vm343, 0, %v353
      %355 = vst [vmem:[#allocation2 + $0x18] sm:$0x80] %v354
      %v356 = vld [vmem:[#allocation2 + $0x20] sm:$0x80]
      %v357 = vsel %vm343, 0, %v356
      %358 = vst [vmem:[#allocation2 + $0x20] sm:$0x80] %v357
      %v359 = vld [vmem:[#allocation2 + $0x28] sm:$0x80]
      %v360 = vsel %vm343, 0, %v359
      %361 = vst [vmem:[#allocation2 + $0x28] sm:$0x80] %v360
      %v362 = vld [vmem:[#allocation2 + $0x30] sm:$0x80]
      %v363 = vsel %vm343, 0, %v362
      %364 = vst [vmem:[#allocation2 + $0x30] sm:$0x80] %v363
      %v365 = vld [vmem:[#allocation2 + $0x38] sm:$0x80]
      %v366 = vsel %vm343, 0, %v365
      %367 = vst [vmem:[#allocation2 + $0x38] sm:$0x80] %v366
      %v368 = vld [vmem:[#allocation2 + $0x40] sm:$0x80]
      %v369 = vsel %vm343, 0, %v368
      %370 = vst [vmem:[#allocation2 + $0x40] sm:$0x80] %v369
      %v371 = vld [vmem:[#allocation2 + $0x48] sm:$0x80]
      %v372 = vsel %vm343, 0, %v371
      %373 = vst [vmem:[#allocation2 + $0x48] sm:$0x80] %v372
      %v374 = vld [vmem:[#allocation2 + $0x50] sm:$0x80]
      %v375 = vsel %vm343, 0, %v374
      %376 = vst [vmem:[#allocation2 + $0x50] sm:$0x80] %v375
      %v377 = vld [vmem:[#allocation2 + $0x58] sm:$0x80]
      %v378 = vsel %vm343, 0, %v377
      %379 = vst [vmem:[#allocation2 + $0x58] sm:$0x80] %v378
      %v380 = vld [vmem:[#allocation2 + $0x60] sm:$0x80]
      %v381 = vsel %vm343, 0, %v380
      %382 = vst [vmem:[#allocation2 + $0x60] sm:$0x80] %v381
      %v383 = vld [vmem:[#allocation2 + $0x68] sm:$0x80]
      %v384 = vsel %vm343, 0, %v383
      %385 = vst [vmem:[#allocation2 + $0x68] sm:$0x80] %v384
      %v386 = vld [vmem:[#allocation2 + $0x70] sm:$0x80]
      %v387 = vsel %vm343, 0, %v386
      %388 = vst [vmem:[#allocation2 + $0x70] sm:$0x80] %v387
      %v389 = vld [vmem:[#allocation2 + $0x78] sm:$0x80]
      %v390 = vsel %vm343, 0, %v389
      %391 = vst [vmem:[#allocation2 + $0x78] sm:$0x80] %v390
      %v392 = vld [vmem:[#allocation2 + $0x80] sm:$0x80]
      %v393 = vsel %vm343, 0, %v392
      %394 = vst [vmem:[#allocation2 + $0x80] sm:$0x80] %v393
      %v395 = vld [vmem:[#allocation2 + $0x88] sm:$0x80]
      %v396 = vsel %vm343, 0, %v395
      %397 = vst [vmem:[#allocation2 + $0x88] sm:$0x80] %v396
      %v398 = vld [vmem:[%s273] sm:$0xf]
      %v399 = vld [vmem:[%s273 + $0x4] sm:$0xf]
      %v400 = vld [vmem:[%s273 + $0x8] sm:$0xf]
      %v401 = vld [vmem:[%s273 + $0xc] sm:$0xf]
      %v402 = vld [vmem:[%s273 + $0x10] sm:$0xf]
      %v403 = vld [vmem:[%s273 + $0x14] sm:$0xf]
      %v404 = vld [vmem:[%s273 + $0x18] sm:$0xf]
      %v405 = vld [vmem:[%s273 + $0x1c] sm:$0xf]
      %v406 = vld [vmem:[%s273 + $0x20] sm:$0xf]
      %v407 = vld [vmem:[%s273 + $0x24] sm:$0xf]
      %v408 = vld [vmem:[%s273 + $0x28] sm:$0xf]
      %v409 = vld [vmem:[%s273 + $0x2c] sm:$0xf]
      %v410 = vld [vmem:[%s273 + $0x30] sm:$0xf]
      %v411 = vld [vmem:[%s273 + $0x34] sm:$0xf]
      %v412 = vld [vmem:[%s273 + $0x38] sm:$0xf]
      %v413 = vld [vmem:[%s273 + $0x3c] sm:$0xf]
      %v414 = vld [vmem:[%s273 + $0x40] sm:$0xf]
      %v415 = vld [vmem:[%s273 + $0x44] sm:$0xf]
      %v416 = vld [vmem:[%s273 + $0x48] sm:$0xf]
      %v417 = vld [vmem:[%s273 + $0x4c] sm:$0xf]
      %v418 = vld [vmem:[%s273 + $0x50] sm:$0xf]
      %v419 = vld [vmem:[%s273 + $0x54] sm:$0xf]
      %v420 = vld [vmem:[%s273 + $0x58] sm:$0xf]
      %v421 = vld [vmem:[%s273 + $0x5c] sm:$0xf]
      %v422 = vld [vmem:[%s273 + $0x60] sm:$0xf]
      %v423 = vld [vmem:[%s273 + $0x64] sm:$0xf]
      %v424 = vld [vmem:[%s273 + $0x68] sm:$0xf]
      %v425 = vld [vmem:[%s273 + $0x6c] sm:$0xf]
      %v426 = vld [vmem:[%s273 + $0x70] sm:$0xf]
      %v427 = vld [vmem:[%s273 + $0x74] sm:$0xf]
      %v428 = vld [vmem:[%s273 + $0x78] sm:$0xf]
      %v429 = vld [vmem:[%s273 + $0x7c] sm:$0xf]
      %v462 = vunpack.c.l.b16 %v398
      %v463 = vunpack.c.l.b16 %v399
      %v464 = vunpack.c.l.b16 %v400
      %v465 = vunpack.c.l.b16 %v401
      %v466 = vunpack.c.l.b16 %v402
      %v467 = vunpack.c.l.b16 %v403
      %v468 = vunpack.c.l.b16 %v404
      %v469 = vunpack.c.l.b16 %v405
      %v470 = vunpack.c.l.b16 %v406
      %v471 = vunpack.c.l.b16 %v407
      %v472 = vunpack.c.l.b16 %v408
      %v473 = vunpack.c.l.b16 %v409
      %v474 = vunpack.c.l.b16 %v410
      %v475 = vunpack.c.l.b16 %v411
      %v476 = vunpack.c.l.b16 %v412
      %v477 = vunpack.c.l.b16 %v413
      %v478 = vunpack.c.l.b16 %v414
      %v479 = vunpack.c.l.b16 %v415
      %v480 = vunpack.c.l.b16 %v416
      %v481 = vunpack.c.l.b16 %v417
      %v482 = vunpack.c.l.b16 %v418
      %v483 = vunpack.c.l.b16 %v419
      %v484 = vunpack.c.l.b16 %v420
      %v485 = vunpack.c.l.b16 %v421
      %v486 = vunpack.c.l.b16 %v422
      %v487 = vunpack.c.l.b16 %v423
      %v488 = vunpack.c.l.b16 %v424
      %v489 = vunpack.c.l.b16 %v425
      %v490 = vunpack.c.l.b16 %v426
      %v491 = vunpack.c.l.b16 %v427
      %v492 = vunpack.c.l.b16 %v428
      %v493 = vunpack.c.l.b16 %v429
      %v494 = vpack.c.b16 %v463, %v462
      %v495 = vpack.c.b16 %v465, %v464
      %v496 = vpack.c.b16 %v467, %v466
      %v497 = vpack.c.b16 %v469, %v468
      %v498 = vpack.c.b16 %v471, %v470
      %v499 = vpack.c.b16 %v473, %v472
      %v500 = vpack.c.b16 %v475, %v474
      %v501 = vpack.c.b16 %v477, %v476
      %v502 = vpack.c.b16 %v479, %v478
      %v503 = vpack.c.b16 %v481, %v480
      %v504 = vpack.c.b16 %v483, %v482
      %v505 = vpack.c.b16 %v485, %v484
      %v506 = vpack.c.b16 %v487, %v486
      %v507 = vpack.c.b16 %v489, %v488
      %v508 = vpack.c.b16 %v491, %v490
      %v509 = vpack.c.b16 %v493, %v492
      %v511 = vshrl.u32 %v494, 16
      %v513 = vrot.slane %v511, 7
      %v514 = vshll.u32 %v494, 16
      %v516 = vor.u32 %v513, %v514
      %v518 = vshrl.u32 %v495, 16
      %v520 = vrot.slane %v518, 7
      %v521 = vshll.u32 %v495, 16
      %v523 = vor.u32 %v520, %v521
      %v525 = vshrl.u32 %v496, 16
      %v527 = vrot.slane %v525, 7
      %v528 = vshll.u32 %v496, 16
      %v530 = vor.u32 %v527, %v528
      %v532 = vshrl.u32 %v497, 16
      %v534 = vrot.slane %v532, 7
      %v535 = vshll.u32 %v497, 16
      %v537 = vor.u32 %v534, %v535
      %v539 = vshrl.u32 %v498, 16
      %v541 = vrot.slane %v539, 7
      %v542 = vshll.u32 %v498, 16
      %v544 = vor.u32 %v541, %v542
      %v546 = vshrl.u32 %v499, 16
      %v548 = vrot.slane %v546, 7
      %v549 = vshll.u32 %v499, 16
      %v551 = vor.u32 %v548, %v549
      %v553 = vshrl.u32 %v500, 16
      %v555 = vrot.slane %v553, 7
      %v556 = vshll.u32 %v500, 16
      %v558 = vor.u32 %v555, %v556
      %v560 = vshrl.u32 %v501, 16
      %v562 = vrot.slane %v560, 7
      %v563 = vshll.u32 %v501, 16
      %v565 = vor.u32 %v562, %v563
      %v567 = vshrl.u32 %v502, 16
      %v569 = vrot.slane %v567, 7
      %v570 = vshll.u32 %v502, 16
      %v572 = vor.u32 %v569, %v570
      %v574 = vshrl.u32 %v503, 16
      %v576 = vrot.slane %v574, 7
      %v577 = vshll.u32 %v503, 16
      %v579 = vor.u32 %v576, %v577
      %v581 = vshrl.u32 %v504, 16
      %v583 = vrot.slane %v581, 7
      %v584 = vshll.u32 %v504, 16
      %v586 = vor.u32 %v583, %v584
      %v588 = vshrl.u32 %v505, 16
      %v590 = vrot.slane %v588, 7
      %v591 = vshll.u32 %v505, 16
      %v593 = vor.u32 %v590, %v591
      %v595 = vshrl.u32 %v506, 16
      %v597 = vrot.slane %v595, 7
      %v598 = vshll.u32 %v506, 16
      %v600 = vor.u32 %v597, %v598
      %v602 = vshrl.u32 %v507, 16
      %v604 = vrot.slane %v602, 7
      %v605 = vshll.u32 %v507, 16
      %v607 = vor.u32 %v604, %v605
      %v609 = vshrl.u32 %v508, 16
      %v611 = vrot.slane %v609, 7
      %v612 = vshll.u32 %v508, 16
      %v614 = vor.u32 %v611, %v612
      %v616 = vshrl.u32 %v509, 16
      %v618 = vrot.slane %v616, 7
      %v619 = vshll.u32 %v509, 16
      %v621 = vor.u32 %v618, %v619
      %s638 = scalar_lea.vmem [#allocation2], 8
      %vm639 = vcmask 31744
      %vm640 = vsmask.f32 7938
      %vm641 = vmand %vm639, %vm640
      %v642 = vld [vmem:[%s638] sm:$0xff]
      %v643 = vsel %vm641, %v516, %v642
      %644 = vst [vmem:[%s638] sm:$0xff] %v643
      %v645 = vld [vmem:[%s638 + $0x8] sm:$0xff]
      %v646 = vsel %vm641, %v523, %v645
      %647 = vst [vmem:[%s638 + $0x8] sm:$0xff] %v646
      %v648 = vld [vmem:[%s638 + $0x10] sm:$0xff]
      %v649 = vsel %vm641, %v530, %v648
      %650 = vst [vmem:[%s638 + $0x10] sm:$0xff] %v649
      %v651 = vld [vmem:[%s638 + $0x18] sm:$0xff]
      %v652 = vsel %vm641, %v537, %v651
      %653 = vst [vmem:[%s638 + $0x18] sm:$0xff] %v652
      %v654 = vld [vmem:[%s638 + $0x20] sm:$0xff]
      %v655 = vsel %vm641, %v544, %v654
      %656 = vst [vmem:[%s638 + $0x20] sm:$0xff] %v655
      %v657 = vld [vmem:[%s638 + $0x28] sm:$0xff]
      %v658 = vsel %vm641, %v551, %v657
      %659 = vst [vmem:[%s638 + $0x28] sm:$0xff] %v658
      %v660 = vld [vmem:[%s638 + $0x30] sm:$0xff]
      %v661 = vsel %vm641, %v558, %v660
      %662 = vst [vmem:[%s638 + $0x30] sm:$0xff] %v661
      %v663 = vld [vmem:[%s638 + $0x38] sm:$0xff]
      %v664 = vsel %vm641, %v565, %v663
      %665 = vst [vmem:[%s638 + $0x38] sm:$0xff] %v664
      %v666 = vld [vmem:[%s638 + $0x40] sm:$0xff]
      %v667 = vsel %vm641, %v572, %v666
      %668 = vst [vmem:[%s638 + $0x40] sm:$0xff] %v667
      %v669 = vld [vmem:[%s638 + $0x48] sm:$0xff]
      %v670 = vsel %vm641, %v579, %v669
      %671 = vst [vmem:[%s638 + $0x48] sm:$0xff] %v670
      %v672 = vld [vmem:[%s638 + $0x50] sm:$0xff]
      %v673 = vsel %vm641, %v586, %v672
      %674 = vst [vmem:[%s638 + $0x50] sm:$0xff] %v673
      %v675 = vld [vmem:[%s638 + $0x58] sm:$0xff]
      %v676 = vsel %vm641, %v593, %v675
      %677 = vst [vmem:[%s638 + $0x58] sm:$0xff] %v676
      %v678 = vld [vmem:[%s638 + $0x60] sm:$0xff]
      %v679 = vsel %vm641, %v600, %v678
      %680 = vst [vmem:[%s638 + $0x60] sm:$0xff] %v679
      %v681 = vld [vmem:[%s638 + $0x68] sm:$0xff]
      %v682 = vsel %vm641, %v607, %v681
      %683 = vst [vmem:[%s638 + $0x68] sm:$0xff] %v682
      %v684 = vld [vmem:[%s638 + $0x70] sm:$0xff]
      %v685 = vsel %vm641, %v614, %v684
      %686 = vst [vmem:[%s638 + $0x70] sm:$0xff] %v685
      %v687 = vld [vmem:[%s638 + $0x78] sm:$0xff]
      %v688 = vsel %vm641, %v621, %v687
      %689 = vst [vmem:[%s638 + $0x78] sm:$0xff] %v688
      %690 = vrot.lane.b32.xlu0 %v494, 4
      %v691 = vpop.permute.xlu0 %690
      %692 = vrot.lane.b32.xlu0 %v495, 4
      %v693 = vpop.permute.xlu0 %692
      %694 = vrot.lane.b32.xlu0 %v496, 4
      %v695 = vpop.permute.xlu0 %694
      %696 = vrot.lane.b32.xlu0 %v497, 4
      %v697 = vpop.permute.xlu0 %696
      %698 = vrot.lane.b32.xlu0 %v498, 4
      %v699 = vpop.permute.xlu0 %698
      %700 = vrot.lane.b32.xlu0 %v499, 4
      %v701 = vpop.permute.xlu0 %700
      %702 = vrot.lane.b32.xlu0 %v500, 4
      %v703 = vpop.permute.xlu0 %702
      %704 = vrot.lane.b32.xlu0 %v501, 4
      %v705 = vpop.permute.xlu0 %704
      %706 = vrot.lane.b32.xlu0 %v502, 4
      %v707 = vpop.permute.xlu0 %706
      %708 = vrot.lane.b32.xlu0 %v503, 4
      %v709 = vpop.permute.xlu0 %708
      %710 = vrot.lane.b32.xlu0 %v504, 4
      %v711 = vpop.permute.xlu0 %710
      %712 = vrot.lane.b32.xlu0 %v505, 4
      %v713 = vpop.permute.xlu0 %712
      %714 = vrot.lane.b32.xlu0 %v506, 4
      %v715 = vpop.permute.xlu0 %714
      %716 = vrot.lane.b32.xlu0 %v507, 4
      %v717 = vpop.permute.xlu0 %716
      %718 = vrot.lane.b32.xlu0 %v508, 4
      %v719 = vpop.permute.xlu0 %718
      %720 = vrot.lane.b32.xlu0 %v509, 4
      %v721 = vpop.permute.xlu0 %720
      %vm738 = vcmask 64544
      %739 = vst.msk [vmem:[%s638] sm:$0xff] %vm738, %v691
      %740 = vst.msk [vmem:[%s638 + $0x8] sm:$0xff] %vm738, %v693
      %741 = vst.msk [vmem:[%s638 + $0x10] sm:$0xff] %vm738, %v695
      %742 = vst.msk [vmem:[%s638 + $0x18] sm:$0xff] %vm738, %v697
      %743 = vst.msk [vmem:[%s638 + $0x20] sm:$0xff] %vm738, %v699
      %744 = vst.msk [vmem:[%s638 + $0x28] sm:$0xff] %vm738, %v701
      %745 = vst.msk [vmem:[%s638 + $0x30] sm:$0xff] %vm738, %v703
      %746 = vst.msk [vmem:[%s638 + $0x38] sm:$0xff] %vm738, %v705
      %747 = vst.msk [vmem:[%s638 + $0x40] sm:$0xff] %vm738, %v707
      %748 = vst.msk [vmem:[%s638 + $0x48] sm:$0xff] %vm738, %v709
      %749 = vst.msk [vmem:[%s638 + $0x50] sm:$0xff] %vm738, %v711
      %750 = vst.msk [vmem:[%s638 + $0x58] sm:$0xff] %vm738, %v713
      %751 = vst.msk [vmem:[%s638 + $0x60] sm:$0xff] %vm738, %v715
      %752 = vst.msk [vmem:[%s638 + $0x68] sm:$0xff] %vm738, %v717
      %753 = vst.msk [vmem:[%s638 + $0x70] sm:$0xff] %vm738, %v719
      %754 = vst.msk [vmem:[%s638 + $0x78] sm:$0xff] %vm738, %v721
      %v755 = vrot.slane %v514, 1
      %v756 = vor.u32 %v511, %v755
      %v757 = vrot.slane %v521, 1
      %v758 = vor.u32 %v518, %v757
      %v759 = vrot.slane %v528, 1
      %v760 = vor.u32 %v525, %v759
      %v761 = vrot.slane %v535, 1
      %v762 = vor.u32 %v532, %v761
      %v763 = vrot.slane %v542, 1
      %v764 = vor.u32 %v539, %v763
      %v765 = vrot.slane %v549, 1
      %v766 = vor.u32 %v546, %v765
      %v767 = vrot.slane %v556, 1
      %v768 = vor.u32 %v553, %v767
      %v769 = vrot.slane %v563, 1
      %v770 = vor.u32 %v560, %v769
      %v771 = vrot.slane %v570, 1
      %v772 = vor.u32 %v567, %v771
      %v773 = vrot.slane %v577, 1
      %v774 = vor.u32 %v574, %v773
      %v775 = vrot.slane %v584, 1
      %v776 = vor.u32 %v581, %v775
      %v777 = vrot.slane %v591, 1
      %v778 = vor.u32 %v588, %v777
      %v779 = vrot.slane %v598, 1
      %v780 = vor.u32 %v595, %v779
      %v781 = vrot.slane %v605, 1
      %v782 = vor.u32 %v602, %v781
      %v783 = vrot.slane %v612, 1
      %v784 = vor.u32 %v609, %v783
      %v785 = vrot.slane %v619, 1
      %v786 = vor.u32 %v616, %v785
      %787 = vrot.lane.b32.xlu0 %v756, 8
      %v788 = vpop.permute.xlu0 %787
      %789 = vrot.lane.b32.xlu0 %v758, 8
      %v790 = vpop.permute.xlu0 %789
      %791 = vrot.lane.b32.xlu0 %v760, 8
      %v792 = vpop.permute.xlu0 %791
      %793 = vrot.lane.b32.xlu0 %v762, 8
      %v794 = vpop.permute.xlu0 %793
      %795 = vrot.lane.b32.xlu0 %v764, 8
      %v796 = vpop.permute.xlu0 %795
      %797 = vrot.lane.b32.xlu0 %v766, 8
      %v798 = vpop.permute.xlu0 %797
      %799 = vrot.lane.b32.xlu0 %v768, 8
      %v800 = vpop.permute.xlu0 %799
      %801 = vrot.lane.b32.xlu0 %v770, 8
      %v802 = vpop.permute.xlu0 %801
      %803 = vrot.lane.b32.xlu0 %v772, 8
      %v804 = vpop.permute.xlu0 %803
      %805 = vrot.lane.b32.xlu0 %v774, 8
      %v806 = vpop.permute.xlu0 %805
      %807 = vrot.lane.b32.xlu0 %v776, 8
      %v808 = vpop.permute.xlu0 %807
      %809 = vrot.lane.b32.xlu0 %v778, 8
      %v810 = vpop.permute.xlu0 %809
      %811 = vrot.lane.b32.xlu0 %v780, 8
      %v812 = vpop.permute.xlu0 %811
      %813 = vrot.lane.b32.xlu0 %v782, 8
      %v814 = vpop.permute.xlu0 %813
      %815 = vrot.lane.b32.xlu0 %v784, 8
      %v816 = vpop.permute.xlu0 %815
      %817 = vrot.lane.b32.xlu0 %v786, 8
      %v818 = vpop.permute.xlu0 %817
      %vm835 = vcmask 97344
      %vm836 = vsmask.f32 7424
      %vm837 = vmand %vm835, %vm836
      %v838 = vld [vmem:[%s638] sm:$0xff]
      %v839 = vsel %vm837, %v788, %v838
      %840 = vst [vmem:[%s638] sm:$0xff] %v839
      %v841 = vld [vmem:[%s638 + $0x8] sm:$0xff]
      %v842 = vsel %vm837, %v790, %v841
      %843 = vst [vmem:[%s638 + $0x8] sm:$0xff] %v842
      %v844 = vld [vmem:[%s638 + $0x10] sm:$0xff]
      %v845 = vsel %vm837, %v792, %v844
      %846 = vst [vmem:[%s638 + $0x10] sm:$0xff] %v845
      %v847 = vld [vmem:[%s638 + $0x18] sm:$0xff]
      %v848 = vsel %vm837, %v794, %v847
      %849 = vst [vmem:[%s638 + $0x18] sm:$0xff] %v848
      %v850 = vld [vmem:[%s638 + $0x20] sm:$0xff]
      %v851 = vsel %vm837, %v796, %v850
      %852 = vst [vmem:[%s638 + $0x20] sm:$0xff] %v851
      %v853 = vld [vmem:[%s638 + $0x28] sm:$0xff]
      %v854 = vsel %vm837, %v798, %v853
      %855 = vst [vmem:[%s638 + $0x28] sm:$0xff] %v854
      %v856 = vld [vmem:[%s638 + $0x30] sm:$0xff]
      %v857 = vsel %vm837, %v800, %v856
      %858 = vst [vmem:[%s638 + $0x30] sm:$0xff] %v857
      %v859 = vld [vmem:[%s638 + $0x38] sm:$0xff]
      %v860 = vsel %vm837, %v802, %v859
      %861 = vst [vmem:[%s638 + $0x38] sm:$0xff] %v860
      %v862 = vld [vmem:[%s638 + $0x40] sm:$0xff]
      %v863 = vsel %vm837, %v804, %v862
      %864 = vst [vmem:[%s638 + $0x40] sm:$0xff] %v863
      %v865 = vld [vmem:[%s638 + $0x48] sm:$0xff]
      %v866 = vsel %vm837, %v806, %v865
      %867 = vst [vmem:[%s638 + $0x48] sm:$0xff] %v866
      %v868 = vld [vmem:[%s638 + $0x50] sm:$0xff]
      %v869 = vsel %vm837, %v808, %v868
      %870 = vst [vmem:[%s638 + $0x50] sm:$0xff] %v869
      %v871 = vld [vmem:[%s638 + $0x58] sm:$0xff]
      %v872 = vsel %vm837, %v810, %v871
      %873 = vst [vmem:[%s638 + $0x58] sm:$0xff] %v872
      %v874 = vld [vmem:[%s638 + $0x60] sm:$0xff]
      %v875 = vsel %vm837, %v812, %v874
      %876 = vst [vmem:[%s638 + $0x60] sm:$0xff] %v875
      %v877 = vld [vmem:[%s638 + $0x68] sm:$0xff]
      %v878 = vsel %vm837, %v814, %v877
      %879 = vst [vmem:[%s638 + $0x68] sm:$0xff] %v878
      %v880 = vld [vmem:[%s638 + $0x70] sm:$0xff]
      %v881 = vsel %vm837, %v816, %v880
      %882 = vst [vmem:[%s638 + $0x70] sm:$0xff] %v881
      %v883 = vld [vmem:[%s638 + $0x78] sm:$0xff]
      %v884 = vsel %vm837, %v818, %v883
      %885 = vst [vmem:[%s638 + $0x78] sm:$0xff] %v884
      %v886 = vld [vmem:[#allocation2] sm:$0xff]
      %v887 = vld [vmem:[#allocation2 + $0x8] sm:$0xff]
      %v888 = vld [vmem:[#allocation2 + $0x10] sm:$0xff]
      %v889 = vld [vmem:[#allocation2 + $0x18] sm:$0xff]
      %v890 = vld [vmem:[#allocation2 + $0x20] sm:$0xff]
      %v891 = vld [vmem:[#allocation2 + $0x28] sm:$0xff]
      %v892 = vld [vmem:[#allocation2 + $0x30] sm:$0xff]
      %v893 = vld [vmem:[#allocation2 + $0x38] sm:$0xff]
      %v894 = vld [vmem:[#allocation2 + $0x40] sm:$0xff]
      %v895 = vld [vmem:[#allocation2 + $0x48] sm:$0xff]
      %v896 = vld [vmem:[#allocation2 + $0x50] sm:$0xff]
      %v897 = vld [vmem:[#allocation2 + $0x58] sm:$0xff]
      %v898 = vld [vmem:[#allocation2 + $0x60] sm:$0xff]
      %v899 = vld [vmem:[#allocation2 + $0x68] sm:$0xff]
      %v900 = vld [vmem:[#allocation2 + $0x70] sm:$0xff]
      %v901 = vld [vmem:[#allocation2 + $0x78] sm:$0xff]
      %v902 = vld [vmem:[%s1] sm:$0xf]
      %v903 = vld [vmem:[%s1 + $0x4] sm:$0x3]
      %v906 = vunpack.c.l.b16 %v902
      %v907 = vunpack.c.l.b16 %v903
      %v908 = vpack.c.b16 %v907, %v906
      %v910 = vsel %vm280, %v886, 0
      %v913 = vsel %vm280, %v887, 0
      %v916 = vsel %vm280, %v888, 0
      %v919 = vsel %vm280, %v889, 0
      %v922 = vsel %vm280, %v890, 0
      %v925 = vsel %vm280, %v891, 0
      %v928 = vsel %vm280, %v892, 0
      %v931 = vsel %vm280, %v893, 0
      %v934 = vsel %vm280, %v894, 0
      %v937 = vsel %vm280, %v895, 0
      %v940 = vsel %vm280, %v896, 0
      %v943 = vsel %vm280, %v897, 0
      %v946 = vsel %vm280, %v898, 0
      %v949 = vsel %vm280, %v899, 0
      %v952 = vsel %vm280, %v900, 0
      %v955 = vsel %vm280, %v901, 0
      %vm957 = vcmask 1045504
      %v959 = vsel %vm957, %v908, 0
      %961 = vmatprep.subr.bf16.mxu0 0
      %962 = vmatpush1.bf16.msra.mxu0 %v959
      %963 = vmatprep.subr.bf16.mxu0 0
      %964 = vmatpush1.bf16.msra.mxu0 0
      %965 = vmatprep.subr.bf16.mxu0 0
      %966 = vmatpush1.bf16.msra.mxu0 0
      %967 = vmatprep.subr.bf16.mxu0 0
      %968 = vmatpush1.bf16.msra.mxu0 0
      %969 = vmatprep.subr.bf16.mxu0 0
      %970 = vmatpush1.bf16.msra.mxu0 0
      %971 = vmatprep.subr.bf16.mxu0 0
      %972 = vmatpush1.bf16.msra.mxu0 0
      %973 = vmatprep.subr.bf16.mxu0 0
      %974 = vmatpush1.bf16.msra.mxu0 0
      %975 = vmatprep.subr.bf16.mxu0 0
      %976 = vmatpush1.bf16.msra.mxu0 0
      %977 = vmatprep.subr.bf16.mxu0 0
      %978 = vmatpush1.bf16.msra.mxu0 0
      %979 = vmatprep.subr.bf16.mxu0 0
      %980 = vmatpush1.bf16.msra.mxu0 0
      %981 = vmatprep.subr.bf16.mxu0 0
      %982 = vmatpush1.bf16.msra.mxu0 0
      %983 = vmatprep.subr.bf16.mxu0 0
      %984 = vmatpush1.bf16.msra.mxu0 0
      %985 = vmatprep.subr.bf16.mxu0 0
      %986 = vmatpush1.bf16.msra.mxu0 0
      %987 = vmatprep.subr.bf16.mxu0 0
      %988 = vmatpush1.bf16.msra.mxu0 0
      %989 = vmatprep.subr.bf16.mxu0 0
      %990 = vmatpush1.bf16.msra.mxu0 0
      %991 = vmatprep.subr.bf16.mxu0 0
      %992 = vmatpush1.bf16.msra.mxu0 0
      %993 = vmatprep.mubr.bf16.mxu0 0
      %994 = vmatmul.mubr.bf16.gmra.mrb[0].mxu0 %v910
      %v995 = vpop.f32.mrb[0].mxu0
      %v996 = vadd.f32 0.0, %v995
      %v997 = vpop.f32.mrb[0].mxu0
      %v998 = vpop.f32.mrb[0].mxu0
      %v999 = vadd.f32 0.0, %v998
      %v1000 = vpop.f32.mrb[0].mxu0
      %1001 = vmatprep.mubr.bf16.mxu0 0
      %1002 = vmatmul.mubr.bf16.gmra.mrb[0].mxu0 %v913
      %v1003 = vpop.f32.mrb[0].mxu0
      %v1004 = vadd.f32 0.0, %v1003
      %v1005 = vpop.f32.mrb[0].mxu0
      %v1006 = vpop.f32.mrb[0].mxu0
      %v1007 = vadd.f32 0.0, %v1006
      %v1008 = vpop.f32.mrb[0].mxu0
      %1009 = vmatprep.mubr.bf16.mxu0 0
      %1010 = vmatmul.mubr.bf16.gmra.mrb[0].mxu0 %v916
      %v1011 = vpop.f32.mrb[0].mxu0
      %v1012 = vadd.f32 0.0, %v1011
      %v1013 = vpop.f32.mrb[0].mxu0
      %v1014 = vpop.f32.mrb[0].mxu0
      %v1015 = vadd.f32 0.0, %v1014
      %v1016 = vpop.f32.mrb[0].mxu0
      %1017 = vmatprep.mubr.bf16.mxu0 0
      %1018 = vmatmul.mubr.bf16.gmra.mrb[0].mxu0 %v919
      %v1019 = vpop.f32.mrb[0].mxu0
      %v1020 = vadd.f32 0.0, %v1019
      %v1021 = vpop.f32.mrb[0].mxu0
      %v1022 = vpop.f32.mrb[0].mxu0
      %v1023 = vadd.f32 0.0, %v1022
      %v1024 = vpop.f32.mrb[0].mxu0
      %1025 = vmatprep.mubr.bf16.mxu0 0
      %1026 = vmatmul.mubr.bf16.gmra.mrb[0].mxu0 %v922
      %v1027 = vpop.f32.mrb[0].mxu0
      %v1028 = vadd.f32 0.0, %v1027
      %v1029 = vpop.f32.mrb[0].mxu0
      %v1030 = vpop.f32.mrb[0].mxu0
      %v1031 = vadd.f32 0.0, %v1030
      %v1032 = vpop.f32.mrb[0].mxu0
      %1033 = vmatprep.mubr.bf16.mxu0 0
      %1034 = vmatmul.mubr.bf16.gmra.mrb[0].mxu0 %v925
      %v1035 = vpop.f32.mrb[0].mxu0
      %v1036 = vadd.f32 0.0, %v1035
      %v1037 = vpop.f32.mrb[0].mxu0
      %v1038 = vpop.f32.mrb[0].mxu0
      %v1039 = vadd.f32 0.0, %v1038
      %v1040 = vpop.f32.mrb[0].mxu0
      %1041 = vmatprep.mubr.bf16.mxu0 0
      %1042 = vmatmul.mubr.bf16.gmra.mrb[0].mxu0 %v928
      %v1043 = vpop.f32.mrb[0].mxu0
      %v1044 = vadd.f32 0.0, %v1043
      %v1045 = vpop.f32.mrb[0].mxu0
      %v1046 = vpop.f32.mrb[0].mxu0
      %v1047 = vadd.f32 0.0, %v1046
      %v1048 = vpop.f32.mrb[0].mxu0
      %1049 = vmatprep.mubr.bf16.mxu0 0
      %1050 = vmatmul.mubr.bf16.gmra.mrb[0].mxu0 %v931
      %v1051 = vpop.f32.mrb[0].mxu0
      %v1052 = vadd.f32 0.0, %v1051
      %v1053 = vpop.f32.mrb[0].mxu0
      %v1054 = vpop.f32.mrb[0].mxu0
      %v1055 = vadd.f32 0.0, %v1054
      %v1056 = vpop.f32.mrb[0].mxu0
      %1057 = vmatprep.mubr.bf16.mxu0 0
      %1058 = vmatmul.mubr.bf16.gmra.mrb[0].mxu0 %v934
      %v1059 = vpop.f32.mrb[0].mxu0
      %v1060 = vadd.f32 0.0, %v1059
      %v1061 = vpop.f32.mrb[0].mxu0
      %v1062 = vpop.f32.mrb[0].mxu0
      %v1063 = vadd.f32 0.0, %v1062
      %v1064 = vpop.f32.mrb[0].mxu0
      %1065 = vmatprep.mubr.bf16.mxu0 0
      %1066 = vmatmul.mubr.bf16.gmra.mrb[0].mxu0 %v937
      %v1067 = vpop.f32.mrb[0].mxu0
      %v1068 = vadd.f32 0.0, %v1067
      %v1069 = vpop.f32.mrb[0].mxu0
      %v1070 = vpop.f32.mrb[0].mxu0
      %v1071 = vadd.f32 0.0, %v1070
      %v1072 = vpop.f32.mrb[0].mxu0
      %1073 = vmatprep.mubr.bf16.mxu0 0
      %1074 = vmatmul.mubr.bf16.gmra.mrb[0].mxu0 %v940
      %v1075 = vpop.f32.mrb[0].mxu0
      %v1076 = vadd.f32 0.0, %v1075
      %v1077 = vpop.f32.mrb[0].mxu0
      %v1078 = vpop.f32.mrb[0].mxu0
      %v1079 = vadd.f32 0.0, %v1078
      %v1080 = vpop.f32.mrb[0].mxu0
      %1081 = vmatprep.mubr.bf16.mxu0 0
      %1082 = vmatmul.mubr.bf16.gmra.mrb[0].mxu0 %v943
      %v1083 = vpop.f32.mrb[0].mxu0
      %v1084 = vadd.f32 0.0, %v1083
      %v1085 = vpop.f32.mrb[0].mxu0
      %v1086 = vpop.f32.mrb[0].mxu0
      %v1087 = vadd.f32 0.0, %v1086
      %v1088 = vpop.f32.mrb[0].mxu0
      %1089 = vmatprep.mubr.bf16.mxu0 0
      %1090 = vmatmul.mubr.bf16.gmra.mrb[0].mxu0 %v946
      %v1091 = vpop.f32.mrb[0].mxu0
      %v1092 = vadd.f32 0.0, %v1091
      %v1093 = vpop.f32.mrb[0].mxu0
      %v1094 = vpop.f32.mrb[0].mxu0
      %v1095 = vadd.f32 0.0, %v1094
      %v1096 = vpop.f32.mrb[0].mxu0
      %1097 = vmatprep.mubr.bf16.mxu0 0
      %1098 = vmatmul.mubr.bf16.gmra.mrb[0].mxu0 %v949
      %v1099 = vpop.f32.mrb[0].mxu0
      %v1100 = vadd.f32 0.0, %v1099
      %v1101 = vpop.f32.mrb[0].mxu0
      %v1102 = vpop.f32.mrb[0].mxu0
      %v1103 = vadd.f32 0.0, %v1102
      %v1104 = vpop.f32.mrb[0].mxu0
      %1105 = vmatprep.mubr.bf16.mxu0 0
      %1106 = vmatmul.mubr.bf16.gmra.mrb[0].mxu0 %v952
      %v1107 = vpop.f32.mrb[0].mxu0
      %v1108 = vadd.f32 0.0, %v1107
      %v1109 = vpop.f32.mrb[0].mxu0
      %v1110 = vpop.f32.mrb[0].mxu0
      %v1111 = vadd.f32 0.0, %v1110
      %v1112 = vpop.f32.mrb[0].mxu0
      %1113 = vmatprep.mubr.bf16.mxu0 0
      %1114 = vmatmul.mubr.bf16.gmra.mrb[0].mxu0 %v955
      %v1115 = vpop.f32.mrb[0].mxu0
      %v1116 = vadd.f32 0.0, %v1115
      %v1117 = vpop.f32.mrb[0].mxu0
      %v1118 = vpop.f32.mrb[0].mxu0
      %v1119 = vadd.f32 0.0, %v1118
      %v1120 = vpop.f32.mrb[0].mxu0
      %1121 = vdwg.mxu0
      %vm1122 = vcmask 31744
      %1123 = vst.msk [vmem:[#allocation3] sm:$0xff] %vm1122, %v996
      %1124 = vst.msk [vmem:[#allocation3 + $0x8] sm:$0xff] %vm1122, %v999
      %1125 = vst.msk [vmem:[#allocation3 + $0x10] sm:$0xff] %vm1122, %v1004
      %1126 = vst.msk [vmem:[#allocation3 + $0x18] sm:$0xff] %vm1122, %v1007
      %1127 = vst.msk [vmem:[#allocation3 + $0x20] sm:$0xff] %vm1122, %v1012
      %1128 = vst.msk [vmem:[#allocation3 + $0x28] sm:$0xff] %vm1122, %v1015
      %1129 = vst.msk [vmem:[#allocation3 + $0x30] sm:$0xff] %vm1122, %v1020
      %1130 = vst.msk [vmem:[#allocation3 + $0x38] sm:$0xff] %vm1122, %v1023
      %1131 = vst.msk [vmem:[#allocation3 + $0x40] sm:$0xff] %vm1122, %v1028
      %1132 = vst.msk [vmem:[#allocation3 + $0x48] sm:$0xff] %vm1122, %v1031
      %1133 = vst.msk [vmem:[#allocation3 + $0x50] sm:$0xff] %vm1122, %v1036
      %1134 = vst.msk [vmem:[#allocation3 + $0x58] sm:$0xff] %vm1122, %v1039
      %1135 = vst.msk [vmem:[#allocation3 + $0x60] sm:$0xff] %vm1122, %v1044
      %1136 = vst.msk [vmem:[#allocation3 + $0x68] sm:$0xff] %vm1122, %v1047
      %1137 = vst.msk [vmem:[#allocation3 + $0x70] sm:$0xff] %vm1122, %v1052
      %1138 = vst.msk [vmem:[#allocation3 + $0x78] sm:$0xff] %vm1122, %v1055
      %1139 = vst.msk [vmem:[#allocation3 + $0x80] sm:$0xff] %vm1122, %v1060
      %1140 = vst.msk [vmem:[#allocation3 + $0x88] sm:$0xff] %vm1122, %v1063
      %1141 = vst.msk [vmem:[#allocation3 + $0x90] sm:$0xff] %vm1122, %v1068
      %1142 = vst.msk [vmem:[#allocation3 + $0x98] sm:$0xff] %vm1122, %v1071
      %1143 = vst.msk [vmem:[#allocation3 + $0xa0] sm:$0xff] %vm1122, %v1076
      %1144 = vst.msk [vmem:[#allocation3 + $0xa8] sm:$0xff] %vm1122, %v1079
      %1145 = vst.msk [vmem:[#allocation3 + $0xb0] sm:$0xff] %vm1122, %v1084
      %1146 = vst.msk [vmem:[#allocation3 + $0xb8] sm:$0xff] %vm1122, %v1087
      %1147 = vst.msk [vmem:[#allocation3 + $0xc0] sm:$0xff] %vm1122, %v1092
      %1148 = vst.msk [vmem:[#allocation3 + $0xc8] sm:$0xff] %vm1122, %v1095
      %1149 = vst.msk [vmem:[#allocation3 + $0xd0] sm:$0xff] %vm1122, %v1100
      %1150 = vst.msk [vmem:[#allocation3 + $0xd8] sm:$0xff] %vm1122, %v1103
      %1151 = vst.msk [vmem:[#allocation3 + $0xe0] sm:$0xff] %vm1122, %v1108
      %1152 = vst.msk [vmem:[#allocation3 + $0xe8] sm:$0xff] %vm1122, %v1111
      %1153 = vst.msk [vmem:[#allocation3 + $0xf0] sm:$0xff] %vm1122, %v1116
      %1154 = vst.msk [vmem:[#allocation3 + $0xf8] sm:$0xff] %vm1122, %v1119
      %v1155 = vld [vmem:[#allocation3] sm:$0xff]
      %v1156 = vld [vmem:[#allocation3 + $0x8] sm:$0xff]
      %v1157 = vld [vmem:[#allocation3 + $0x10] sm:$0xff]
      %v1158 = vld [vmem:[#allocation3 + $0x18] sm:$0xff]
      %v1159 = vld [vmem:[#allocation3 + $0x20] sm:$0xff]
      %v1160 = vld [vmem:[#allocation3 + $0x28] sm:$0xff]
      %v1161 = vld [vmem:[#allocation3 + $0x30] sm:$0xff]
      %v1162 = vld [vmem:[#allocation3 + $0x38] sm:$0xff]
      %v1163 = vld [vmem:[#allocation3 + $0x40] sm:$0xff]
      %v1164 = vld [vmem:[#allocation3 + $0x48] sm:$0xff]
      %v1165 = vld [vmem:[#allocation3 + $0x50] sm:$0xff]
      %v1166 = vld [vmem:[#allocation3 + $0x58] sm:$0xff]
      %v1167 = vld [vmem:[#allocation3 + $0x60] sm:$0xff]
      %v1168 = vld [vmem:[#allocation3 + $0x68] sm:$0xff]
      %v1169 = vld [vmem:[#allocation3 + $0x70] sm:$0xff]
      %v1170 = vld [vmem:[#allocation3 + $0x78] sm:$0xff]
      %v1171 = vld [vmem:[#allocation3 + $0x80] sm:$0xff]
      %v1172 = vld [vmem:[#allocation3 + $0x88] sm:$0xff]
      %v1173 = vld [vmem:[#allocation3 + $0x90] sm:$0xff]
      %v1174 = vld [vmem:[#allocation3 + $0x98] sm:$0xff]
      %v1175 = vld [vmem:[#allocation3 + $0xa0] sm:$0xff]
      %v1176 = vld [vmem:[#allocation3 + $0xa8] sm:$0xff]
      %v1177 = vld [vmem:[#allocation3 + $0xb0] sm:$0xff]
      %v1178 = vld [vmem:[#allocation3 + $0xb8] sm:$0xff]
      %v1179 = vld [vmem:[#allocation3 + $0xc0] sm:$0xff]
      %v1180 = vld [vmem:[#allocation3 + $0xc8] sm:$0xff]
      %v1181 = vld [vmem:[#allocation3 + $0xd0] sm:$0xff]
      %v1182 = vld [vmem:[#allocation3 + $0xd8] sm:$0xff]
      %v1183 = vld [vmem:[#allocation3 + $0xe0] sm:$0xff]
      %v1184 = vld [vmem:[#allocation3 + $0xe8] sm:$0xff]
      %v1185 = vld [vmem:[#allocation3 + $0xf0] sm:$0xff]
      %v1186 = vld [vmem:[#allocation3 + $0xf8] sm:$0xff]
      %v1187 = vld [vmem:[%s638] sm:$0xff]
      %v1188 = vld [vmem:[%s638 + $0x8] sm:$0xff]
      %v1189 = vld [vmem:[%s638 + $0x10] sm:$0xff]
      %v1190 = vld [vmem:[%s638 + $0x18] sm:$0xff]
      %v1191 = vld [vmem:[%s638 + $0x20] sm:$0xff]
      %v1192 = vld [vmem:[%s638 + $0x28] sm:$0xff]
      %v1193 = vld [vmem:[%s638 + $0x30] sm:$0xff]
      %v1194 = vld [vmem:[%s638 + $0x38] sm:$0xff]
      %v1195 = vld [vmem:[%s638 + $0x40] sm:$0xff]
      %v1196 = vld [vmem:[%s638 + $0x48] sm:$0xff]
      %v1197 = vld [vmem:[%s638 + $0x50] sm:$0xff]
      %v1198 = vld [vmem:[%s638 + $0x58] sm:$0xff]
      %v1199 = vld [vmem:[%s638 + $0x60] sm:$0xff]
      %v1200 = vld [vmem:[%s638 + $0x68] sm:$0xff]
      %v1201 = vld [vmem:[%s638 + $0x70] sm:$0xff]
      %v1202 = vld [vmem:[%s638 + $0x78] sm:$0xff]
      %s1203 = scalar_lea.vmem %s1, 8
      %v1204 = vld [vmem:[%s1203] sm:$0xf]
      %v1205 = vld [vmem:[%s1203 + $0x4] sm:$0x3]
      %v1208 = vunpack.c.l.b16 %v1204
      %v1209 = vunpack.c.l.b16 %v1205
      %v1210 = vpack.c.b16 %v1209, %v1208
      %v1212 = vsel %vm280, %v1187, 0
      %v1215 = vsel %vm280, %v1188, 0
      %v1218 = vsel %vm280, %v1189, 0
      %v1221 = vsel %vm280, %v1190, 0
      %v1224 = vsel %vm280, %v1191, 0
      %v1227 = vsel %vm280, %v1192, 0
      %v1230 = vsel %vm280, %v1193, 0
      %v1233 = vsel %vm280, %v1194, 0
      %v1236 = vsel %vm280, %v1195, 0
      %v1239 = vsel %vm280, %v1196, 0
      %v1242 = vsel %vm280, %v1197, 0
      %v1245 = vsel %vm280, %v1198, 0
      %v1248 = vsel %vm280, %v1199, 0
      %v1251 = vsel %vm280, %v1200, 0
      %v1254 = vsel %vm280, %v1201, 0
      %v1257 = vsel %vm280, %v1202, 0
      %v1260 = vsel %vm957, %v1210, 0
      %1262 = vmatprep.subr.bf16.mxu0 0
      %1263 = vmatpush1.bf16.msra.mxu0 %v1260
      %1264 = vmatprep.subr.bf16.mxu0 0
      %1265 = vmatpush1.bf16.msra.mxu0 0
      %1266 = vmatprep.subr.bf16.mxu0 0
      %1267 = vmatpush1.bf16.msra.mxu0 0
      %1268 = vmatprep.subr.bf16.mxu0 0
      %1269 = vmatpush1.bf16.msra.mxu0 0
      %1270 = vmatprep.subr.bf16.mxu0 0
      %1271 = vmatpush1.bf16.msra.mxu0 0
      %1272 = vmatprep.subr.bf16.mxu0 0
      %1273 = vmatpush1.bf16.msra.mxu0 0
      %1274 = vmatprep.subr.bf16.mxu0 0
      %1275 = vmatpush1.bf16.msra.mxu0 0
      %1276 = vmatprep.subr.bf16.mxu0 0
      %1277 = vmatpush1.bf16.msra.mxu0 0
      %1278 = vmatprep.subr.bf16.mxu0 0
      %1279 = vmatpush1.bf16.msra.mxu0 0
      %1280 = vmatprep.subr.bf16.mxu0 0
      %1281 = vmatpush1.bf16.msra.mxu0 0
      %1282 = vmatprep.subr.bf16.mxu0 0
      %1283 = vmatpush1.bf16.msra.mxu0 0
      %1284 = vmatprep.subr.bf16.mxu0 0
      %1285 = vmatpush1.bf16.msra.mxu0 0
      %1286 = vmatprep.subr.bf16.mxu0 0
      %1287 = vmatpush1.bf16.msra.mxu0 0
      %1288 = vmatprep.subr.bf16.mxu0 0
      %1289 = vmatpush1.bf16.msra.mxu0 0
      %1290 = vmatprep.subr.bf16.mxu0 0
      %1291 = vmatpush1.bf16.msra.mxu0 0
      %1292 = vmatprep.subr.bf16.mxu0 0
      %1293 = vmatpush1.bf16.msra.mxu0 0
      %1294 = vmatprep.mubr.bf16.mxu0 0
      %1295 = vmatmul.mubr.bf16.gmra.mrb[0].mxu0 %v1212
      %v1296 = vpop.f32.mrb[0].mxu0
      %v1297 = vadd.f32 0.0, %v1296
      %v1298 = vpop.f32.mrb[0].mxu0
      %v1299 = vpop.f32.mrb[0].mxu0
      %v1300 = vadd.f32 0.0, %v1299
      %v1301 = vpop.f32.mrb[0].mxu0
      %1302 = vmatprep.mubr.bf16.mxu0 0
      %1303 = vmatmul.mubr.bf16.gmra.mrb[0].mxu0 %v1215
      %v1304 = vpop.f32.mrb[0].mxu0
      %v1305 = vadd.f32 0.0, %v1304
      %v1306 = vpop.f32.mrb[0].mxu0
      %v1307 = vpop.f32.mrb[0].mxu0
      %v1308 = vadd.f32 0.0, %v1307
      %v1309 = vpop.f32.mrb[0].mxu0
      %1310 = vmatprep.mubr.bf16.mxu0 0
      %1311 = vmatmul.mubr.bf16.gmra.mrb[0].mxu0 %v1218
      %v1312 = vpop.f32.mrb[0].mxu0
      %v1313 = vadd.f32 0.0, %v1312
      %v1314 = vpop.f32.mrb[0].mxu0
      %v1315 = vpop.f32.mrb[0].mxu0
      %v1316 = vadd.f32 0.0, %v1315
      %v1317 = vpop.f32.mrb[0].mxu0
      %1318 = vmatprep.mubr.bf16.mxu0 0
      %1319 = vmatmul.mubr.bf16.gmra.mrb[0].mxu0 %v1221
      %v1320 = vpop.f32.mrb[0].mxu0
      %v1321 = vadd.f32 0.0, %v1320
      %v1322 = vpop.f32.mrb[0].mxu0
      %v1323 = vpop.f32.mrb[0].mxu0
      %v1324 = vadd.f32 0.0, %v1323
      %v1325 = vpop.f32.mrb[0].mxu0
      %1326 = vmatprep.mubr.bf16.mxu0 0
      %1327 = vmatmul.mubr.bf16.gmra.mrb[0].mxu0 %v1224
      %v1328 = vpop.f32.mrb[0].mxu0
      %v1329 = vadd.f32 0.0, %v1328
      %v1330 = vpop.f32.mrb[0].mxu0
      %v1331 = vpop.f32.mrb[0].mxu0
      %v1332 = vadd.f32 0.0, %v1331
      %v1333 = vpop.f32.mrb[0].mxu0
      %1334 = vmatprep.mubr.bf16.mxu0 0
      %1335 = vmatmul.mubr.bf16.gmra.mrb[0].mxu0 %v1227
      %v1336 = vpop.f32.mrb[0].mxu0
      %v1337 = vadd.f32 0.0, %v1336
      %v1338 = vpop.f32.mrb[0].mxu0
      %v1339 = vpop.f32.mrb[0].mxu0
      %v1340 = vadd.f32 0.0, %v1339
      %v1341 = vpop.f32.mrb[0].mxu0
      %1342 = vmatprep.mubr.bf16.mxu0 0
      %1343 = vmatmul.mubr.bf16.gmra.mrb[0].mxu0 %v1230
      %v1344 = vpop.f32.mrb[0].mxu0
      %v1345 = vadd.f32 0.0, %v1344
      %v1346 = vpop.f32.mrb[0].mxu0
      %v1347 = vpop.f32.mrb[0].mxu0
      %v1348 = vadd.f32 0.0, %v1347
      %v1349 = vpop.f32.mrb[0].mxu0
      %1350 = vmatprep.mubr.bf16.mxu0 0
      %1351 = vmatmul.mubr.bf16.gmra.mrb[0].mxu0 %v1233
      %v1352 = vpop.f32.mrb[0].mxu0
      %v1353 = vadd.f32 0.0, %v1352
      %v1354 = vpop.f32.mrb[0].mxu0
      %v1355 = vpop.f32.mrb[0].mxu0
      %v1356 = vadd.f32 0.0, %v1355
      %v1357 = vpop.f32.mrb[0].mxu0
      %1358 = vmatprep.mubr.bf16.mxu0 0
      %1359 = vmatmul.mubr.bf16.gmra.mrb[0].mxu0 %v1236
      %v1360 = vpop.f32.mrb[0].mxu0
      %v1361 = vadd.f32 0.0, %v1360
      %v1362 = vpop.f32.mrb[0].mxu0
      %v1363 = vpop.f32.mrb[0].mxu0
      %v1364 = vadd.f32 0.0, %v1363
      %v1365 = vpop.f32.mrb[0].mxu0
      %1366 = vmatprep.mubr.bf16.mxu0 0
      %1367 = vmatmul.mubr.bf16.gmra.mrb[0].mxu0 %v1239
      %v1368 = vpop.f32.mrb[0].mxu0
      %v1369 = vadd.f32 0.0, %v1368
      %v1370 = vpop.f32.mrb[0].mxu0
      %v1371 = vpop.f32.mrb[0].mxu0
      %v1372 = vadd.f32 0.0, %v1371
      %v1373 = vpop.f32.mrb[0].mxu0
      %1374 = vmatprep.mubr.bf16.mxu0 0
      %1375 = vmatmul.mubr.bf16.gmra.mrb[0].mxu0 %v1242
      %v1376 = vpop.f32.mrb[0].mxu0
      %v1377 = vadd.f32 0.0, %v1376
      %v1378 = vpop.f32.mrb[0].mxu0
      %v1379 = vpop.f32.mrb[0].mxu0
      %v1380 = vadd.f32 0.0, %v1379
      %v1381 = vpop.f32.mrb[0].mxu0
      %1382 = vmatprep.mubr.bf16.mxu0 0
      %1383 = vmatmul.mubr.bf16.gmra.mrb[0].mxu0 %v1245
      %v1384 = vpop.f32.mrb[0].mxu0
      %v1385 = vadd.f32 0.0, %v1384
      %v1386 = vpop.f32.mrb[0].mxu0
      %v1387 = vpop.f32.mrb[0].mxu0
      %v1388 = vadd.f32 0.0, %v1387
      %v1389 = vpop.f32.mrb[0].mxu0
      %1390 = vmatprep.mubr.bf16.mxu0 0
      %1391 = vmatmul.mubr.bf16.gmra.mrb[0].mxu0 %v1248
      %v1392 = vpop.f32.mrb[0].mxu0
      %v1393 = vadd.f32 0.0, %v1392
      %v1394 = vpop.f32.mrb[0].mxu0
      %v1395 = vpop.f32.mrb[0].mxu0
      %v1396 = vadd.f32 0.0, %v1395
      %v1397 = vpop.f32.mrb[0].mxu0
      %1398 = vmatprep.mubr.bf16.mxu0 0
      %1399 = vmatmul.mubr.bf16.gmra.mrb[0].mxu0 %v1251
      %v1400 = vpop.f32.mrb[0].mxu0
      %v1401 = vadd.f32 0.0, %v1400
      %v1402 = vpop.f32.mrb[0].mxu0
      %v1403 = vpop.f32.mrb[0].mxu0
      %v1404 = vadd.f32 0.0, %v1403
      %v1405 = vpop.f32.mrb[0].mxu0
      %1406 = vmatprep.mubr.bf16.mxu0 0
      %1407 = vmatmul.mubr.bf16.gmra.mrb[0].mxu0 %v1254
      %v1408 = vpop.f32.mrb[0].mxu0
      %v1409 = vadd.f32 0.0, %v1408
      %v1410 = vpop.f32.mrb[0].mxu0
      %v1411 = vpop.f32.mrb[0].mxu0
      %v1412 = vadd.f32 0.0, %v1411
      %v1413 = vpop.f32.mrb[0].mxu0
      %1414 = vmatprep.mubr.bf16.mxu0 0
      %1415 = vmatmul.mubr.bf16.gmra.mrb[0].mxu0 %v1257
      %v1416 = vpop.f32.mrb[0].mxu0
      %v1417 = vadd.f32 0.0, %v1416
      %v1418 = vpop.f32.mrb[0].mxu0
      %v1419 = vpop.f32.mrb[0].mxu0
      %v1420 = vadd.f32 0.0, %v1419
      %v1421 = vpop.f32.mrb[0].mxu0
      %1422 = vdwg.mxu0
      %v1423 = vadd.f32 %v1155, %v1297
      %v1424 = vadd.f32 %v1156, %v1300
      %v1425 = vadd.f32 %v1157, %v1305
      %v1426 = vadd.f32 %v1158, %v1308
      %v1427 = vadd.f32 %v1159, %v1313
      %v1428 = vadd.f32 %v1160, %v1316
      %v1429 = vadd.f32 %v1161, %v1321
      %v1430 = vadd.f32 %v1162, %v1324
      %v1431 = vadd.f32 %v1163, %v1329
      %v1432 = vadd.f32 %v1164, %v1332
      %v1433 = vadd.f32 %v1165, %v1337
      %v1434 = vadd.f32 %v1166, %v1340
      %v1435 = vadd.f32 %v1167, %v1345
      %v1436 = vadd.f32 %v1168, %v1348
      %v1437 = vadd.f32 %v1169, %v1353
      %v1438 = vadd.f32 %v1170, %v1356
      %v1439 = vadd.f32 %v1171, %v1361
      %v1440 = vadd.f32 %v1172, %v1364
      %v1441 = vadd.f32 %v1173, %v1369
      %v1442 = vadd.f32 %v1174, %v1372
      %v1443 = vadd.f32 %v1175, %v1377
      %v1444 = vadd.f32 %v1176, %v1380
      %v1445 = vadd.f32 %v1177, %v1385
      %v1446 = vadd.f32 %v1178, %v1388
      %v1447 = vadd.f32 %v1179, %v1393
      %v1448 = vadd.f32 %v1180, %v1396
      %v1449 = vadd.f32 %v1181, %v1401
      %v1450 = vadd.f32 %v1182, %v1404
      %v1451 = vadd.f32 %v1183, %v1409
      %v1452 = vadd.f32 %v1184, %v1412
      %v1453 = vadd.f32 %v1185, %v1417
      %v1454 = vadd.f32 %v1186, %v1420
      %1455 = vst.msk [vmem:[#allocation3] sm:$0xff] %vm1122, %v1423
      %1456 = vst.msk [vmem:[#allocation3 + $0x8] sm:$0xff] %vm1122, %v1424
      %1457 = vst.msk [vmem:[#allocation3 + $0x10] sm:$0xff] %vm1122, %v1425
      %1458 = vst.msk [vmem:[#allocation3 + $0x18] sm:$0xff] %vm1122, %v1426
      %1459 = vst.msk [vmem:[#allocation3 + $0x20] sm:$0xff] %vm1122, %v1427
      %1460 = vst.msk [vmem:[#allocation3 + $0x28] sm:$0xff] %vm1122, %v1428
      %1461 = vst.msk [vmem:[#allocation3 + $0x30] sm:$0xff] %vm1122, %v1429
      %1462 = vst.msk [vmem:[#allocation3 + $0x38] sm:$0xff] %vm1122, %v1430
      %1463 = vst.msk [vmem:[#allocation3 + $0x40] sm:$0xff] %vm1122, %v1431
      %1464 = vst.msk [vmem:[#allocation3 + $0x48] sm:$0xff] %vm1122, %v1432
      %1465 = vst.msk [vmem:[#allocation3 + $0x50] sm:$0xff] %vm1122, %v1433
      %1466 = vst.msk [vmem:[#allocation3 + $0x58] sm:$0xff] %vm1122, %v1434
      %1467 = vst.msk [vmem:[#allocation3 + $0x60] sm:$0xff] %vm1122, %v1435
      %1468 = vst.msk [vmem:[#allocation3 + $0x68] sm:$0xff] %vm1122, %v1436
      %1469 = vst.msk [vmem:[#allocation3 + $0x70] sm:$0xff] %vm1122, %v1437
      %1470 = vst.msk [vmem:[#allocation3 + $0x78] sm:$0xff] %vm1122, %v1438
      %1471 = vst.msk [vmem:[#allocation3 + $0x80] sm:$0xff] %vm1122, %v1439
      %1472 = vst.msk [vmem:[#allocation3 + $0x88] sm:$0xff] %vm1122, %v1440
      %1473 = vst.msk [vmem:[#allocation3 + $0x90] sm:$0xff] %vm1122, %v1441
      %1474 = vst.msk [vmem:[#allocation3 + $0x98] sm:$0xff] %vm1122, %v1442
      %1475 = vst.msk [vmem:[#allocation3 + $0xa0] sm:$0xff] %vm1122, %v1443
      %1476 = vst.msk [vmem:[#allocation3 + $0xa8] sm:$0xff] %vm1122, %v1444
      %1477 = vst.msk [vmem:[#allocation3 + $0xb0] sm:$0xff] %vm1122, %v1445
      %1478 = vst.msk [vmem:[#allocation3 + $0xb8] sm:$0xff] %vm1122, %v1446
      %1479 = vst.msk [vmem:[#allocation3 + $0xc0] sm:$0xff] %vm1122, %v1447
      %1480 = vst.msk [vmem:[#allocation3 + $0xc8] sm:$0xff] %vm1122, %v1448
      %1481 = vst.msk [vmem:[#allocation3 + $0xd0] sm:$0xff] %vm1122, %v1449
      %1482 = vst.msk [vmem:[#allocation3 + $0xd8] sm:$0xff] %vm1122, %v1450
      %1483 = vst.msk [vmem:[#allocation3 + $0xe0] sm:$0xff] %vm1122, %v1451
      %1484 = vst.msk [vmem:[#allocation3 + $0xe8] sm:$0xff] %vm1122, %v1452
      %1485 = vst.msk [vmem:[#allocation3 + $0xf0] sm:$0xff] %vm1122, %v1453
      %1486 = vst.msk [vmem:[#allocation3 + $0xf8] sm:$0xff] %vm1122, %v1454
      %v1487 = vld [vmem:[#allocation3] sm:$0xff]
      %v1488 = vld [vmem:[#allocation3 + $0x8] sm:$0xff]
      %v1489 = vld [vmem:[#allocation3 + $0x10] sm:$0xff]
      %v1490 = vld [vmem:[#allocation3 + $0x18] sm:$0xff]
      %v1491 = vld [vmem:[#allocation3 + $0x20] sm:$0xff]
      %v1492 = vld [vmem:[#allocation3 + $0x28] sm:$0xff]
      %v1493 = vld [vmem:[#allocation3 + $0x30] sm:$0xff]
      %v1494 = vld [vmem:[#allocation3 + $0x38] sm:$0xff]
      %v1495 = vld [vmem:[#allocation3 + $0x40] sm:$0xff]
      %v1496 = vld [vmem:[#allocation3 + $0x48] sm:$0xff]
      %v1497 = vld [vmem:[#allocation3 + $0x50] sm:$0xff]
      %v1498 = vld [vmem:[#allocation3 + $0x58] sm:$0xff]
      %v1499 = vld [vmem:[#allocation3 + $0x60] sm:$0xff]
      %v1500 = vld [vmem:[#allocation3 + $0x68] sm:$0xff]
      %v1501 = vld [vmem:[#allocation3 + $0x70] sm:$0xff]
      %v1502 = vld [vmem:[#allocation3 + $0x78] sm:$0xff]
      %v1503 = vld [vmem:[#allocation3 + $0x80] sm:$0xff]
      %v1504 = vld [vmem:[#allocation3 + $0x88] sm:$0xff]
      %v1505 = vld [vmem:[#allocation3 + $0x90] sm:$0xff]
      %v1506 = vld [vmem:[#allocation3 + $0x98] sm:$0xff]
      %v1507 = vld [vmem:[#allocation3 + $0xa0] sm:$0xff]
      %v1508 = vld [vmem:[#allocation3 + $0xa8] sm:$0xff]
      %v1509 = vld [vmem:[#allocation3 + $0xb0] sm:$0xff]
      %v1510 = vld [vmem:[#allocation3 + $0xb8] sm:$0xff]
      %v1511 = vld [vmem:[#allocation3 + $0xc0] sm:$0xff]
      %v1512 = vld [vmem:[#allocation3 + $0xc8] sm:$0xff]
      %v1513 = vld [vmem:[#allocation3 + $0xd0] sm:$0xff]
      %v1514 = vld [vmem:[#allocation3 + $0xd8] sm:$0xff]
      %v1515 = vld [vmem:[#allocation3 + $0xe0] sm:$0xff]
      %v1516 = vld [vmem:[#allocation3 + $0xe8] sm:$0xff]
      %v1517 = vld [vmem:[#allocation3 + $0xf0] sm:$0xff]
      %v1518 = vld [vmem:[#allocation3 + $0xf8] sm:$0xff]
      %s1519 = scalar_lea.vmem [#allocation2], 16
      %v1520 = vld [vmem:[%s1519] sm:$0xff]
      %v1521 = vld [vmem:[%s1519 + $0x8] sm:$0xff]
      %v1522 = vld [vmem:[%s1519 + $0x10] sm:$0xff]
      %v1523 = vld [vmem:[%s1519 + $0x18] sm:$0xff]
      %v1524 = vld [vmem:[%s1519 + $0x20] sm:$0xff]
      %v1525 = vld [vmem:[%s1519 + $0x28] sm:$0xff]
      %v1526 = vld [vmem:[%s1519 + $0x30] sm:$0xff]
      %v1527 = vld [vmem:[%s1519 + $0x38] sm:$0xff]
      %v1528 = vld [vmem:[%s1519 + $0x40] sm:$0xff]
      %v1529 = vld [vmem:[%s1519 + $0x48] sm:$0xff]
      %v1530 = vld [vmem:[%s1519 + $0x50] sm:$0xff]
      %v1531 = vld [vmem:[%s1519 + $0x58] sm:$0xff]
      %v1532 = vld [vmem:[%s1519 + $0x60] sm:$0xff]
      %v1533 = vld [vmem:[%s1519 + $0x68] sm:$0xff]
      %v1534 = vld [vmem:[%s1519 + $0x70] sm:$0xff]
      %v1535 = vld [vmem:[%s1519 + $0x78] sm:$0xff]
      %s1536 = scalar_lea.vmem %s1, 16
      %v1537 = vld [vmem:[%s1536] sm:$0xf]
      %v1538 = vld [vmem:[%s1536 + $0x4] sm:$0x3]
      %v1541 = vunpack.c.l.b16 %v1537
      %v1542 = vunpack.c.l.b16 %v1538
      %v1543 = vpack.c.b16 %v1542, %v1541
      %v1545 = vsel %vm280, %v1520, 0
      %v1548 = vsel %vm280, %v1521, 0
      %v1551 = vsel %vm280, %v1522, 0
      %v1554 = vsel %vm280, %v1523, 0
      %v1557 = vsel %vm280, %v1524, 0
      %v1560 = vsel %vm280, %v1525, 0
      %v1563 = vsel %vm280, %v1526, 0
      %v1566 = vsel %vm280, %v1527, 0
      %v1569 = vsel %vm280, %v1528, 0
      %v1572 = vsel %vm280, %v1529, 0
      %v1575 = vsel %vm280, %v1530, 0
      %v1578 = vsel %vm280, %v1531, 0
      %v1581 = vsel %vm280, %v1532, 0
      %v1584 = vsel %vm280, %v1533, 0
      %v1587 = vsel %vm280, %v1534, 0
      %v1590 = vsel %vm280, %v1535, 0
      %v1593 = vsel %vm957, %v1543, 0
      %1595 = vmatprep.subr.bf16.mxu0 0
      %1596 = vmatpush1.bf16.msra.mxu0 %v1593
      %1597 = vmatprep.subr.bf16.mxu0 0
      %1598 = vmatpush1.bf16.msra.mxu0 0
      %1599 = vmatprep.subr.bf16.mxu0 0
      %1600 = vmatpush1.bf16.msra.mxu0 0
      %1601 = vmatprep.subr.bf16.mxu0 0
      %1602 = vmatpush1.bf16.msra.mxu0 0
      %1603 = vmatprep.subr.bf16.mxu0 0
      %1604 = vmatpush1.bf16.msra.mxu0 0
      %1605 = vmatprep.subr.bf16.mxu0 0
      %1606 = vmatpush1.bf16.msra.mxu0 0
      %1607 = vmatprep.subr.bf16.mxu0 0
      %1608 = vmatpush1.bf16.msra.mxu0 0
      %1609 = vmatprep.subr.bf16.mxu0 0
      %1610 = vmatpush1.bf16.msra.mxu0 0
      %1611 = vmatprep.subr.bf16.mxu0 0
      %1612 = vmatpush1.bf16.msra.mxu0 0
      %1613 = vmatprep.subr.bf16.mxu0 0
      %1614 = vmatpush1.bf16.msra.mxu0 0
      %1615 = vmatprep.subr.bf16.mxu0 0
      %1616 = vmatpush1.bf16.msra.mxu0 0
      %1617 = vmatprep.subr.bf16.mxu0 0
      %1618 = vmatpush1.bf16.msra.mxu0 0
      %1619 = vmatprep.subr.bf16.mxu0 0
      %1620 = vmatpush1.bf16.msra.mxu0 0
      %1621 = vmatprep.subr.bf16.mxu0 0
      %1622 = vmatpush1.bf16.msra.mxu0 0
      %1623 = vmatprep.subr.bf16.mxu0 0
      %1624 = vmatpush1.bf16.msra.mxu0 0
      %1625 = vmatprep.subr.bf16.mxu0 0
      %1626 = vmatpush1.bf16.msra.mxu0 0
      %1627 = vmatprep.mubr.bf16.mxu0 0
      %1628 = vmatmul.mubr.bf16.gmra.mrb[0].mxu0 %v1545
      %v1629 = vpop.f32.mrb[0].mxu0
      %v1630 = vadd.f32 0.0, %v1629
      %v1631 = vpop.f32.mrb[0].mxu0
      %v1632 = vpop.f32.mrb[0].mxu0
      %v1633 = vadd.f32 0.0, %v1632
      %v1634 = vpop.f32.mrb[0].mxu0
      %1635 = vmatprep.mubr.bf16.mxu0 0
      %1636 = vmatmul.mubr.bf16.gmra.mrb[0].mxu0 %v1548
      %v1637 = vpop.f32.mrb[0].mxu0
      %v1638 = vadd.f32 0.0, %v1637
      %v1639 = vpop.f32.mrb[0].mxu0
      %v1640 = vpop.f32.mrb[0].mxu0
      %v1641 = vadd.f32 0.0, %v1640
      %v1642 = vpop.f32.mrb[0].mxu0
      %1643 = vmatprep.mubr.bf16.mxu0 0
      %1644 = vmatmul.mubr.bf16.gmra.mrb[0].mxu0 %v1551
      %v1645 = vpop.f32.mrb[0].mxu0
      %v1646 = vadd.f32 0.0, %v1645
      %v1647 = vpop.f32.mrb[0].mxu0
      %v1648 = vpop.f32.mrb[0].mxu0
      %v1649 = vadd.f32 0.0, %v1648
      %v1650 = vpop.f32.mrb[0].mxu0
      %1651 = vmatprep.mubr.bf16.mxu0 0
      %1652 = vmatmul.mubr.bf16.gmra.mrb[0].mxu0 %v1554
      %v1653 = vpop.f32.mrb[0].mxu0
      %v1654 = vadd.f32 0.0, %v1653
      %v1655 = vpop.f32.mrb[0].mxu0
      %v1656 = vpop.f32.mrb[0].mxu0
      %v1657 = vadd.f32 0.0, %v1656
      %v1658 = vpop.f32.mrb[0].mxu0
      %1659 = vmatprep.mubr.bf16.mxu0 0
      %1660 = vmatmul.mubr.bf16.gmra.mrb[0].mxu0 %v1557
      %v1661 = vpop.f32.mrb[0].mxu0
      %v1662 = vadd.f32 0.0, %v1661
      %v1663 = vpop.f32.mrb[0].mxu0
      %v1664 = vpop.f32.mrb[0].mxu0
      %v1665 = vadd.f32 0.0, %v1664
      %v1666 = vpop.f32.mrb[0].mxu0
      %1667 = vmatprep.mubr.bf16.mxu0 0
      %1668 = vmatmul.mubr.bf16.gmra.mrb[0].mxu0 %v1560
      %v1669 = vpop.f32.mrb[0].mxu0
      %v1670 = vadd.f32 0.0, %v1669
      %v1671 = vpop.f32.mrb[0].mxu0
      %v1672 = vpop.f32.mrb[0].mxu0
      %v1673 = vadd.f32 0.0, %v1672
      %v1674 = vpop.f32.mrb[0].mxu0
      %1675 = vmatprep.mubr.bf16.mxu0 0
      %1676 = vmatmul.mubr.bf16.gmra.mrb[0].mxu0 %v1563
      %v1677 = vpop.f32.mrb[0].mxu0
      %v1678 = vadd.f32 0.0, %v1677
      %v1679 = vpop.f32.mrb[0].mxu0
      %v1680 = vpop.f32.mrb[0].mxu0
      %v1681 = vadd.f32 0.0, %v1680
      %v1682 = vpop.f32.mrb[0].mxu0
      %1683 = vmatprep.mubr.bf16.mxu0 0
      %1684 = vmatmul.mubr.bf16.gmra.mrb[0].mxu0 %v1566
      %v1685 = vpop.f32.mrb[0].mxu0
      %v1686 = vadd.f32 0.0, %v1685
      %v1687 = vpop.f32.mrb[0].mxu0
      %v1688 = vpop.f32.mrb[0].mxu0
      %v1689 = vadd.f32 0.0, %v1688
      %v1690 = vpop.f32.mrb[0].mxu0
      %1691 = vmatprep.mubr.bf16.mxu0 0
      %1692 = vmatmul.mubr.bf16.gmra.mrb[0].mxu0 %v1569
      %v1693 = vpop.f32.mrb[0].mxu0
      %v1694 = vadd.f32 0.0, %v1693
      %v1695 = vpop.f32.mrb[0].mxu0
      %v1696 = vpop.f32.mrb[0].mxu0
      %v1697 = vadd.f32 0.0, %v1696
      %v1698 = vpop.f32.mrb[0].mxu0
      %1699 = vmatprep.mubr.bf16.mxu0 0
      %1700 = vmatmul.mubr.bf16.gmra.mrb[0].mxu0 %v1572
      %v1701 = vpop.f32.mrb[0].mxu0
      %v1702 = vadd.f32 0.0, %v1701
      %v1703 = vpop.f32.mrb[0].mxu0
      %v1704 = vpop.f32.mrb[0].mxu0
      %v1705 = vadd.f32 0.0, %v1704
      %v1706 = vpop.f32.mrb[0].mxu0
      %1707 = vmatprep.mubr.bf16.mxu0 0
      %1708 = vmatmul.mubr.bf16.gmra.mrb[0].mxu0 %v1575
      %v1709 = vpop.f32.mrb[0].mxu0
      %v1710 = vadd.f32 0.0, %v1709
      %v1711 = vpop.f32.mrb[0].mxu0
      %v1712 = vpop.f32.mrb[0].mxu0
      %v1713 = vadd.f32 0.0, %v1712
      %v1714 = vpop.f32.mrb[0].mxu0
      %1715 = vmatprep.mubr.bf16.mxu0 0
      %1716 = vmatmul.mubr.bf16.gmra.mrb[0].mxu0 %v1578
      %v1717 = vpop.f32.mrb[0].mxu0
      %v1718 = vadd.f32 0.0, %v1717
      %v1719 = vpop.f32.mrb[0].mxu0
      %v1720 = vpop.f32.mrb[0].mxu0
      %v1721 = vadd.f32 0.0, %v1720
      %v1722 = vpop.f32.mrb[0].mxu0
      %1723 = vmatprep.mubr.bf16.mxu0 0
      %1724 = vmatmul.mubr.bf16.gmra.mrb[0].mxu0 %v1581
      %v1725 = vpop.f32.mrb[0].mxu0
      %v1726 = vadd.f32 0.0, %v1725
      %v1727 = vpop.f32.mrb[0].mxu0
      %v1728 = vpop.f32.mrb[0].mxu0
      %v1729 = vadd.f32 0.0, %v1728
      %v1730 = vpop.f32.mrb[0].mxu0
      %1731 = vmatprep.mubr.bf16.mxu0 0
      %1732 = vmatmul.mubr.bf16.gmra.mrb[0].mxu0 %v1584
      %v1733 = vpop.f32.mrb[0].mxu0
      %v1734 = vadd.f32 0.0, %v1733
      %v1735 = vpop.f32.mrb[0].mxu0
      %v1736 = vpop.f32.mrb[0].mxu0
      %v1737 = vadd.f32 0.0, %v1736
      %v1738 = vpop.f32.mrb[0].mxu0
      %1739 = vmatprep.mubr.bf16.mxu0 0
      %1740 = vmatmul.mubr.bf16.gmra.mrb[0].mxu0 %v1587
      %v1741 = vpop.f32.mrb[0].mxu0
      %v1742 = vadd.f32 0.0, %v1741
      %v1743 = vpop.f32.mrb[0].mxu0
      %v1744 = vpop.f32.mrb[0].mxu0
      %v1745 = vadd.f32 0.0, %v1744
      %v1746 = vpop.f32.mrb[0].mxu0
      %1747 = vmatprep.mubr.bf16.mxu0 0
      %1748 = vmatmul.mubr.bf16.gmra.mrb[0].mxu0 %v1590
      %v1749 = vpop.f32.mrb[0].mxu0
      %v1750 = vadd.f32 0.0, %v1749
      %v1751 = vpop.f32.mrb[0].mxu0
      %v1752 = vpop.f32.mrb[0].mxu0
      %v1753 = vadd.f32 0.0, %v1752
      %v1754 = vpop.f32.mrb[0].mxu0
      %1755 = vdwg.mxu0
      %v1756 = vadd.f32 %v1487, %v1630
      %v1757 = vadd.f32 %v1488, %v1633
      %v1758 = vadd.f32 %v1489, %v1638
      %v1759 = vadd.f32 %v1490, %v1641
      %v1760 = vadd.f32 %v1491, %v1646
      %v1761 = vadd.f32 %v1492, %v1649
      %v1762 = vadd.f32 %v1493, %v1654
      %v1763 = vadd.f32 %v1494, %v1657
      %v1764 = vadd.f32 %v1495, %v1662
      %v1765 = vadd.f32 %v1496, %v1665
      %v1766 = vadd.f32 %v1497, %v1670
      %v1767 = vadd.f32 %v1498, %v1673
      %v1768 = vadd.f32 %v1499, %v1678
      %v1769 = vadd.f32 %v1500, %v1681
      %v1770 = vadd.f32 %v1501, %v1686
      %v1771 = vadd.f32 %v1502, %v1689
      %v1772 = vadd.f32 %v1503, %v1694
      %v1773 = vadd.f32 %v1504, %v1697
      %v1774 = vadd.f32 %v1505, %v1702
      %v1775 = vadd.f32 %v1506, %v1705
      %v1776 = vadd.f32 %v1507, %v1710
      %v1777 = vadd.f32 %v1508, %v1713
      %v1778 = vadd.f32 %v1509, %v1718
      %v1779 = vadd.f32 %v1510, %v1721
      %v1780 = vadd.f32 %v1511, %v1726
      %v1781 = vadd.f32 %v1512, %v1729
      %v1782 = vadd.f32 %v1513, %v1734
      %v1783 = vadd.f32 %v1514, %v1737
      %v1784 = vadd.f32 %v1515, %v1742
      %v1785 = vadd.f32 %v1516, %v1745
      %v1786 = vadd.f32 %v1517, %v1750
      %v1787 = vadd.f32 %v1518, %v1753
      %1788 = vst.msk [vmem:[#allocation3] sm:$0xff] %vm1122, %v1756
      %1789 = vst.msk [vmem:[#allocation3 + $0x8] sm:$0xff] %vm1122, %v1757
      %1790 = vst.msk [vmem:[#allocation3 + $0x10] sm:$0xff] %vm1122, %v1758
      %1791 = vst.msk [vmem:[#allocation3 + $0x18] sm:$0xff] %vm1122, %v1759
      %1792 = vst.msk [vmem:[#allocation3 + $0x20] sm:$0xff] %vm1122, %v1760
      %1793 = vst.msk [vmem:[#allocation3 + $0x28] sm:$0xff] %vm1122, %v1761
      %1794 = vst.msk [vmem:[#allocation3 + $0x30] sm:$0xff] %vm1122, %v1762
      %1795 = vst.msk [vmem:[#allocation3 + $0x38] sm:$0xff] %vm1122, %v1763
      %1796 = vst.msk [vmem:[#allocation3 + $0x40] sm:$0xff] %vm1122, %v1764
      %1797 = vst.msk [vmem:[#allocation3 + $0x48] sm:$0xff] %vm1122, %v1765
      %1798 = vst.msk [vmem:[#allocation3 + $0x50] sm:$0xff] %vm1122, %v1766
      %1799 = vst.msk [vmem:[#allocation3 + $0x58] sm:$0xff] %vm1122, %v1767
      %1800 = vst.msk [vmem:[#allocation3 + $0x60] sm:$0xff] %vm1122, %v1768
      %1801 = vst.msk [vmem:[#allocation3 + $0x68] sm:$0xff] %vm1122, %v1769
      %1802 = vst.msk [vmem:[#allocation3 + $0x70] sm:$0xff] %vm1122, %v1770
      %1803 = vst.msk [vmem:[#allocation3 + $0x78] sm:$0xff] %vm1122, %v1771
      %1804 = vst.msk [vmem:[#allocation3 + $0x80] sm:$0xff] %vm1122, %v1772
      %1805 = vst.msk [vmem:[#allocation3 + $0x88] sm:$0xff] %vm1122, %v1773
      %1806 = vst.msk [vmem:[#allocation3 + $0x90] sm:$0xff] %vm1122, %v1774
      %1807 = vst.msk [vmem:[#allocation3 + $0x98] sm:$0xff] %vm1122, %v1775
      %1808 = vst.msk [vmem:[#allocation3 + $0xa0] sm:$0xff] %vm1122, %v1776
      %1809 = vst.msk [vmem:[#allocation3 + $0xa8] sm:$0xff] %vm1122, %v1777
      %1810 = vst.msk [vmem:[#allocation3 + $0xb0] sm:$0xff] %vm1122, %v1778
      %1811 = vst.msk [vmem:[#allocation3 + $0xb8] sm:$0xff] %vm1122, %v1779
      %1812 = vst.msk [vmem:[#allocation3 + $0xc0] sm:$0xff] %vm1122, %v1780
      %1813 = vst.msk [vmem:[#allocation3 + $0xc8] sm:$0xff] %vm1122, %v1781
      %1814 = vst.msk [vmem:[#allocation3 + $0xd0] sm:$0xff] %vm1122, %v1782
      %1815 = vst.msk [vmem:[#allocation3 + $0xd8] sm:$0xff] %vm1122, %v1783
      %1816 = vst.msk [vmem:[#allocation3 + $0xe0] sm:$0xff] %vm1122, %v1784
      %1817 = vst.msk [vmem:[#allocation3 + $0xe8] sm:$0xff] %vm1122, %v1785
      %1818 = vst.msk [vmem:[#allocation3 + $0xf0] sm:$0xff] %vm1122, %v1786
      %1819 = vst.msk [vmem:[#allocation3 + $0xf8] sm:$0xff] %vm1122, %v1787
      %v1820 = vld [vmem:[#allocation3] sm:$0xff]
      %v1821 = vld [vmem:[#allocation3 + $0x8] sm:$0xff]
      %v1822 = vld [vmem:[#allocation3 + $0x10] sm:$0xff]
      %v1823 = vld [vmem:[#allocation3 + $0x18] sm:$0xff]
      %v1824 = vld [vmem:[#allocation3 + $0x20] sm:$0xff]
      %v1825 = vld [vmem:[#allocation3 + $0x28] sm:$0xff]
      %v1826 = vld [vmem:[#allocation3 + $0x30] sm:$0xff]
      %v1827 = vld [vmem:[#allocation3 + $0x38] sm:$0xff]
      %v1828 = vld [vmem:[#allocation3 + $0x40] sm:$0xff]
      %v1829 = vld [vmem:[#allocation3 + $0x48] sm:$0xff]
      %v1830 = vld [vmem:[#allocation3 + $0x50] sm:$0xff]
      %v1831 = vld [vmem:[#allocation3 + $0x58] sm:$0xff]
      %v1832 = vld [vmem:[#allocation3 + $0x60] sm:$0xff]
      %v1833 = vld [vmem:[#allocation3 + $0x68] sm:$0xff]
      %v1834 = vld [vmem:[#allocation3 + $0x70] sm:$0xff]
      %v1835 = vld [vmem:[#allocation3 + $0x78] sm:$0xff]
      %v1836 = vld [vmem:[#allocation3 + $0x80] sm:$0xff]
      %v1837 = vld [vmem:[#allocation3 + $0x88] sm:$0xff]
      %v1838 = vld [vmem:[#allocation3 + $0x90] sm:$0xff]
      %v1839 = vld [vmem:[#allocation3 + $0x98] sm:$0xff]
      %v1840 = vld [vmem:[#allocation3 + $0xa0] sm:$0xff]
      %v1841 = vld [vmem:[#allocation3 + $0xa8] sm:$0xff]
      %v1842 = vld [vmem:[#allocation3 + $0xb0] sm:$0xff]
      %v1843 = vld [vmem:[#allocation3 + $0xb8] sm:$0xff]
      %v1844 = vld [vmem:[#allocation3 + $0xc0] sm:$0xff]
      %v1845 = vld [vmem:[#allocation3 + $0xc8] sm:$0xff]
      %v1846 = vld [vmem:[#allocation3 + $0xd0] sm:$0xff]
      %v1847 = vld [vmem:[#allocation3 + $0xd8] sm:$0xff]
      %v1848 = vld [vmem:[#allocation3 + $0xe0] sm:$0xff]
      %v1849 = vld [vmem:[#allocation3 + $0xe8] sm:$0xff]
      %v1850 = vld [vmem:[#allocation3 + $0xf0] sm:$0xff]
      %v1851 = vld [vmem:[#allocation3 + $0xf8] sm:$0xff]
      %v1852 = vld [vmem:[%s3] sm:$0x1]
      %v1854 = vlaneseq
      %v1855 = vshrl.u32 %v1854, 7
      %v1856 = vsub.s32 0, %v1855
      %v1857 = vrot.slane %v1852, %v1856
      %v1859 = vmul.f32 %v1820, %v1857
      %v1860 = vmul.f32 %v1821, %v1857
      %v1861 = vmul.f32 %v1822, %v1857
      %v1862 = vmul.f32 %v1823, %v1857
      %v1863 = vmul.f32 %v1824, %v1857
      %v1864 = vmul.f32 %v1825, %v1857
      %v1865 = vmul.f32 %v1826, %v1857
      %v1866 = vmul.f32 %v1827, %v1857
      %v1867 = vmul.f32 %v1828, %v1857
      %v1868 = vmul.f32 %v1829, %v1857
      %v1869 = vmul.f32 %v1830, %v1857
      %v1870 = vmul.f32 %v1831, %v1857
      %v1871 = vmul.f32 %v1832, %v1857
      %v1872 = vmul.f32 %v1833, %v1857
      %v1873 = vmul.f32 %v1834, %v1857
      %v1874 = vmul.f32 %v1835, %v1857
      %v1875 = vmul.f32 %v1836, %v1857
      %v1876 = vmul.f32 %v1837, %v1857
      %v1877 = vmul.f32 %v1838, %v1857
      %v1878 = vmul.f32 %v1839, %v1857
      %v1879 = vmul.f32 %v1840, %v1857
      %v1880 = vmul.f32 %v1841, %v1857
      %v1881 = vmul.f32 %v1842, %v1857
      %v1882 = vmul.f32 %v1843, %v1857
      %v1883 = vmul.f32 %v1844, %v1857
      %v1884 = vmul.f32 %v1845, %v1857
      %v1885 = vmul.f32 %v1846, %v1857
      %v1886 = vmul.f32 %v1847, %v1857
      %v1887 = vmul.f32 %v1848, %v1857
      %v1888 = vmul.f32 %v1849, %v1857
      %v1889 = vmul.f32 %v1850, %v1857
      %v1890 = vmul.f32 %v1851, %v1857
      %v1891 = vld [vmem:[%s4] sm:$0x1]
      %v1893 = vlaneseq
      %v1894 = vshrl.u32 %v1893, 7
      %v1895 = vsub.s32 0, %v1894
      %v1896 = vrot.slane %v1891, %v1895
      %v1898 = vadd.f32 %v1859, %v1896
      %v1899 = vadd.f32 %v1860, %v1896
      %v1900 = vadd.f32 %v1861, %v1896
      %v1901 = vadd.f32 %v1862, %v1896
      %v1902 = vadd.f32 %v1863, %v1896
      %v1903 = vadd.f32 %v1864, %v1896
      %v1904 = vadd.f32 %v1865, %v1896
      %v1905 = vadd.f32 %v1866, %v1896
      %v1906 = vadd.f32 %v1867, %v1896
      %v1907 = vadd.f32 %v1868, %v1896
      %v1908 = vadd.f32 %v1869, %v1896
      %v1909 = vadd.f32 %v1870, %v1896
      %v1910 = vadd.f32 %v1871, %v1896
      %v1911 = vadd.f32 %v1872, %v1896
      %v1912 = vadd.f32 %v1873, %v1896
      %v1913 = vadd.f32 %v1874, %v1896
      %v1914 = vadd.f32 %v1875, %v1896
      %v1915 = vadd.f32 %v1876, %v1896
      %v1916 = vadd.f32 %v1877, %v1896
      %v1917 = vadd.f32 %v1878, %v1896
      %v1918 = vadd.f32 %v1879, %v1896
      %v1919 = vadd.f32 %v1880, %v1896
      %v1920 = vadd.f32 %v1881, %v1896
      %v1921 = vadd.f32 %v1882, %v1896
      %v1922 = vadd.f32 %v1883, %v1896
      %v1923 = vadd.f32 %v1884, %v1896
      %v1924 = vadd.f32 %v1885, %v1896
      %v1925 = vadd.f32 %v1886, %v1896
      %v1926 = vadd.f32 %v1887, %v1896
      %v1927 = vadd.f32 %v1888, %v1896
      %v1928 = vadd.f32 %v1889, %v1896
      %v1929 = vadd.f32 %v1890, %v1896
      %v1930 = vxor.u32 %v1898, 2147483648
      %v1931 = vxor.u32 %v1899, 2147483648
      %v1932 = vxor.u32 %v1900, 2147483648
      %v1933 = vxor.u32 %v1901, 2147483648
      %v1934 = vxor.u32 %v1902, 2147483648
      %v1935 = vxor.u32 %v1903, 2147483648
      %v1936 = vxor.u32 %v1904, 2147483648
      %v1937 = vxor.u32 %v1905, 2147483648
      %v1938 = vxor.u32 %v1906, 2147483648
      %v1939 = vxor.u32 %v1907, 2147483648
      %v1940 = vxor.u32 %v1908, 2147483648
      %v1941 = vxor.u32 %v1909, 2147483648
      %v1942 = vxor.u32 %v1910, 2147483648
      %v1943 = vxor.u32 %v1911, 2147483648
      %v1944 = vxor.u32 %v1912, 2147483648
      %v1945 = vxor.u32 %v1913, 2147483648
      %v1946 = vxor.u32 %v1914, 2147483648
      %v1947 = vxor.u32 %v1915, 2147483648
      %v1948 = vxor.u32 %v1916, 2147483648
      %v1949 = vxor.u32 %v1917, 2147483648
      %v1950 = vxor.u32 %v1918, 2147483648
      %v1951 = vxor.u32 %v1919, 2147483648
      %v1952 = vxor.u32 %v1920, 2147483648
      %v1953 = vxor.u32 %v1921, 2147483648
      %v1954 = vxor.u32 %v1922, 2147483648
      %v1955 = vxor.u32 %v1923, 2147483648
      %v1956 = vxor.u32 %v1924, 2147483648
      %v1957 = vxor.u32 %v1925, 2147483648
      %v1958 = vxor.u32 %v1926, 2147483648
      %v1959 = vxor.u32 %v1927, 2147483648
      %v1960 = vxor.u32 %v1928, 2147483648
      %v1961 = vxor.u32 %v1929, 2147483648
      %v1962 = vmul.f32 %v1930, 1.442695
      %v1963 = vpow.pop %v1962
      %v1964 = vmul.f32 %v1931, 1.442695
      %v1965 = vpow.pop %v1964
      %v1966 = vmul.f32 %v1932, 1.442695
      %v1967 = vpow.pop %v1966
      %v1968 = vmul.f32 %v1933, 1.442695
      %v1969 = vpow.pop %v1968
      %v1970 = vmul.f32 %v1934, 1.442695
      %v1971 = vpow.pop %v1970
      %v1972 = vmul.f32 %v1935, 1.442695
      %v1973 = vpow.pop %v1972
      %v1974 = vmul.f32 %v1936, 1.442695
      %v1975 = vpow.pop %v1974
      %v1976 = vmul.f32 %v1937, 1.442695
      %v1977 = vpow.pop %v1976
      %v1978 = vmul.f32 %v1938, 1.442695
      %v1979 = vpow.pop %v1978
      %v1980 = vmul.f32 %v1939, 1.442695
      %v1981 = vpow.pop %v1980
      %v1982 = vmul.f32 %v1940, 1.442695
      %v1983 = vpow.pop %v1982
      %v1984 = vmul.f32 %v1941, 1.442695
      %v1985 = vpow.pop %v1984
      %v1986 = vmul.f32 %v1942, 1.442695
      %v1987 = vpow.pop %v1986
      %v1988 = vmul.f32 %v1943, 1.442695
      %v1989 = vpow.pop %v1988
      %v1990 = vmul.f32 %v1944, 1.442695
      %v1991 = vpow.pop %v1990
      %v1992 = vmul.f32 %v1945, 1.442695
      %v1993 = vpow.pop %v1992
      %v1994 = vmul.f32 %v1946, 1.442695
      %v1995 = vpow.pop %v1994
      %v1996 = vmul.f32 %v1947, 1.442695
      %v1997 = vpow.pop %v1996
      %v1998 = vmul.f32 %v1948, 1.442695
      %v1999 = vpow.pop %v1998
      %v2000 = vmul.f32 %v1949, 1.442695
      %v2001 = vpow.pop %v2000
      %v2002 = vmul.f32 %v1950, 1.442695
      %v2003 = vpow.pop %v2002
      %v2004 = vmul.f32 %v1951, 1.442695
      %v2005 = vpow.pop %v2004
      %v2006 = vmul.f32 %v1952, 1.442695
      %v2007 = vpow.pop %v2006
      %v2008 = vmul.f32 %v1953, 1.442695
      %v2009 = vpow.pop %v2008
      %v2010 = vmul.f32 %v1954, 1.442695
      %v2011 = vpow.pop %v2010
      %v2012 = vmul.f32 %v1955, 1.442695
      %v2013 = vpow.pop %v2012
      %v2014 = vmul.f32 %v1956, 1.442695
      %v2015 = vpow.pop %v2014
      %v2016 = vmul.f32 %v1957, 1.442695
      %v2017 = vpow.pop %v2016
      %v2018 = vmul.f32 %v1958, 1.442695
      %v2019 = vpow.pop %v2018
      %v2020 = vmul.f32 %v1959, 1.442695
      %v2021 = vpow.pop %v2020
      %v2022 = vmul.f32 %v1960, 1.442695
      %v2023 = vpow.pop %v2022
      %v2024 = vmul.f32 %v1961, 1.442695
      %v2025 = vpow.pop %v2024
      %v2026 = vadd.f32 %v1963, 1.0
      %v2027 = vadd.f32 %v1965, 1.0
      %v2028 = vadd.f32 %v1967, 1.0
      %v2029 = vadd.f32 %v1969, 1.0
      %v2030 = vadd.f32 %v1971, 1.0
      %v2031 = vadd.f32 %v1973, 1.0
      %v2032 = vadd.f32 %v1975, 1.0
      %v2033 = vadd.f32 %v1977, 1.0
      %v2034 = vadd.f32 %v1979, 1.0
      %v2035 = vadd.f32 %v1981, 1.0
      %v2036 = vadd.f32 %v1983, 1.0
      %v2037 = vadd.f32 %v1985, 1.0
      %v2038 = vadd.f32 %v1987, 1.0
      %v2039 = vadd.f32 %v1989, 1.0
      %v2040 = vadd.f32 %v1991, 1.0
      %v2041 = vadd.f32 %v1993, 1.0
      %v2042 = vadd.f32 %v1995, 1.0
      %v2043 = vadd.f32 %v1997, 1.0
      %v2044 = vadd.f32 %v1999, 1.0
      %v2045 = vadd.f32 %v2001, 1.0
      %v2046 = vadd.f32 %v2003, 1.0
      %v2047 = vadd.f32 %v2005, 1.0
      %v2048 = vadd.f32 %v2007, 1.0
      %v2049 = vadd.f32 %v2009, 1.0
      %v2050 = vadd.f32 %v2011, 1.0
      %v2051 = vadd.f32 %v2013, 1.0
      %v2052 = vadd.f32 %v2015, 1.0
      %v2053 = vadd.f32 %v2017, 1.0
      %v2054 = vadd.f32 %v2019, 1.0
      %v2055 = vadd.f32 %v2021, 1.0
      %v2056 = vadd.f32 %v2023, 1.0
      %v2057 = vadd.f32 %v2025, 1.0
      %v2058 = vrcp.pop %v2026
      %v2059 = vmul.f32 1.0, %v2058
      %v2060 = vrcp.pop %v2027
      %v2061 = vmul.f32 1.0, %v2060
      %v2062 = vrcp.pop %v2028
      %v2063 = vmul.f32 1.0, %v2062
      %v2064 = vrcp.pop %v2029
      %v2065 = vmul.f32 1.0, %v2064
      %v2066 = vrcp.pop %v2030
      %v2067 = vmul.f32 1.0, %v2066
      %v2068 = vrcp.pop %v2031
      %v2069 = vmul.f32 1.0, %v2068
      %v2070 = vrcp.pop %v2032
      %v2071 = vmul.f32 1.0, %v2070
      %v2072 = vrcp.pop %v2033
      %v2073 = vmul.f32 1.0, %v2072
      %v2074 = vrcp.pop %v2034
      %v2075 = vmul.f32 1.0, %v2074
      %v2076 = vrcp.pop %v2035
      %v2077 = vmul.f32 1.0, %v2076
      %v2078 = vrcp.pop %v2036
      %v2079 = vmul.f32 1.0, %v2078
      %v2080 = vrcp.pop %v2037
      %v2081 = vmul.f32 1.0, %v2080
      %v2082 = vrcp.pop %v2038
      %v2083 = vmul.f32 1.0, %v2082
      %v2084 = vrcp.pop %v2039
      %v2085 = vmul.f32 1.0, %v2084
      %v2086 = vrcp.pop %v2040
      %v2087 = vmul.f32 1.0, %v2086
      %v2088 = vrcp.pop %v2041
      %v2089 = vmul.f32 1.0, %v2088
      %v2090 = vrcp.pop %v2042
      %v2091 = vmul.f32 1.0, %v2090
      %v2092 = vrcp.pop %v2043
      %v2093 = vmul.f32 1.0, %v2092
      %v2094 = vrcp.pop %v2044
      %v2095 = vmul.f32 1.0, %v2094
      %v2096 = vrcp.pop %v2045
      %v2097 = vmul.f32 1.0, %v2096
      %v2098 = vrcp.pop %v2046
      %v2099 = vmul.f32 1.0, %v2098
      %v2100 = vrcp.pop %v2047
      %v2101 = vmul.f32 1.0, %v2100
      %v2102 = vrcp.pop %v2048
      %v2103 = vmul.f32 1.0, %v2102
      %v2104 = vrcp.pop %v2049
      %v2105 = vmul.f32 1.0, %v2104
      %v2106 = vrcp.pop %v2050
      %v2107 = vmul.f32 1.0, %v2106
      %v2108 = vrcp.pop %v2051
      %v2109 = vmul.f32 1.0, %v2108
      %v2110 = vrcp.pop %v2052
      %v2111 = vmul.f32 1.0, %v2110
      %v2112 = vrcp.pop %v2053
      %v2113 = vmul.f32 1.0, %v2112
      %v2114 = vrcp.pop %v2054
      %v2115 = vmul.f32 1.0, %v2114
      %v2116 = vrcp.pop %v2055
      %v2117 = vmul.f32 1.0, %v2116
      %v2118 = vrcp.pop %v2056
      %v2119 = vmul.f32 1.0, %v2118
      %v2120 = vrcp.pop %v2057
      %v2121 = vmul.f32 1.0, %v2120
      %v2122 = vmul.f32 %v1898, %v2059
      %v2123 = vmul.f32 %v1899, %v2061
      %v2124 = vmul.f32 %v1900, %v2063
      %v2125 = vmul.f32 %v1901, %v2065
      %v2126 = vmul.f32 %v1902, %v2067
      %v2127 = vmul.f32 %v1903, %v2069
      %v2128 = vmul.f32 %v1904, %v2071
      %v2129 = vmul.f32 %v1905, %v2073
      %v2130 = vmul.f32 %v1906, %v2075
      %v2131 = vmul.f32 %v1907, %v2077
      %v2132 = vmul.f32 %v1908, %v2079
      %v2133 = vmul.f32 %v1909, %v2081
      %v2134 = vmul.f32 %v1910, %v2083
      %v2135 = vmul.f32 %v1911, %v2085
      %v2136 = vmul.f32 %v1912, %v2087
      %v2137 = vmul.f32 %v1913, %v2089
      %v2138 = vmul.f32 %v1914, %v2091
      %v2139 = vmul.f32 %v1915, %v2093
      %v2140 = vmul.f32 %v1916, %v2095
      %v2141 = vmul.f32 %v1917, %v2097
      %v2142 = vmul.f32 %v1918, %v2099
      %v2143 = vmul.f32 %v1919, %v2101
      %v2144 = vmul.f32 %v1920, %v2103
      %v2145 = vmul.f32 %v1921, %v2105
      %v2146 = vmul.f32 %v1922, %v2107
      %v2147 = vmul.f32 %v1923, %v2109
      %v2148 = vmul.f32 %v1924, %v2111
      %v2149 = vmul.f32 %v1925, %v2113
      %v2150 = vmul.f32 %v1926, %v2115
      %v2151 = vmul.f32 %v1927, %v2117
      %v2152 = vmul.f32 %v1928, %v2119
      %v2153 = vmul.f32 %v1929, %v2121
      %v2154 = vpack.c.bf16 %v2123, %v2122
      %v2155 = vpack.c.bf16 %v2125, %v2124
      %v2156 = vpack.c.bf16 %v2127, %v2126
      %v2157 = vpack.c.bf16 %v2129, %v2128
      %v2158 = vpack.c.bf16 %v2131, %v2130
      %v2159 = vpack.c.bf16 %v2133, %v2132
      %v2160 = vpack.c.bf16 %v2135, %v2134
      %v2161 = vpack.c.bf16 %v2137, %v2136
      %v2162 = vpack.c.bf16 %v2139, %v2138
      %v2163 = vpack.c.bf16 %v2141, %v2140
      %v2164 = vpack.c.bf16 %v2143, %v2142
      %v2165 = vpack.c.bf16 %v2145, %v2144
      %v2166 = vpack.c.bf16 %v2147, %v2146
      %v2167 = vpack.c.bf16 %v2149, %v2148
      %v2168 = vpack.c.bf16 %v2151, %v2150
      %v2169 = vpack.c.bf16 %v2153, %v2152
      %v2171 = vshrl.u32 %v2154, 16
      %v2173 = vrot.slane %v2171, 7
      %v2174 = vshll.u32 %v2154, 16
      %v2176 = vor.u32 %v2173, %v2174
      %v2178 = vshrl.u32 %v2155, 16
      %v2180 = vrot.slane %v2178, 7
      %v2181 = vshll.u32 %v2155, 16
      %v2183 = vor.u32 %v2180, %v2181
      %v2185 = vshrl.u32 %v2156, 16
      %v2187 = vrot.slane %v2185, 7
      %v2188 = vshll.u32 %v2156, 16
      %v2190 = vor.u32 %v2187, %v2188
      %v2192 = vshrl.u32 %v2157, 16
      %v2194 = vrot.slane %v2192, 7
      %v2195 = vshll.u32 %v2157, 16
      %v2197 = vor.u32 %v2194, %v2195
      %v2199 = vshrl.u32 %v2158, 16
      %v2201 = vrot.slane %v2199, 7
      %v2202 = vshll.u32 %v2158, 16
      %v2204 = vor.u32 %v2201, %v2202
      %v2206 = vshrl.u32 %v2159, 16
      %v2208 = vrot.slane %v2206, 7
      %v2209 = vshll.u32 %v2159, 16
      %v2211 = vor.u32 %v2208, %v2209
      %v2213 = vshrl.u32 %v2160, 16
      %v2215 = vrot.slane %v2213, 7
      %v2216 = vshll.u32 %v2160, 16
      %v2218 = vor.u32 %v2215, %v2216
      %v2220 = vshrl.u32 %v2161, 16
      %v2222 = vrot.slane %v2220, 7
      %v2223 = vshll.u32 %v2161, 16
      %v2225 = vor.u32 %v2222, %v2223
      %v2227 = vshrl.u32 %v2162, 16
      %v2229 = vrot.slane %v2227, 7
      %v2230 = vshll.u32 %v2162, 16
      %v2232 = vor.u32 %v2229, %v2230
      %v2234 = vshrl.u32 %v2163, 16
      %v2236 = vrot.slane %v2234, 7
      %v2237 = vshll.u32 %v2163, 16
      %v2239 = vor.u32 %v2236, %v2237
      %v2241 = vshrl.u32 %v2164, 16
      %v2243 = vrot.slane %v2241, 7
      %v2244 = vshll.u32 %v2164, 16
      %v2246 = vor.u32 %v2243, %v2244
      %v2248 = vshrl.u32 %v2165, 16
      %v2250 = vrot.slane %v2248, 7
      %v2251 = vshll.u32 %v2165, 16
      %v2253 = vor.u32 %v2250, %v2251
      %v2255 = vshrl.u32 %v2166, 16
      %v2257 = vrot.slane %v2255, 7
      %v2258 = vshll.u32 %v2166, 16
      %v2260 = vor.u32 %v2257, %v2258
      %v2262 = vshrl.u32 %v2167, 16
      %v2264 = vrot.slane %v2262, 7
      %v2265 = vshll.u32 %v2167, 16
      %v2267 = vor.u32 %v2264, %v2265
      %v2269 = vshrl.u32 %v2168, 16
      %v2271 = vrot.slane %v2269, 7
      %v2272 = vshll.u32 %v2168, 16
      %v2274 = vor.u32 %v2271, %v2272
      %v2276 = vshrl.u32 %v2169, 16
      %v2278 = vrot.slane %v2276, 7
      %v2279 = vshll.u32 %v2169, 16
      %v2281 = vor.u32 %v2278, %v2279
      %v2298 = vld [vmem:[%s638] sm:$0xff]
      %v2299 = vsel %vm641, %v2176, %v2298
      %2300 = vst [vmem:[%s638] sm:$0xff] %v2299
      %v2301 = vld [vmem:[%s638 + $0x8] sm:$0xff]
      %v2302 = vsel %vm641, %v2183, %v2301
      %2303 = vst [vmem:[%s638 + $0x8] sm:$0xff] %v2302
      %v2304 = vld [vmem:[%s638 + $0x10] sm:$0xff]
      %v2305 = vsel %vm641, %v2190, %v2304
      %2306 = vst [vmem:[%s638 + $0x10] sm:$0xff] %v2305
      %v2307 = vld [vmem:[%s638 + $0x18] sm:$0xff]
      %v2308 = vsel %vm641, %v2197, %v2307
      %2309 = vst [vmem:[%s638 + $0x18] sm:$0xff] %v2308
      %v2310 = vld [vmem:[%s638 + $0x20] sm:$0xff]
      %v2311 = vsel %vm641, %v2204, %v2310
      %2312 = vst [vmem:[%s638 + $0x20] sm:$0xff] %v2311
      %v2313 = vld [vmem:[%s638 + $0x28] sm:$0xff]
      %v2314 = vsel %vm641, %v2211, %v2313
      %2315 = vst [vmem:[%s638 + $0x28] sm:$0xff] %v2314
      %v2316 = vld [vmem:[%s638 + $0x30] sm:$0xff]
      %v2317 = vsel %vm641, %v2218, %v2316
      %2318 = vst [vmem:[%s638 + $0x30] sm:$0xff] %v2317
      %v2319 = vld [vmem:[%s638 + $0x38] sm:$0xff]
      %v2320 = vsel %vm641, %v2225, %v2319
      %2321 = vst [vmem:[%s638 + $0x38] sm:$0xff] %v2320
      %v2322 = vld [vmem:[%s638 + $0x40] sm:$0xff]
      %v2323 = vsel %vm641, %v2232, %v2322
      %2324 = vst [vmem:[%s638 + $0x40] sm:$0xff] %v2323
      %v2325 = vld [vmem:[%s638 + $0x48] sm:$0xff]
      %v2326 = vsel %vm641, %v2239, %v2325
      %2327 = vst [vmem:[%s638 + $0x48] sm:$0xff] %v2326
      %v2328 = vld [vmem:[%s638 + $0x50] sm:$0xff]
      %v2329 = vsel %vm641, %v2246, %v2328
      %2330 = vst [vmem:[%s638 + $0x50] sm:$0xff] %v2329
      %v2331 = vld [vmem:[%s638 + $0x58] sm:$0xff]
      %v2332 = vsel %vm641, %v2253, %v2331
      %2333 = vst [vmem:[%s638 + $0x58] sm:$0xff] %v2332
      %v2334 = vld [vmem:[%s638 + $0x60] sm:$0xff]
      %v2335 = vsel %vm641, %v2260, %v2334
      %2336 = vst [vmem:[%s638 + $0x60] sm:$0xff] %v2335
      %v2337 = vld [vmem:[%s638 + $0x68] sm:$0xff]
      %v2338 = vsel %vm641, %v2267, %v2337
      %2339 = vst [vmem:[%s638 + $0x68] sm:$0xff] %v2338
      %v2340 = vld [vmem:[%s638 + $0x70] sm:$0xff]
      %v2341 = vsel %vm641, %v2274, %v2340
      %2342 = vst [vmem:[%s638 + $0x70] sm:$0xff] %v2341
      %v2343 = vld [vmem:[%s638 + $0x78] sm:$0xff]
      %v2344 = vsel %vm641, %v2281, %v2343
      %2345 = vst [vmem:[%s638 + $0x78] sm:$0xff] %v2344
      %2362 = vrot.lane.b32.xlu0 %v2154, 4
      %v2363 = vpop.permute.xlu0 %2362
      %2364 = vrot.lane.b32.xlu0 %v2155, 4
      %v2365 = vpop.permute.xlu0 %2364
      %2366 = vrot.lane.b32.xlu0 %v2156, 4
      %v2367 = vpop.permute.xlu0 %2366
      %2368 = vrot.lane.b32.xlu0 %v2157, 4
      %v2369 = vpop.permute.xlu0 %2368
      %2370 = vrot.lane.b32.xlu0 %v2158, 4
      %v2371 = vpop.permute.xlu0 %2370
      %2372 = vrot.lane.b32.xlu0 %v2159, 4
      %v2373 = vpop.permute.xlu0 %2372
      %2374 = vrot.lane.b32.xlu0 %v2160, 4
      %v2375 = vpop.permute.xlu0 %2374
      %2376 = vrot.lane.b32.xlu0 %v2161, 4
      %v2377 = vpop.permute.xlu0 %2376
      %2378 = vrot.lane.b32.xlu0 %v2162, 4
      %v2379 = vpop.permute.xlu0 %2378
      %2380 = vrot.lane.b32.xlu0 %v2163, 4
      %v2381 = vpop.permute.xlu0 %2380
      %2382 = vrot.lane.b32.xlu0 %v2164, 4
      %v2383 = vpop.permute.xlu0 %2382
      %2384 = vrot.lane.b32.xlu0 %v2165, 4
      %v2385 = vpop.permute.xlu0 %2384
      %2386 = vrot.lane.b32.xlu0 %v2166, 4
      %v2387 = vpop.permute.xlu0 %2386
      %2388 = vrot.lane.b32.xlu0 %v2167, 4
      %v2389 = vpop.permute.xlu0 %2388
      %2390 = vrot.lane.b32.xlu0 %v2168, 4
      %v2391 = vpop.permute.xlu0 %2390
      %2392 = vrot.lane.b32.xlu0 %v2169, 4
      %v2393 = vpop.permute.xlu0 %2392
      %2410 = vst.msk [vmem:[%s638] sm:$0xff] %vm738, %v2363
      %2411 = vst.msk [vmem:[%s638 + $0x8] sm:$0xff] %vm738, %v2365
      %2412 = vst.msk [vmem:[%s638 + $0x10] sm:$0xff] %vm738, %v2367
      %2413 = vst.msk [vmem:[%s638 + $0x18] sm:$0xff] %vm738, %v2369
      %2414 = vst.msk [vmem:[%s638 + $0x20] sm:$0xff] %vm738, %v2371
      %2415 = vst.msk [vmem:[%s638 + $0x28] sm:$0xff] %vm738, %v2373
      %2416 = vst.msk [vmem:[%s638 + $0x30] sm:$0xff] %vm738, %v2375
      %2417 = vst.msk [vmem:[%s638 + $0x38] sm:$0xff] %vm738, %v2377
      %2418 = vst.msk [vmem:[%s638 + $0x40] sm:$0xff] %vm738, %v2379
      %2419 = vst.msk [vmem:[%s638 + $0x48] sm:$0xff] %vm738, %v2381
      %2420 = vst.msk [vmem:[%s638 + $0x50] sm:$0xff] %vm738, %v2383
      %2421 = vst.msk [vmem:[%s638 + $0x58] sm:$0xff] %vm738, %v2385
      %2422 = vst.msk [vmem:[%s638 + $0x60] sm:$0xff] %vm738, %v2387
      %2423 = vst.msk [vmem:[%s638 + $0x68] sm:$0xff] %vm738, %v2389
      %2424 = vst.msk [vmem:[%s638 + $0x70] sm:$0xff] %vm738, %v2391
      %2425 = vst.msk [vmem:[%s638 + $0x78] sm:$0xff] %vm738, %v2393
      %v2426 = vrot.slane %v2174, 1
      %v2427 = vor.u32 %v2171, %v2426
      %v2428 = vrot.slane %v2181, 1
      %v2429 = vor.u32 %v2178, %v2428
      %v2430 = vrot.slane %v2188, 1
      %v2431 = vor.u32 %v2185, %v2430
      %v2432 = vrot.slane %v2195, 1
      %v2433 = vor.u32 %v2192, %v2432
      %v2434 = vrot.slane %v2202, 1
      %v2435 = vor.u32 %v2199, %v2434
      %v2436 = vrot.slane %v2209, 1
      %v2437 = vor.u32 %v2206, %v2436
      %v2438 = vrot.slane %v2216, 1
      %v2439 = vor.u32 %v2213, %v2438
      %v2440 = vrot.slane %v2223, 1
      %v2441 = vor.u32 %v2220, %v2440
      %v2442 = vrot.slane %v2230, 1
      %v2443 = vor.u32 %v2227, %v2442
      %v2444 = vrot.slane %v2237, 1
      %v2445 = vor.u32 %v2234, %v2444
      %v2446 = vrot.slane %v2244, 1
      %v2447 = vor.u32 %v2241, %v2446
      %v2448 = vrot.slane %v2251, 1
      %v2449 = vor.u32 %v2248, %v2448
      %v2450 = vrot.slane %v2258, 1
      %v2451 = vor.u32 %v2255, %v2450
      %v2452 = vrot.slane %v2265, 1
      %v2453 = vor.u32 %v2262, %v2452
      %v2454 = vrot.slane %v2272, 1
      %v2455 = vor.u32 %v2269, %v2454
      %v2456 = vrot.slane %v2279, 1
      %v2457 = vor.u32 %v2276, %v2456
      %2458 = vrot.lane.b32.xlu0 %v2427, 8
      %v2459 = vpop.permute.xlu0 %2458
      %2460 = vrot.lane.b32.xlu0 %v2429, 8
      %v2461 = vpop.permute.xlu0 %2460
      %2462 = vrot.lane.b32.xlu0 %v2431, 8
      %v2463 = vpop.permute.xlu0 %2462
      %2464 = vrot.lane.b32.xlu0 %v2433, 8
      %v2465 = vpop.permute.xlu0 %2464
      %2466 = vrot.lane.b32.xlu0 %v2435, 8
      %v2467 = vpop.permute.xlu0 %2466
      %2468 = vrot.lane.b32.xlu0 %v2437, 8
      %v2469 = vpop.permute.xlu0 %2468
      %2470 = vrot.lane.b32.xlu0 %v2439, 8
      %v2471 = vpop.permute.xlu0 %2470
      %2472 = vrot.lane.b32.xlu0 %v2441, 8
      %v2473 = vpop.permute.xlu0 %2472
      %2474 = vrot.lane.b32.xlu0 %v2443, 8
      %v2475 = vpop.permute.xlu0 %2474
      %2476 = vrot.lane.b32.xlu0 %v2445, 8
      %v2477 = vpop.permute.xlu0 %2476
      %2478 = vrot.lane.b32.xlu0 %v2447, 8
      %v2479 = vpop.permute.xlu0 %2478
      %2480 = vrot.lane.b32.xlu0 %v2449, 8
      %v2481 = vpop.permute.xlu0 %2480
      %2482 = vrot.lane.b32.xlu0 %v2451, 8
      %v2483 = vpop.permute.xlu0 %2482
      %2484 = vrot.lane.b32.xlu0 %v2453, 8
      %v2485 = vpop.permute.xlu0 %2484
      %2486 = vrot.lane.b32.xlu0 %v2455, 8
      %v2487 = vpop.permute.xlu0 %2486
      %2488 = vrot.lane.b32.xlu0 %v2457, 8
      %v2489 = vpop.permute.xlu0 %2488
      %v2506 = vld [vmem:[%s638] sm:$0xff]
      %v2507 = vsel %vm837, %v2459, %v2506
      %2508 = vst [vmem:[%s638] sm:$0xff] %v2507
      %v2509 = vld [vmem:[%s638 + $0x8] sm:$0xff]
      %v2510 = vsel %vm837, %v2461, %v2509
      %2511 = vst [vmem:[%s638 + $0x8] sm:$0xff] %v2510
      %v2512 = vld [vmem:[%s638 + $0x10] sm:$0xff]
      %v2513 = vsel %vm837, %v2463, %v2512
      %2514 = vst [vmem:[%s638 + $0x10] sm:$0xff] %v2513
      %v2515 = vld [vmem:[%s638 + $0x18] sm:$0xff]
      %v2516 = vsel %vm837, %v2465, %v2515
      %2517 = vst [vmem:[%s638 + $0x18] sm:$0xff] %v2516
      %v2518 = vld [vmem:[%s638 + $0x20] sm:$0xff]
      %v2519 = vsel %vm837, %v2467, %v2518
      %2520 = vst [vmem:[%s638 + $0x20] sm:$0xff] %v2519
      %v2521 = vld [vmem:[%s638 + $0x28] sm:$0xff]
      %v2522 = vsel %vm837, %v2469, %v2521
      %2523 = vst [vmem:[%s638 + $0x28] sm:$0xff] %v2522
      %v2524 = vld [vmem:[%s638 + $0x30] sm:$0xff]
      %v2525 = vsel %vm837, %v2471, %v2524
      %2526 = vst [vmem:[%s638 + $0x30] sm:$0xff] %v2525
      %v2527 = vld [vmem:[%s638 + $0x38] sm:$0xff]
      %v2528 = vsel %vm837, %v2473, %v2527
      %2529 = vst [vmem:[%s638 + $0x38] sm:$0xff] %v2528
      %v2530 = vld [vmem:[%s638 + $0x40] sm:$0xff]
      %v2531 = vsel %vm837, %v2475, %v2530
      %2532 = vst [vmem:[%s638 + $0x40] sm:$0xff] %v2531
      %v2533 = vld [vmem:[%s638 + $0x48] sm:$0xff]
      %v2534 = vsel %vm837, %v2477, %v2533
      %2535 = vst [vmem:[%s638 + $0x48] sm:$0xff] %v2534
      %v2536 = vld [vmem:[%s638 + $0x50] sm:$0xff]
      %v2537 = vsel %vm837, %v2479, %v2536
      %2538 = vst [vmem:[%s638 + $0x50] sm:$0xff] %v2537
      %v2539 = vld [vmem:[%s638 + $0x58] sm:$0xff]
      %v2540 = vsel %vm837, %v2481, %v2539
      %2541 = vst [vmem:[%s638 + $0x58] sm:$0xff] %v2540
      %v2542 = vld [vmem:[%s638 + $0x60] sm:$0xff]
      %v2543 = vsel %vm837, %v2483, %v2542
      %2544 = vst [vmem:[%s638 + $0x60] sm:$0xff] %v2543
      %v2545 = vld [vmem:[%s638 + $0x68] sm:$0xff]
      %v2546 = vsel %vm837, %v2485, %v2545
      %2547 = vst [vmem:[%s638 + $0x68] sm:$0xff] %v2546
      %v2548 = vld [vmem:[%s638 + $0x70] sm:$0xff]
      %v2549 = vsel %vm837, %v2487, %v2548
      %2550 = vst [vmem:[%s638 + $0x70] sm:$0xff] %v2549
      %v2551 = vld [vmem:[%s638 + $0x78] sm:$0xff]
      %v2552 = vsel %vm837, %v2489, %v2551
      %2553 = vst [vmem:[%s638 + $0x78] sm:$0xff] %v2552
      %v2554 = vld [vmem:[#allocation2] sm:$0xff]
      %v2555 = vld [vmem:[#allocation2 + $0x8] sm:$0xff]
      %v2556 = vld [vmem:[#allocation2 + $0x10] sm:$0xff]
      %v2557 = vld [vmem:[#allocation2 + $0x18] sm:$0xff]
      %v2558 = vld [vmem:[#allocation2 + $0x20] sm:$0xff]
      %v2559 = vld [vmem:[#allocation2 + $0x28] sm:$0xff]
      %v2560 = vld [vmem:[#allocation2 + $0x30] sm:$0xff]
      %v2561 = vld [vmem:[#allocation2 + $0x38] sm:$0xff]
      %v2562 = vld [vmem:[#allocation2 + $0x40] sm:$0xff]
      %v2563 = vld [vmem:[#allocation2 + $0x48] sm:$0xff]
      %v2564 = vld [vmem:[#allocation2 + $0x50] sm:$0xff]
      %v2565 = vld [vmem:[#allocation2 + $0x58] sm:$0xff]
      %v2566 = vld [vmem:[#allocation2 + $0x60] sm:$0xff]
      %v2567 = vld [vmem:[#allocation2 + $0x68] sm:$0xff]
      %v2568 = vld [vmem:[#allocation2 + $0x70] sm:$0xff]
      %v2569 = vld [vmem:[#allocation2 + $0x78] sm:$0xff]
      %v2570 = vld [vmem:[%s2] sm:$0xf]
      %v2571 = vld [vmem:[%s2 + $0x4] sm:$0x3]
      %v2574 = vunpack.c.l.b16 %v2570
      %v2575 = vunpack.c.l.b16 %v2571
      %v2576 = vpack.c.b16 %v2575, %v2574
      %v2578 = vsel %vm280, %v2554, 0
      %v2581 = vsel %vm280, %v2555, 0
      %v2584 = vsel %vm280, %v2556, 0
      %v2587 = vsel %vm280, %v2557, 0
      %v2590 = vsel %vm280, %v2558, 0
      %v2593 = vsel %vm280, %v2559, 0
      %v2596 = vsel %vm280, %v2560, 0
      %v2599 = vsel %vm280, %v2561, 0
      %v2602 = vsel %vm280, %v2562, 0
      %v2605 = vsel %vm280, %v2563, 0
      %v2608 = vsel %vm280, %v2564, 0
      %v2611 = vsel %vm280, %v2565, 0
      %v2614 = vsel %vm280, %v2566, 0
      %v2617 = vsel %vm280, %v2567, 0
      %v2620 = vsel %vm280, %v2568, 0
      %v2623 = vsel %vm280, %v2569, 0
      %v2626 = vsel %vm957, %v2576, 0
      %2628 = vmatprep.subr.bf16.mxu0 0
      %2629 = vmatpush1.bf16.msra.mxu0 %v2626
      %2630 = vmatprep.subr.bf16.mxu0 0
      %2631 = vmatpush1.bf16.msra.mxu0 0
      %2632 = vmatprep.subr.bf16.mxu0 0
      %2633 = vmatpush1.bf16.msra.mxu0 0
      %2634 = vmatprep.subr.bf16.mxu0 0
      %2635 = vmatpush1.bf16.msra.mxu0 0
      %2636 = vmatprep.subr.bf16.mxu0 0
      %2637 = vmatpush1.bf16.msra.mxu0 0
      %2638 = vmatprep.subr.bf16.mxu0 0
      %2639 = vmatpush1.bf16.msra.mxu0 0
      %2640 = vmatprep.subr.bf16.mxu0 0
      %2641 = vmatpush1.bf16.msra.mxu0 0
      %2642 = vmatprep.subr.bf16.mxu0 0
      %2643 = vmatpush1.bf16.msra.mxu0 0
      %2644 = vmatprep.subr.bf16.mxu0 0
      %2645 = vmatpush1.bf16.msra.mxu0 0
      %2646 = vmatprep.subr.bf16.mxu0 0
      %2647 = vmatpush1.bf16.msra.mxu0 0
      %2648 = vmatprep.subr.bf16.mxu0 0
      %2649 = vmatpush1.bf16.msra.mxu0 0
      %2650 = vmatprep.subr.bf16.mxu0 0
      %2651 = vmatpush1.bf16.msra.mxu0 0
      %2652 = vmatprep.subr.bf16.mxu0 0
      %2653 = vmatpush1.bf16.msra.mxu0 0
      %2654 = vmatprep.subr.bf16.mxu0 0
      %2655 = vmatpush1.bf16.msra.mxu0 0
      %2656 = vmatprep.subr.bf16.mxu0 0
      %2657 = vmatpush1.bf16.msra.mxu0 0
      %2658 = vmatprep.subr.bf16.mxu0 0
      %2659 = vmatpush1.bf16.msra.mxu0 0
      %2660 = vmatprep.mubr.bf16.mxu0 0
      %2661 = vmatmul.mubr.bf16.gmra.mrb[0].mxu0 %v2578
      %v2662 = vpop.f32.mrb[0].mxu0
      %v2663 = vadd.f32 0.0, %v2662
      %v2664 = vpop.f32.mrb[0].mxu0
      %v2665 = vpop.f32.mrb[0].mxu0
      %v2666 = vadd.f32 0.0, %v2665
      %v2667 = vpop.f32.mrb[0].mxu0
      %2668 = vmatprep.mubr.bf16.mxu0 0
      %2669 = vmatmul.mubr.bf16.gmra.mrb[0].mxu0 %v2581
      %v2670 = vpop.f32.mrb[0].mxu0
      %v2671 = vadd.f32 0.0, %v2670
      %v2672 = vpop.f32.mrb[0].mxu0
      %v2673 = vpop.f32.mrb[0].mxu0
      %v2674 = vadd.f32 0.0, %v2673
      %v2675 = vpop.f32.mrb[0].mxu0
      %2676 = vmatprep.mubr.bf16.mxu0 0
      %2677 = vmatmul.mubr.bf16.gmra.mrb[0].mxu0 %v2584
      %v2678 = vpop.f32.mrb[0].mxu0
      %v2679 = vadd.f32 0.0, %v2678
      %v2680 = vpop.f32.mrb[0].mxu0
      %v2681 = vpop.f32.mrb[0].mxu0
      %v2682 = vadd.f32 0.0, %v2681
      %v2683 = vpop.f32.mrb[0].mxu0
      %2684 = vmatprep.mubr.bf16.mxu0 0
      %2685 = vmatmul.mubr.bf16.gmra.mrb[0].mxu0 %v2587
      %v2686 = vpop.f32.mrb[0].mxu0
      %v2687 = vadd.f32 0.0, %v2686
      %v2688 = vpop.f32.mrb[0].mxu0
      %v2689 = vpop.f32.mrb[0].mxu0
      %v2690 = vadd.f32 0.0, %v2689
      %v2691 = vpop.f32.mrb[0].mxu0
      %2692 = vmatprep.mubr.bf16.mxu0 0
      %2693 = vmatmul.mubr.bf16.gmra.mrb[0].mxu0 %v2590
      %v2694 = vpop.f32.mrb[0].mxu0
      %v2695 = vadd.f32 0.0, %v2694
      %v2696 = vpop.f32.mrb[0].mxu0
      %v2697 = vpop.f32.mrb[0].mxu0
      %v2698 = vadd.f32 0.0, %v2697
      %v2699 = vpop.f32.mrb[0].mxu0
      %2700 = vmatprep.mubr.bf16.mxu0 0
      %2701 = vmatmul.mubr.bf16.gmra.mrb[0].mxu0 %v2593
      %v2702 = vpop.f32.mrb[0].mxu0
      %v2703 = vadd.f32 0.0, %v2702
      %v2704 = vpop.f32.mrb[0].mxu0
      %v2705 = vpop.f32.mrb[0].mxu0
      %v2706 = vadd.f32 0.0, %v2705
      %v2707 = vpop.f32.mrb[0].mxu0
      %2708 = vmatprep.mubr.bf16.mxu0 0
      %2709 = vmatmul.mubr.bf16.gmra.mrb[0].mxu0 %v2596
      %v2710 = vpop.f32.mrb[0].mxu0
      %v2711 = vadd.f32 0.0, %v2710
      %v2712 = vpop.f32.mrb[0].mxu0
      %v2713 = vpop.f32.mrb[0].mxu0
      %v2714 = vadd.f32 0.0, %v2713
      %v2715 = vpop.f32.mrb[0].mxu0
      %2716 = vmatprep.mubr.bf16.mxu0 0
      %2717 = vmatmul.mubr.bf16.gmra.mrb[0].mxu0 %v2599
      %v2718 = vpop.f32.mrb[0].mxu0
      %v2719 = vadd.f32 0.0, %v2718
      %v2720 = vpop.f32.mrb[0].mxu0
      %v2721 = vpop.f32.mrb[0].mxu0
      %v2722 = vadd.f32 0.0, %v2721
      %v2723 = vpop.f32.mrb[0].mxu0
      %2724 = vmatprep.mubr.bf16.mxu0 0
      %2725 = vmatmul.mubr.bf16.gmra.mrb[0].mxu0 %v2602
      %v2726 = vpop.f32.mrb[0].mxu0
      %v2727 = vadd.f32 0.0, %v2726
      %v2728 = vpop.f32.mrb[0].mxu0
      %v2729 = vpop.f32.mrb[0].mxu0
      %v2730 = vadd.f32 0.0, %v2729
      %v2731 = vpop.f32.mrb[0].mxu0
      %2732 = vmatprep.mubr.bf16.mxu0 0
      %2733 = vmatmul.mubr.bf16.gmra.mrb[0].mxu0 %v2605
      %v2734 = vpop.f32.mrb[0].mxu0
      %v2735 = vadd.f32 0.0, %v2734
      %v2736 = vpop.f32.mrb[0].mxu0
      %v2737 = vpop.f32.mrb[0].mxu0
      %v2738 = vadd.f32 0.0, %v2737
      %v2739 = vpop.f32.mrb[0].mxu0
      %2740 = vmatprep.mubr.bf16.mxu0 0
      %2741 = vmatmul.mubr.bf16.gmra.mrb[0].mxu0 %v2608
      %v2742 = vpop.f32.mrb[0].mxu0
      %v2743 = vadd.f32 0.0, %v2742
      %v2744 = vpop.f32.mrb[0].mxu0
      %v2745 = vpop.f32.mrb[0].mxu0
      %v2746 = vadd.f32 0.0, %v2745
      %v2747 = vpop.f32.mrb[0].mxu0
      %2748 = vmatprep.mubr.bf16.mxu0 0
      %2749 = vmatmul.mubr.bf16.gmra.mrb[0].mxu0 %v2611
      %v2750 = vpop.f32.mrb[0].mxu0
      %v2751 = vadd.f32 0.0, %v2750
      %v2752 = vpop.f32.mrb[0].mxu0
      %v2753 = vpop.f32.mrb[0].mxu0
      %v2754 = vadd.f32 0.0, %v2753
      %v2755 = vpop.f32.mrb[0].mxu0
      %2756 = vmatprep.mubr.bf16.mxu0 0
      %2757 = vmatmul.mubr.bf16.gmra.mrb[0].mxu0 %v2614
      %v2758 = vpop.f32.mrb[0].mxu0
      %v2759 = vadd.f32 0.0, %v2758
      %v2760 = vpop.f32.mrb[0].mxu0
      %v2761 = vpop.f32.mrb[0].mxu0
      %v2762 = vadd.f32 0.0, %v2761
      %v2763 = vpop.f32.mrb[0].mxu0
      %2764 = vmatprep.mubr.bf16.mxu0 0
      %2765 = vmatmul.mubr.bf16.gmra.mrb[0].mxu0 %v2617
      %v2766 = vpop.f32.mrb[0].mxu0
      %v2767 = vadd.f32 0.0, %v2766
      %v2768 = vpop.f32.mrb[0].mxu0
      %v2769 = vpop.f32.mrb[0].mxu0
      %v2770 = vadd.f32 0.0, %v2769
      %v2771 = vpop.f32.mrb[0].mxu0
      %2772 = vmatprep.mubr.bf16.mxu0 0
      %2773 = vmatmul.mubr.bf16.gmra.mrb[0].mxu0 %v2620
      %v2774 = vpop.f32.mrb[0].mxu0
      %v2775 = vadd.f32 0.0, %v2774
      %v2776 = vpop.f32.mrb[0].mxu0
      %v2777 = vpop.f32.mrb[0].mxu0
      %v2778 = vadd.f32 0.0, %v2777
      %v2779 = vpop.f32.mrb[0].mxu0
      %2780 = vmatprep.mubr.bf16.mxu0 0
      %2781 = vmatmul.mubr.bf16.gmra.mrb[0].mxu0 %v2623
      %v2782 = vpop.f32.mrb[0].mxu0
      %v2783 = vadd.f32 0.0, %v2782
      %v2784 = vpop.f32.mrb[0].mxu0
      %v2785 = vpop.f32.mrb[0].mxu0
      %v2786 = vadd.f32 0.0, %v2785
      %v2787 = vpop.f32.mrb[0].mxu0
      %2788 = vdwg.mxu0
      %2789 = vst.msk [vmem:[#allocation3] sm:$0xff] %vm1122, %v2663
      %2790 = vst.msk [vmem:[#allocation3 + $0x8] sm:$0xff] %vm1122, %v2666
      %2791 = vst.msk [vmem:[#allocation3 + $0x10] sm:$0xff] %vm1122, %v2671
      %2792 = vst.msk [vmem:[#allocation3 + $0x18] sm:$0xff] %vm1122, %v2674
      %2793 = vst.msk [vmem:[#allocation3 + $0x20] sm:$0xff] %vm1122, %v2679
      %2794 = vst.msk [vmem:[#allocation3 + $0x28] sm:$0xff] %vm1122, %v2682
      %2795 = vst.msk [vmem:[#allocation3 + $0x30] sm:$0xff] %vm1122, %v2687
      %2796 = vst.msk [vmem:[#allocation3 + $0x38] sm:$0xff] %vm1122, %v2690
      %2797 = vst.msk [vmem:[#allocation3 + $0x40] sm:$0xff] %vm1122, %v2695
      %2798 = vst.msk [vmem:[#allocation3 + $0x48] sm:$0xff] %vm1122, %v2698
      %2799 = vst.msk [vmem:[#allocation3 + $0x50] sm:$0xff] %vm1122, %v2703
      %2800 = vst.msk [vmem:[#allocation3 + $0x58] sm:$0xff] %vm1122, %v2706
      %2801 = vst.msk [vmem:[#allocation3 + $0x60] sm:$0xff] %vm1122, %v2711
      %2802 = vst.msk [vmem:[#allocation3 + $0x68] sm:$0xff] %vm1122, %v2714
      %2803 = vst.msk [vmem:[#allocation3 + $0x70] sm:$0xff] %vm1122, %v2719
      %2804 = vst.msk [vmem:[#allocation3 + $0x78] sm:$0xff] %vm1122, %v2722
      %2805 = vst.msk [vmem:[#allocation3 + $0x80] sm:$0xff] %vm1122, %v2727
      %2806 = vst.msk [vmem:[#allocation3 + $0x88] sm:$0xff] %vm1122, %v2730
      %2807 = vst.msk [vmem:[#allocation3 + $0x90] sm:$0xff] %vm1122, %v2735
      %2808 = vst.msk [vmem:[#allocation3 + $0x98] sm:$0xff] %vm1122, %v2738
      %2809 = vst.msk [vmem:[#allocation3 + $0xa0] sm:$0xff] %vm1122, %v2743
      %2810 = vst.msk [vmem:[#allocation3 + $0xa8] sm:$0xff] %vm1122, %v2746
      %2811 = vst.msk [vmem:[#allocation3 + $0xb0] sm:$0xff] %vm1122, %v2751
      %2812 = vst.msk [vmem:[#allocation3 + $0xb8] sm:$0xff] %vm1122, %v2754
      %2813 = vst.msk [vmem:[#allocation3 + $0xc0] sm:$0xff] %vm1122, %v2759
      %2814 = vst.msk [vmem:[#allocation3 + $0xc8] sm:$0xff] %vm1122, %v2762
      %2815 = vst.msk [vmem:[#allocation3 + $0xd0] sm:$0xff] %vm1122, %v2767
      %2816 = vst.msk [vmem:[#allocation3 + $0xd8] sm:$0xff] %vm1122, %v2770
      %2817 = vst.msk [vmem:[#allocation3 + $0xe0] sm:$0xff] %vm1122, %v2775
      %2818 = vst.msk [vmem:[#allocation3 + $0xe8] sm:$0xff] %vm1122, %v2778
      %2819 = vst.msk [vmem:[#allocation3 + $0xf0] sm:$0xff] %vm1122, %v2783
      %2820 = vst.msk [vmem:[#allocation3 + $0xf8] sm:$0xff] %vm1122, %v2786
      %v2821 = vld [vmem:[#allocation3] sm:$0xff]
      %v2822 = vld [vmem:[#allocation3 + $0x8] sm:$0xff]
      %v2823 = vld [vmem:[#allocation3 + $0x10] sm:$0xff]
      %v2824 = vld [vmem:[#allocation3 + $0x18] sm:$0xff]
      %v2825 = vld [vmem:[#allocation3 + $0x20] sm:$0xff]
      %v2826 = vld [vmem:[#allocation3 + $0x28] sm:$0xff]
      %v2827 = vld [vmem:[#allocation3 + $0x30] sm:$0xff]
      %v2828 = vld [vmem:[#allocation3 + $0x38] sm:$0xff]
      %v2829 = vld [vmem:[#allocation3 + $0x40] sm:$0xff]
      %v2830 = vld [vmem:[#allocation3 + $0x48] sm:$0xff]
      %v2831 = vld [vmem:[#allocation3 + $0x50] sm:$0xff]
      %v2832 = vld [vmem:[#allocation3 + $0x58] sm:$0xff]
      %v2833 = vld [vmem:[#allocation3 + $0x60] sm:$0xff]
      %v2834 = vld [vmem:[#allocation3 + $0x68] sm:$0xff]
      %v2835 = vld [vmem:[#allocation3 + $0x70] sm:$0xff]
      %v2836 = vld [vmem:[#allocation3 + $0x78] sm:$0xff]
      %v2837 = vld [vmem:[#allocation3 + $0x80] sm:$0xff]
      %v2838 = vld [vmem:[#allocation3 + $0x88] sm:$0xff]
      %v2839 = vld [vmem:[#allocation3 + $0x90] sm:$0xff]
      %v2840 = vld [vmem:[#allocation3 + $0x98] sm:$0xff]
      %v2841 = vld [vmem:[#allocation3 + $0xa0] sm:$0xff]
      %v2842 = vld [vmem:[#allocation3 + $0xa8] sm:$0xff]
      %v2843 = vld [vmem:[#allocation3 + $0xb0] sm:$0xff]
      %v2844 = vld [vmem:[#allocation3 + $0xb8] sm:$0xff]
      %v2845 = vld [vmem:[#allocation3 + $0xc0] sm:$0xff]
      %v2846 = vld [vmem:[#allocation3 + $0xc8] sm:$0xff]
      %v2847 = vld [vmem:[#allocation3 + $0xd0] sm:$0xff]
      %v2848 = vld [vmem:[#allocation3 + $0xd8] sm:$0xff]
      %v2849 = vld [vmem:[#allocation3 + $0xe0] sm:$0xff]
      %v2850 = vld [vmem:[#allocation3 + $0xe8] sm:$0xff]
      %v2851 = vld [vmem:[#allocation3 + $0xf0] sm:$0xff]
      %v2852 = vld [vmem:[#allocation3 + $0xf8] sm:$0xff]
      %v2853 = vld [vmem:[%s638] sm:$0xff]
      %v2854 = vld [vmem:[%s638 + $0x8] sm:$0xff]
      %v2855 = vld [vmem:[%s638 + $0x10] sm:$0xff]
      %v2856 = vld [vmem:[%s638 + $0x18] sm:$0xff]
      %v2857 = vld [vmem:[%s638 + $0x20] sm:$0xff]
      %v2858 = vld [vmem:[%s638 + $0x28] sm:$0xff]
      %v2859 = vld [vmem:[%s638 + $0x30] sm:$0xff]
      %v2860 = vld [vmem:[%s638 + $0x38] sm:$0xff]
      %v2861 = vld [vmem:[%s638 + $0x40] sm:$0xff]
      %v2862 = vld [vmem:[%s638 + $0x48] sm:$0xff]
      %v2863 = vld [vmem:[%s638 + $0x50] sm:$0xff]
      %v2864 = vld [vmem:[%s638 + $0x58] sm:$0xff]
      %v2865 = vld [vmem:[%s638 + $0x60] sm:$0xff]
      %v2866 = vld [vmem:[%s638 + $0x68] sm:$0xff]
      %v2867 = vld [vmem:[%s638 + $0x70] sm:$0xff]
      %v2868 = vld [vmem:[%s638 + $0x78] sm:$0xff]
      %s2869 = scalar_lea.vmem %s2, 8
      %v2870 = vld [vmem:[%s2869] sm:$0xf]
      %v2871 = vld [vmem:[%s2869 + $0x4] sm:$0x3]
      %v2874 = vunpack.c.l.b16 %v2870
      %v2875 = vunpack.c.l.b16 %v2871
      %v2876 = vpack.c.b16 %v2875, %v2874
      %v2878 = vsel %vm280, %v2853, 0
      %v2881 = vsel %vm280, %v2854, 0
      %v2884 = vsel %vm280, %v2855, 0
      %v2887 = vsel %vm280, %v2856, 0
      %v2890 = vsel %vm280, %v2857, 0
      %v2893 = vsel %vm280, %v2858, 0
      %v2896 = vsel %vm280, %v2859, 0
      %v2899 = vsel %vm280, %v2860, 0
      %v2902 = vsel %vm280, %v2861, 0
      %v2905 = vsel %vm280, %v2862, 0
      %v2908 = vsel %vm280, %v2863, 0
      %v2911 = vsel %vm280, %v2864, 0
      %v2914 = vsel %vm280, %v2865, 0
      %v2917 = vsel %vm280, %v2866, 0
      %v2920 = vsel %vm280, %v2867, 0
      %v2923 = vsel %vm280, %v2868, 0
      %v2926 = vsel %vm957, %v2876, 0
      %2928 = vmatprep.subr.bf16.mxu0 0
      %2929 = vmatpush1.bf16.msra.mxu0 %v2926
      %2930 = vmatprep.subr.bf16.mxu0 0
      %2931 = vmatpush1.bf16.msra.mxu0 0
      %2932 = vmatprep.subr.bf16.mxu0 0
      %2933 = vmatpush1.bf16.msra.mxu0 0
      %2934 = vmatprep.subr.bf16.mxu0 0
      %2935 = vmatpush1.bf16.msra.mxu0 0
      %2936 = vmatprep.subr.bf16.mxu0 0
      %2937 = vmatpush1.bf16.msra.mxu0 0
      %2938 = vmatprep.subr.bf16.mxu0 0
      %2939 = vmatpush1.bf16.msra.mxu0 0
      %2940 = vmatprep.subr.bf16.mxu0 0
      %2941 = vmatpush1.bf16.msra.mxu0 0
      %2942 = vmatprep.subr.bf16.mxu0 0
      %2943 = vmatpush1.bf16.msra.mxu0 0
      %2944 = vmatprep.subr.bf16.mxu0 0
      %2945 = vmatpush1.bf16.msra.mxu0 0
      %2946 = vmatprep.subr.bf16.mxu0 0
      %2947 = vmatpush1.bf16.msra.mxu0 0
      %2948 = vmatprep.subr.bf16.mxu0 0
      %2949 = vmatpush1.bf16.msra.mxu0 0
      %2950 = vmatprep.subr.bf16.mxu0 0
      %2951 = vmatpush1.bf16.msra.mxu0 0
      %2952 = vmatprep.subr.bf16.mxu0 0
      %2953 = vmatpush1.bf16.msra.mxu0 0
      %2954 = vmatprep.subr.bf16.mxu0 0
      %2955 = vmatpush1.bf16.msra.mxu0 0
      %2956 = vmatprep.subr.bf16.mxu0 0
      %2957 = vmatpush1.bf16.msra.mxu0 0
      %2958 = vmatprep.subr.bf16.mxu0 0
      %2959 = vmatpush1.bf16.msra.mxu0 0
      %2960 = vmatprep.mubr.bf16.mxu0 0
      %2961 = vmatmul.mubr.bf16.gmra.mrb[0].mxu0 %v2878
      %v2962 = vpop.f32.mrb[0].mxu0
      %v2963 = vadd.f32 0.0, %v2962
      %v2964 = vpop.f32.mrb[0].mxu0
      %v2965 = vpop.f32.mrb[0].mxu0
      %v2966 = vadd.f32 0.0, %v2965
      %v2967 = vpop.f32.mrb[0].mxu0
      %2968 = vmatprep.mubr.bf16.mxu0 0
      %2969 = vmatmul.mubr.bf16.gmra.mrb[0].mxu0 %v2881
      %v2970 = vpop.f32.mrb[0].mxu0
      %v2971 = vadd.f32 0.0, %v2970
      %v2972 = vpop.f32.mrb[0].mxu0
      %v2973 = vpop.f32.mrb[0].mxu0
      %v2974 = vadd.f32 0.0, %v2973
      %v2975 = vpop.f32.mrb[0].mxu0
      %2976 = vmatprep.mubr.bf16.mxu0 0
      %2977 = vmatmul.mubr.bf16.gmra.mrb[0].mxu0 %v2884
      %v2978 = vpop.f32.mrb[0].mxu0
      %v2979 = vadd.f32 0.0, %v2978
      %v2980 = vpop.f32.mrb[0].mxu0
      %v2981 = vpop.f32.mrb[0].mxu0
      %v2982 = vadd.f32 0.0, %v2981
      %v2983 = vpop.f32.mrb[0].mxu0
      %2984 = vmatprep.mubr.bf16.mxu0 0
      %2985 = vmatmul.mubr.bf16.gmra.mrb[0].mxu0 %v2887
      %v2986 = vpop.f32.mrb[0].mxu0
      %v2987 = vadd.f32 0.0, %v2986
      %v2988 = vpop.f32.mrb[0].mxu0
      %v2989 = vpop.f32.mrb[0].mxu0
      %v2990 = vadd.f32 0.0, %v2989
      %v2991 = vpop.f32.mrb[0].mxu0
      %2992 = vmatprep.mubr.bf16.mxu0 0
      %2993 = vmatmul.mubr.bf16.gmra.mrb[0].mxu0 %v2890
      %v2994 = vpop.f32.mrb[0].mxu0
      %v2995 = vadd.f32 0.0, %v2994
      %v2996 = vpop.f32.mrb[0].mxu0
      %v2997 = vpop.f32.mrb[0].mxu0
      %v2998 = vadd.f32 0.0, %v2997
      %v2999 = vpop.f32.mrb[0].mxu0
      %3000 = vmatprep.mubr.bf16.mxu0 0
      %3001 = vmatmul.mubr.bf16.gmra.mrb[0].mxu0 %v2893
      %v3002 = vpop.f32.mrb[0].mxu0
      %v3003 = vadd.f32 0.0, %v3002
      %v3004 = vpop.f32.mrb[0].mxu0
      %v3005 = vpop.f32.mrb[0].mxu0
      %v3006 = vadd.f32 0.0, %v3005
      %v3007 = vpop.f32.mrb[0].mxu0
      %3008 = vmatprep.mubr.bf16.mxu0 0
      %3009 = vmatmul.mubr.bf16.gmra.mrb[0].mxu0 %v2896
      %v3010 = vpop.f32.mrb[0].mxu0
      %v3011 = vadd.f32 0.0, %v3010
      %v3012 = vpop.f32.mrb[0].mxu0
      %v3013 = vpop.f32.mrb[0].mxu0
      %v3014 = vadd.f32 0.0, %v3013
      %v3015 = vpop.f32.mrb[0].mxu0
      %3016 = vmatprep.mubr.bf16.mxu0 0
      %3017 = vmatmul.mubr.bf16.gmra.mrb[0].mxu0 %v2899
      %v3018 = vpop.f32.mrb[0].mxu0
      %v3019 = vadd.f32 0.0, %v3018
      %v3020 = vpop.f32.mrb[0].mxu0
      %v3021 = vpop.f32.mrb[0].mxu0
      %v3022 = vadd.f32 0.0, %v3021
      %v3023 = vpop.f32.mrb[0].mxu0
      %3024 = vmatprep.mubr.bf16.mxu0 0
      %3025 = vmatmul.mubr.bf16.gmra.mrb[0].mxu0 %v2902
      %v3026 = vpop.f32.mrb[0].mxu0
      %v3027 = vadd.f32 0.0, %v3026
      %v3028 = vpop.f32.mrb[0].mxu0
      %v3029 = vpop.f32.mrb[0].mxu0
      %v3030 = vadd.f32 0.0, %v3029
      %v3031 = vpop.f32.mrb[0].mxu0
      %3032 = vmatprep.mubr.bf16.mxu0 0
      %3033 = vmatmul.mubr.bf16.gmra.mrb[0].mxu0 %v2905
      %v3034 = vpop.f32.mrb[0].mxu0
      %v3035 = vadd.f32 0.0, %v3034
      %v3036 = vpop.f32.mrb[0].mxu0
      %v3037 = vpop.f32.mrb[0].mxu0
      %v3038 = vadd.f32 0.0, %v3037
      %v3039 = vpop.f32.mrb[0].mxu0
      %3040 = vmatprep.mubr.bf16.mxu0 0
      %3041 = vmatmul.mubr.bf16.gmra.mrb[0].mxu0 %v2908
      %v3042 = vpop.f32.mrb[0].mxu0
      %v3043 = vadd.f32 0.0, %v3042
      %v3044 = vpop.f32.mrb[0].mxu0
      %v3045 = vpop.f32.mrb[0].mxu0
      %v3046 = vadd.f32 0.0, %v3045
      %v3047 = vpop.f32.mrb[0].mxu0
      %3048 = vmatprep.mubr.bf16.mxu0 0
      %3049 = vmatmul.mubr.bf16.gmra.mrb[0].mxu0 %v2911
      %v3050 = vpop.f32.mrb[0].mxu0
      %v3051 = vadd.f32 0.0, %v3050
      %v3052 = vpop.f32.mrb[0].mxu0
      %v3053 = vpop.f32.mrb[0].mxu0
      %v3054 = vadd.f32 0.0, %v3053
      %v3055 = vpop.f32.mrb[0].mxu0
      %3056 = vmatprep.mubr.bf16.mxu0 0
      %3057 = vmatmul.mubr.bf16.gmra.mrb[0].mxu0 %v2914
      %v3058 = vpop.f32.mrb[0].mxu0
      %v3059 = vadd.f32 0.0, %v3058
      %v3060 = vpop.f32.mrb[0].mxu0
      %v3061 = vpop.f32.mrb[0].mxu0
      %v3062 = vadd.f32 0.0, %v3061
      %v3063 = vpop.f32.mrb[0].mxu0
      %3064 = vmatprep.mubr.bf16.mxu0 0
      %3065 = vmatmul.mubr.bf16.gmra.mrb[0].mxu0 %v2917
      %v3066 = vpop.f32.mrb[0].mxu0
      %v3067 = vadd.f32 0.0, %v3066
      %v3068 = vpop.f32.mrb[0].mxu0
      %v3069 = vpop.f32.mrb[0].mxu0
      %v3070 = vadd.f32 0.0, %v3069
      %v3071 = vpop.f32.mrb[0].mxu0
      %3072 = vmatprep.mubr.bf16.mxu0 0
      %3073 = vmatmul.mubr.bf16.gmra.mrb[0].mxu0 %v2920
      %v3074 = vpop.f32.mrb[0].mxu0
      %v3075 = vadd.f32 0.0, %v3074
      %v3076 = vpop.f32.mrb[0].mxu0
      %v3077 = vpop.f32.mrb[0].mxu0
      %v3078 = vadd.f32 0.0, %v3077
      %v3079 = vpop.f32.mrb[0].mxu0
      %3080 = vmatprep.mubr.bf16.mxu0 0
      %3081 = vmatmul.mubr.bf16.gmra.mrb[0].mxu0 %v2923
      %v3082 = vpop.f32.mrb[0].mxu0
      %v3083 = vadd.f32 0.0, %v3082
      %v3084 = vpop.f32.mrb[0].mxu0
      %v3085 = vpop.f32.mrb[0].mxu0
      %v3086 = vadd.f32 0.0, %v3085
      %v3087 = vpop.f32.mrb[0].mxu0
      %3088 = vdwg.mxu0
      %v3089 = vadd.f32 %v2821, %v2963
      %v3090 = vadd.f32 %v2822, %v2966
      %v3091 = vadd.f32 %v2823, %v2971
      %v3092 = vadd.f32 %v2824, %v2974
      %v3093 = vadd.f32 %v2825, %v2979
      %v3094 = vadd.f32 %v2826, %v2982
      %v3095 = vadd.f32 %v2827, %v2987
      %v3096 = vadd.f32 %v2828, %v2990
      %v3097 = vadd.f32 %v2829, %v2995
      %v3098 = vadd.f32 %v2830, %v2998
      %v3099 = vadd.f32 %v2831, %v3003
      %v3100 = vadd.f32 %v2832, %v3006
      %v3101 = vadd.f32 %v2833, %v3011
      %v3102 = vadd.f32 %v2834, %v3014
      %v3103 = vadd.f32 %v2835, %v3019
      %v3104 = vadd.f32 %v2836, %v3022
      %v3105 = vadd.f32 %v2837, %v3027
      %v3106 = vadd.f32 %v2838, %v3030
      %v3107 = vadd.f32 %v2839, %v3035
      %v3108 = vadd.f32 %v2840, %v3038
      %v3109 = vadd.f32 %v2841, %v3043
      %v3110 = vadd.f32 %v2842, %v3046
      %v3111 = vadd.f32 %v2843, %v3051
      %v3112 = vadd.f32 %v2844, %v3054
      %v3113 = vadd.f32 %v2845, %v3059
      %v3114 = vadd.f32 %v2846, %v3062
      %v3115 = vadd.f32 %v2847, %v3067
      %v3116 = vadd.f32 %v2848, %v3070
      %v3117 = vadd.f32 %v2849, %v3075
      %v3118 = vadd.f32 %v2850, %v3078
      %v3119 = vadd.f32 %v2851, %v3083
      %v3120 = vadd.f32 %v2852, %v3086
      %3121 = vst.msk [vmem:[#allocation3] sm:$0xff] %vm1122, %v3089
      %3122 = vst.msk [vmem:[#allocation3 + $0x8] sm:$0xff] %vm1122, %v3090
      %3123 = vst.msk [vmem:[#allocation3 + $0x10] sm:$0xff] %vm1122, %v3091
      %3124 = vst.msk [vmem:[#allocation3 + $0x18] sm:$0xff] %vm1122, %v3092
      %3125 = vst.msk [vmem:[#allocation3 + $0x20] sm:$0xff] %vm1122, %v3093
      %3126 = vst.msk [vmem:[#allocation3 + $0x28] sm:$0xff] %vm1122, %v3094
      %3127 = vst.msk [vmem:[#allocation3 + $0x30] sm:$0xff] %vm1122, %v3095
      %3128 = vst.msk [vmem:[#allocation3 + $0x38] sm:$0xff] %vm1122, %v3096
      %3129 = vst.msk [vmem:[#allocation3 + $0x40] sm:$0xff] %vm1122, %v3097
      %3130 = vst.msk [vmem:[#allocation3 + $0x48] sm:$0xff] %vm1122, %v3098
      %3131 = vst.msk [vmem:[#allocation3 + $0x50] sm:$0xff] %vm1122, %v3099
      %3132 = vst.msk [vmem:[#allocation3 + $0x58] sm:$0xff] %vm1122, %v3100
      %3133 = vst.msk [vmem:[#allocation3 + $0x60] sm:$0xff] %vm1122, %v3101
      %3134 = vst.msk [vmem:[#allocation3 + $0x68] sm:$0xff] %vm1122, %v3102
      %3135 = vst.msk [vmem:[#allocation3 + $0x70] sm:$0xff] %vm1122, %v3103
      %3136 = vst.msk [vmem:[#allocation3 + $0x78] sm:$0xff] %vm1122, %v3104
      %3137 = vst.msk [vmem:[#allocation3 + $0x80] sm:$0xff] %vm1122, %v3105
      %3138 = vst.msk [vmem:[#allocation3 + $0x88] sm:$0xff] %vm1122, %v3106
      %3139 = vst.msk [vmem:[#allocation3 + $0x90] sm:$0xff] %vm1122, %v3107
      %3140 = vst.msk [vmem:[#allocation3 + $0x98] sm:$0xff] %vm1122, %v3108
      %3141 = vst.msk [vmem:[#allocation3 + $0xa0] sm:$0xff] %vm1122, %v3109
      %3142 = vst.msk [vmem:[#allocation3 + $0xa8] sm:$0xff] %vm1122, %v3110
      %3143 = vst.msk [vmem:[#allocation3 + $0xb0] sm:$0xff] %vm1122, %v3111
      %3144 = vst.msk [vmem:[#allocation3 + $0xb8] sm:$0xff] %vm1122, %v3112
      %3145 = vst.msk [vmem:[#allocation3 + $0xc0] sm:$0xff] %vm1122, %v3113
      %3146 = vst.msk [vmem:[#allocation3 + $0xc8] sm:$0xff] %vm1122, %v3114
      %3147 = vst.msk [vmem:[#allocation3 + $0xd0] sm:$0xff] %vm1122, %v3115
      %3148 = vst.msk [vmem:[#allocation3 + $0xd8] sm:$0xff] %vm1122, %v3116
      %3149 = vst.msk [vmem:[#allocation3 + $0xe0] sm:$0xff] %vm1122, %v3117
      %3150 = vst.msk [vmem:[#allocation3 + $0xe8] sm:$0xff] %vm1122, %v3118
      %3151 = vst.msk [vmem:[#allocation3 + $0xf0] sm:$0xff] %vm1122, %v3119
      %3152 = vst.msk [vmem:[#allocation3 + $0xf8] sm:$0xff] %vm1122, %v3120
      %v3153 = vld [vmem:[#allocation3] sm:$0xff]
      %v3154 = vld [vmem:[#allocation3 + $0x8] sm:$0xff]
      %v3155 = vld [vmem:[#allocation3 + $0x10] sm:$0xff]
      %v3156 = vld [vmem:[#allocation3 + $0x18] sm:$0xff]
      %v3157 = vld [vmem:[#allocation3 + $0x20] sm:$0xff]
      %v3158 = vld [vmem:[#allocation3 + $0x28] sm:$0xff]
      %v3159 = vld [vmem:[#allocation3 + $0x30] sm:$0xff]
      %v3160 = vld [vmem:[#allocation3 + $0x38] sm:$0xff]
      %v3161 = vld [vmem:[#allocation3 + $0x40] sm:$0xff]
      %v3162 = vld [vmem:[#allocation3 + $0x48] sm:$0xff]
      %v3163 = vld [vmem:[#allocation3 + $0x50] sm:$0xff]
      %v3164 = vld [vmem:[#allocation3 + $0x58] sm:$0xff]
      %v3165 = vld [vmem:[#allocation3 + $0x60] sm:$0xff]
      %v3166 = vld [vmem:[#allocation3 + $0x68] sm:$0xff]
      %v3167 = vld [vmem:[#allocation3 + $0x70] sm:$0xff]
      %v3168 = vld [vmem:[#allocation3 + $0x78] sm:$0xff]
      %v3169 = vld [vmem:[#allocation3 + $0x80] sm:$0xff]
      %v3170 = vld [vmem:[#allocation3 + $0x88] sm:$0xff]
      %v3171 = vld [vmem:[#allocation3 + $0x90] sm:$0xff]
      %v3172 = vld [vmem:[#allocation3 + $0x98] sm:$0xff]
      %v3173 = vld [vmem:[#allocation3 + $0xa0] sm:$0xff]
      %v3174 = vld [vmem:[#allocation3 + $0xa8] sm:$0xff]
      %v3175 = vld [vmem:[#allocation3 + $0xb0] sm:$0xff]
      %v3176 = vld [vmem:[#allocation3 + $0xb8] sm:$0xff]
      %v3177 = vld [vmem:[#allocation3 + $0xc0] sm:$0xff]
      %v3178 = vld [vmem:[#allocation3 + $0xc8] sm:$0xff]
      %v3179 = vld [vmem:[#allocation3 + $0xd0] sm:$0xff]
      %v3180 = vld [vmem:[#allocation3 + $0xd8] sm:$0xff]
      %v3181 = vld [vmem:[#allocation3 + $0xe0] sm:$0xff]
      %v3182 = vld [vmem:[#allocation3 + $0xe8] sm:$0xff]
      %v3183 = vld [vmem:[#allocation3 + $0xf0] sm:$0xff]
      %v3184 = vld [vmem:[#allocation3 + $0xf8] sm:$0xff]
      %v3185 = vld [vmem:[%s1519] sm:$0xff]
      %v3186 = vld [vmem:[%s1519 + $0x8] sm:$0xff]
      %v3187 = vld [vmem:[%s1519 + $0x10] sm:$0xff]
      %v3188 = vld [vmem:[%s1519 + $0x18] sm:$0xff]
      %v3189 = vld [vmem:[%s1519 + $0x20] sm:$0xff]
      %v3190 = vld [vmem:[%s1519 + $0x28] sm:$0xff]
      %v3191 = vld [vmem:[%s1519 + $0x30] sm:$0xff]
      %v3192 = vld [vmem:[%s1519 + $0x38] sm:$0xff]
      %v3193 = vld [vmem:[%s1519 + $0x40] sm:$0xff]
      %v3194 = vld [vmem:[%s1519 + $0x48] sm:$0xff]
      %v3195 = vld [vmem:[%s1519 + $0x50] sm:$0xff]
      %v3196 = vld [vmem:[%s1519 + $0x58] sm:$0xff]
      %v3197 = vld [vmem:[%s1519 + $0x60] sm:$0xff]
      %v3198 = vld [vmem:[%s1519 + $0x68] sm:$0xff]
      %v3199 = vld [vmem:[%s1519 + $0x70] sm:$0xff]
      %v3200 = vld [vmem:[%s1519 + $0x78] sm:$0xff]
      %s3201 = scalar_lea.vmem %s2, 16
      %v3202 = vld [vmem:[%s3201] sm:$0xf]
      %v3203 = vld [vmem:[%s3201 + $0x4] sm:$0x3]
      %v3206 = vunpack.c.l.b16 %v3202
      %v3207 = vunpack.c.l.b16 %v3203
      %v3208 = vpack.c.b16 %v3207, %v3206
      %v3210 = vsel %vm280, %v3185, 0
      %v3213 = vsel %vm280, %v3186, 0
      %v3216 = vsel %vm280, %v3187, 0
      %v3219 = vsel %vm280, %v3188, 0
      %v3222 = vsel %vm280, %v3189, 0
      %v3225 = vsel %vm280, %v3190, 0
      %v3228 = vsel %vm280, %v3191, 0
      %v3231 = vsel %vm280, %v3192, 0
      %v3234 = vsel %vm280, %v3193, 0
      %v3237 = vsel %vm280, %v3194, 0
      %v3240 = vsel %vm280, %v3195, 0
      %v3243 = vsel %vm280, %v3196, 0
      %v3246 = vsel %vm280, %v3197, 0
      %v3249 = vsel %vm280, %v3198, 0
      %v3252 = vsel %vm280, %v3199, 0
      %v3255 = vsel %vm280, %v3200, 0
      %v3258 = vsel %vm957, %v3208, 0
      %3260 = vmatprep.subr.bf16.mxu0 0
      %3261 = vmatpush1.bf16.msra.mxu0 %v3258
      %3262 = vmatprep.subr.bf16.mxu0 0
      %3263 = vmatpush1.bf16.msra.mxu0 0
      %3264 = vmatprep.subr.bf16.mxu0 0
      %3265 = vmatpush1.bf16.msra.mxu0 0
      %3266 = vmatprep.subr.bf16.mxu0 0
      %3267 = vmatpush1.bf16.msra.mxu0 0
      %3268 = vmatprep.subr.bf16.mxu0 0
      %3269 = vmatpush1.bf16.msra.mxu0 0
      %3270 = vmatprep.subr.bf16.mxu0 0
      %3271 = vmatpush1.bf16.msra.mxu0 0
      %3272 = vmatprep.subr.bf16.mxu0 0
      %3273 = vmatpush1.bf16.msra.mxu0 0
      %3274 = vmatprep.subr.bf16.mxu0 0
      %3275 = vmatpush1.bf16.msra.mxu0 0
      %3276 = vmatprep.subr.bf16.mxu0 0
      %3277 = vmatpush1.bf16.msra.mxu0 0
      %3278 = vmatprep.subr.bf16.mxu0 0
      %3279 = vmatpush1.bf16.msra.mxu0 0
      %3280 = vmatprep.subr.bf16.mxu0 0
      %3281 = vmatpush1.bf16.msra.mxu0 0
      %3282 = vmatprep.subr.bf16.mxu0 0
      %3283 = vmatpush1.bf16.msra.mxu0 0
      %3284 = vmatprep.subr.bf16.mxu0 0
      %3285 = vmatpush1.bf16.msra.mxu0 0
      %3286 = vmatprep.subr.bf16.mxu0 0
      %3287 = vmatpush1.bf16.msra.mxu0 0
      %3288 = vmatprep.subr.bf16.mxu0 0
      %3289 = vmatpush1.bf16.msra.mxu0 0
      %3290 = vmatprep.subr.bf16.mxu0 0
      %3291 = vmatpush1.bf16.msra.mxu0 0
      %3292 = vmatprep.mubr.bf16.mxu0 0
      %3293 = vmatmul.mubr.bf16.gmra.mrb[0].mxu0 %v3210
      %v3294 = vpop.f32.mrb[0].mxu0
      %v3295 = vadd.f32 0.0, %v3294
      %v3296 = vpop.f32.mrb[0].mxu0
      %v3297 = vpop.f32.mrb[0].mxu0
      %v3298 = vadd.f32 0.0, %v3297
      %v3299 = vpop.f32.mrb[0].mxu0
      %3300 = vmatprep.mubr.bf16.mxu0 0
      %3301 = vmatmul.mubr.bf16.gmra.mrb[0].mxu0 %v3213
      %v3302 = vpop.f32.mrb[0].mxu0
      %v3303 = vadd.f32 0.0, %v3302
      %v3304 = vpop.f32.mrb[0].mxu0
      %v3305 = vpop.f32.mrb[0].mxu0
      %v3306 = vadd.f32 0.0, %v3305
      %v3307 = vpop.f32.mrb[0].mxu0
      %3308 = vmatprep.mubr.bf16.mxu0 0
      %3309 = vmatmul.mubr.bf16.gmra.mrb[0].mxu0 %v3216
      %v3310 = vpop.f32.mrb[0].mxu0
      %v3311 = vadd.f32 0.0, %v3310
      %v3312 = vpop.f32.mrb[0].mxu0
      %v3313 = vpop.f32.mrb[0].mxu0
      %v3314 = vadd.f32 0.0, %v3313
      %v3315 = vpop.f32.mrb[0].mxu0
      %3316 = vmatprep.mubr.bf16.mxu0 0
      %3317 = vmatmul.mubr.bf16.gmra.mrb[0].mxu0 %v3219
      %v3318 = vpop.f32.mrb[0].mxu0
      %v3319 = vadd.f32 0.0, %v3318
      %v3320 = vpop.f32.mrb[0].mxu0
      %v3321 = vpop.f32.mrb[0].mxu0
      %v3322 = vadd.f32 0.0, %v3321
      %v3323 = vpop.f32.mrb[0].mxu0
      %3324 = vmatprep.mubr.bf16.mxu0 0
      %3325 = vmatmul.mubr.bf16.gmra.mrb[0].mxu0 %v3222
      %v3326 = vpop.f32.mrb[0].mxu0
      %v3327 = vadd.f32 0.0, %v3326
      %v3328 = vpop.f32.mrb[0].mxu0
      %v3329 = vpop.f32.mrb[0].mxu0
      %v3330 = vadd.f32 0.0, %v3329
      %v3331 = vpop.f32.mrb[0].mxu0
      %3332 = vmatprep.mubr.bf16.mxu0 0
      %3333 = vmatmul.mubr.bf16.gmra.mrb[0].mxu0 %v3225
      %v3334 = vpop.f32.mrb[0].mxu0
      %v3335 = vadd.f32 0.0, %v3334
      %v3336 = vpop.f32.mrb[0].mxu0
      %v3337 = vpop.f32.mrb[0].mxu0
      %v3338 = vadd.f32 0.0, %v3337
      %v3339 = vpop.f32.mrb[0].mxu0
      %3340 = vmatprep.mubr.bf16.mxu0 0
      %3341 = vmatmul.mubr.bf16.gmra.mrb[0].mxu0 %v3228
      %v3342 = vpop.f32.mrb[0].mxu0
      %v3343 = vadd.f32 0.0, %v3342
      %v3344 = vpop.f32.mrb[0].mxu0
      %v3345 = vpop.f32.mrb[0].mxu0
      %v3346 = vadd.f32 0.0, %v3345
      %v3347 = vpop.f32.mrb[0].mxu0
      %3348 = vmatprep.mubr.bf16.mxu0 0
      %3349 = vmatmul.mubr.bf16.gmra.mrb[0].mxu0 %v3231
      %v3350 = vpop.f32.mrb[0].mxu0
      %v3351 = vadd.f32 0.0, %v3350
      %v3352 = vpop.f32.mrb[0].mxu0
      %v3353 = vpop.f32.mrb[0].mxu0
      %v3354 = vadd.f32 0.0, %v3353
      %v3355 = vpop.f32.mrb[0].mxu0
      %3356 = vmatprep.mubr.bf16.mxu0 0
      %3357 = vmatmul.mubr.bf16.gmra.mrb[0].mxu0 %v3234
      %v3358 = vpop.f32.mrb[0].mxu0
      %v3359 = vadd.f32 0.0, %v3358
      %v3360 = vpop.f32.mrb[0].mxu0
      %v3361 = vpop.f32.mrb[0].mxu0
      %v3362 = vadd.f32 0.0, %v3361
      %v3363 = vpop.f32.mrb[0].mxu0
      %3364 = vmatprep.mubr.bf16.mxu0 0
      %3365 = vmatmul.mubr.bf16.gmra.mrb[0].mxu0 %v3237
      %v3366 = vpop.f32.mrb[0].mxu0
      %v3367 = vadd.f32 0.0, %v3366
      %v3368 = vpop.f32.mrb[0].mxu0
      %v3369 = vpop.f32.mrb[0].mxu0
      %v3370 = vadd.f32 0.0, %v3369
      %v3371 = vpop.f32.mrb[0].mxu0
      %3372 = vmatprep.mubr.bf16.mxu0 0
      %3373 = vmatmul.mubr.bf16.gmra.mrb[0].mxu0 %v3240
      %v3374 = vpop.f32.mrb[0].mxu0
      %v3375 = vadd.f32 0.0, %v3374
      %v3376 = vpop.f32.mrb[0].mxu0
      %v3377 = vpop.f32.mrb[0].mxu0
      %v3378 = vadd.f32 0.0, %v3377
      %v3379 = vpop.f32.mrb[0].mxu0
      %3380 = vmatprep.mubr.bf16.mxu0 0
      %3381 = vmatmul.mubr.bf16.gmra.mrb[0].mxu0 %v3243
      %v3382 = vpop.f32.mrb[0].mxu0
      %v3383 = vadd.f32 0.0, %v3382
      %v3384 = vpop.f32.mrb[0].mxu0
      %v3385 = vpop.f32.mrb[0].mxu0
      %v3386 = vadd.f32 0.0, %v3385
      %v3387 = vpop.f32.mrb[0].mxu0
      %3388 = vmatprep.mubr.bf16.mxu0 0
      %3389 = vmatmul.mubr.bf16.gmra.mrb[0].mxu0 %v3246
      %v3390 = vpop.f32.mrb[0].mxu0
      %v3391 = vadd.f32 0.0, %v3390
      %v3392 = vpop.f32.mrb[0].mxu0
      %v3393 = vpop.f32.mrb[0].mxu0
      %v3394 = vadd.f32 0.0, %v3393
      %v3395 = vpop.f32.mrb[0].mxu0
      %3396 = vmatprep.mubr.bf16.mxu0 0
      %3397 = vmatmul.mubr.bf16.gmra.mrb[0].mxu0 %v3249
      %v3398 = vpop.f32.mrb[0].mxu0
      %v3399 = vadd.f32 0.0, %v3398
      %v3400 = vpop.f32.mrb[0].mxu0
      %v3401 = vpop.f32.mrb[0].mxu0
      %v3402 = vadd.f32 0.0, %v3401
      %v3403 = vpop.f32.mrb[0].mxu0
      %3404 = vmatprep.mubr.bf16.mxu0 0
      %3405 = vmatmul.mubr.bf16.gmra.mrb[0].mxu0 %v3252
      %v3406 = vpop.f32.mrb[0].mxu0
      %v3407 = vadd.f32 0.0, %v3406
      %v3408 = vpop.f32.mrb[0].mxu0
      %v3409 = vpop.f32.mrb[0].mxu0
      %v3410 = vadd.f32 0.0, %v3409
      %v3411 = vpop.f32.mrb[0].mxu0
      %3412 = vmatprep.mubr.bf16.mxu0 0
      %3413 = vmatmul.mubr.bf16.gmra.mrb[0].mxu0 %v3255
      %v3414 = vpop.f32.mrb[0].mxu0
      %v3415 = vadd.f32 0.0, %v3414
      %v3416 = vpop.f32.mrb[0].mxu0
      %v3417 = vpop.f32.mrb[0].mxu0
      %v3418 = vadd.f32 0.0, %v3417
      %v3419 = vpop.f32.mrb[0].mxu0
      %3420 = vdwg.mxu0
      %v3421 = vadd.f32 %v3153, %v3295
      %v3422 = vadd.f32 %v3154, %v3298
      %v3423 = vadd.f32 %v3155, %v3303
      %v3424 = vadd.f32 %v3156, %v3306
      %v3425 = vadd.f32 %v3157, %v3311
      %v3426 = vadd.f32 %v3158, %v3314
      %v3427 = vadd.f32 %v3159, %v3319
      %v3428 = vadd.f32 %v3160, %v3322
      %v3429 = vadd.f32 %v3161, %v3327
      %v3430 = vadd.f32 %v3162, %v3330
      %v3431 = vadd.f32 %v3163, %v3335
      %v3432 = vadd.f32 %v3164, %v3338
      %v3433 = vadd.f32 %v3165, %v3343
      %v3434 = vadd.f32 %v3166, %v3346
      %v3435 = vadd.f32 %v3167, %v3351
      %v3436 = vadd.f32 %v3168, %v3354
      %v3437 = vadd.f32 %v3169, %v3359
      %v3438 = vadd.f32 %v3170, %v3362
      %v3439 = vadd.f32 %v3171, %v3367
      %v3440 = vadd.f32 %v3172, %v3370
      %v3441 = vadd.f32 %v3173, %v3375
      %v3442 = vadd.f32 %v3174, %v3378
      %v3443 = vadd.f32 %v3175, %v3383
      %v3444 = vadd.f32 %v3176, %v3386
      %v3445 = vadd.f32 %v3177, %v3391
      %v3446 = vadd.f32 %v3178, %v3394
      %v3447 = vadd.f32 %v3179, %v3399
      %v3448 = vadd.f32 %v3180, %v3402
      %v3449 = vadd.f32 %v3181, %v3407
      %v3450 = vadd.f32 %v3182, %v3410
      %v3451 = vadd.f32 %v3183, %v3415
      %v3452 = vadd.f32 %v3184, %v3418
      %3453 = vst.msk [vmem:[#allocation3] sm:$0xff] %vm1122, %v3421
      %3454 = vst.msk [vmem:[#allocation3 + $0x8] sm:$0xff] %vm1122, %v3422
      %3455 = vst.msk [vmem:[#allocation3 + $0x10] sm:$0xff] %vm1122, %v3423
      %3456 = vst.msk [vmem:[#allocation3 + $0x18] sm:$0xff] %vm1122, %v3424
      %3457 = vst.msk [vmem:[#allocation3 + $0x20] sm:$0xff] %vm1122, %v3425
      %3458 = vst.msk [vmem:[#allocation3 + $0x28] sm:$0xff] %vm1122, %v3426
      %3459 = vst.msk [vmem:[#allocation3 + $0x30] sm:$0xff] %vm1122, %v3427
      %3460 = vst.msk [vmem:[#allocation3 + $0x38] sm:$0xff] %vm1122, %v3428
      %3461 = vst.msk [vmem:[#allocation3 + $0x40] sm:$0xff] %vm1122, %v3429
      %3462 = vst.msk [vmem:[#allocation3 + $0x48] sm:$0xff] %vm1122, %v3430
      %3463 = vst.msk [vmem:[#allocation3 + $0x50] sm:$0xff] %vm1122, %v3431
      %3464 = vst.msk [vmem:[#allocation3 + $0x58] sm:$0xff] %vm1122, %v3432
      %3465 = vst.msk [vmem:[#allocation3 + $0x60] sm:$0xff] %vm1122, %v3433
      %3466 = vst.msk [vmem:[#allocation3 + $0x68] sm:$0xff] %vm1122, %v3434
      %3467 = vst.msk [vmem:[#allocation3 + $0x70] sm:$0xff] %vm1122, %v3435
      %3468 = vst.msk [vmem:[#allocation3 + $0x78] sm:$0xff] %vm1122, %v3436
      %3469 = vst.msk [vmem:[#allocation3 + $0x80] sm:$0xff] %vm1122, %v3437
      %3470 = vst.msk [vmem:[#allocation3 + $0x88] sm:$0xff] %vm1122, %v3438
      %3471 = vst.msk [vmem:[#allocation3 + $0x90] sm:$0xff] %vm1122, %v3439
      %3472 = vst.msk [vmem:[#allocation3 + $0x98] sm:$0xff] %vm1122, %v3440
      %3473 = vst.msk [vmem:[#allocation3 + $0xa0] sm:$0xff] %vm1122, %v3441
      %3474 = vst.msk [vmem:[#allocation3 + $0xa8] sm:$0xff] %vm1122, %v3442
      %3475 = vst.msk [vmem:[#allocation3 + $0xb0] sm:$0xff] %vm1122, %v3443
      %3476 = vst.msk [vmem:[#allocation3 + $0xb8] sm:$0xff] %vm1122, %v3444
      %3477 = vst.msk [vmem:[#allocation3 + $0xc0] sm:$0xff] %vm1122, %v3445
      %3478 = vst.msk [vmem:[#allocation3 + $0xc8] sm:$0xff] %vm1122, %v3446
      %3479 = vst.msk [vmem:[#allocation3 + $0xd0] sm:$0xff] %vm1122, %v3447
      %3480 = vst.msk [vmem:[#allocation3 + $0xd8] sm:$0xff] %vm1122, %v3448
      %3481 = vst.msk [vmem:[#allocation3 + $0xe0] sm:$0xff] %vm1122, %v3449
      %3482 = vst.msk [vmem:[#allocation3 + $0xe8] sm:$0xff] %vm1122, %v3450
      %3483 = vst.msk [vmem:[#allocation3 + $0xf0] sm:$0xff] %vm1122, %v3451
      %3484 = vst.msk [vmem:[#allocation3 + $0xf8] sm:$0xff] %vm1122, %v3452
      %v3485 = vld [vmem:[#allocation3] sm:$0xff]
      %v3486 = vld [vmem:[#allocation3 + $0x8] sm:$0xff]
      %v3487 = vld [vmem:[#allocation3 + $0x10] sm:$0xff]
      %v3488 = vld [vmem:[#allocation3 + $0x18] sm:$0xff]
      %v3489 = vld [vmem:[#allocation3 + $0x20] sm:$0xff]
      %v3490 = vld [vmem:[#allocation3 + $0x28] sm:$0xff]
      %v3491 = vld [vmem:[#allocation3 + $0x30] sm:$0xff]
      %v3492 = vld [vmem:[#allocation3 + $0x38] sm:$0xff]
      %v3493 = vld [vmem:[#allocation3 + $0x40] sm:$0xff]
      %v3494 = vld [vmem:[#allocation3 + $0x48] sm:$0xff]
      %v3495 = vld [vmem:[#allocation3 + $0x50] sm:$0xff]
      %v3496 = vld [vmem:[#allocation3 + $0x58] sm:$0xff]
      %v3497 = vld [vmem:[#allocation3 + $0x60] sm:$0xff]
      %v3498 = vld [vmem:[#allocation3 + $0x68] sm:$0xff]
      %v3499 = vld [vmem:[#allocation3 + $0x70] sm:$0xff]
      %v3500 = vld [vmem:[#allocation3 + $0x78] sm:$0xff]
      %v3501 = vld [vmem:[#allocation3 + $0x80] sm:$0xff]
      %v3502 = vld [vmem:[#allocation3 + $0x88] sm:$0xff]
      %v3503 = vld [vmem:[#allocation3 + $0x90] sm:$0xff]
      %v3504 = vld [vmem:[#allocation3 + $0x98] sm:$0xff]
      %v3505 = vld [vmem:[#allocation3 + $0xa0] sm:$0xff]
      %v3506 = vld [vmem:[#allocation3 + $0xa8] sm:$0xff]
      %v3507 = vld [vmem:[#allocation3 + $0xb0] sm:$0xff]
      %v3508 = vld [vmem:[#allocation3 + $0xb8] sm:$0xff]
      %v3509 = vld [vmem:[#allocation3 + $0xc0] sm:$0xff]
      %v3510 = vld [vmem:[#allocation3 + $0xc8] sm:$0xff]
      %v3511 = vld [vmem:[#allocation3 + $0xd0] sm:$0xff]
      %v3512 = vld [vmem:[#allocation3 + $0xd8] sm:$0xff]
      %v3513 = vld [vmem:[#allocation3 + $0xe0] sm:$0xff]
      %v3514 = vld [vmem:[#allocation3 + $0xe8] sm:$0xff]
      %v3515 = vld [vmem:[#allocation3 + $0xf0] sm:$0xff]
      %v3516 = vld [vmem:[#allocation3 + $0xf8] sm:$0xff]
      %v3517 = vld [vmem:[%s5] sm:$0x1]
      %v3519 = vlaneseq
      %v3520 = vshrl.u32 %v3519, 7
      %v3521 = vsub.s32 0, %v3520
      %v3522 = vrot.slane %v3517, %v3521
      %v3524 = vmul.f32 %v3485, %v3522
      %v3525 = vmul.f32 %v3486, %v3522
      %v3526 = vmul.f32 %v3487, %v3522
      %v3527 = vmul.f32 %v3488, %v3522
      %v3528 = vmul.f32 %v3489, %v3522
      %v3529 = vmul.f32 %v3490, %v3522
      %v3530 = vmul.f32 %v3491, %v3522
      %v3531 = vmul.f32 %v3492, %v3522
      %v3532 = vmul.f32 %v3493, %v3522
      %v3533 = vmul.f32 %v3494, %v3522
      %v3534 = vmul.f32 %v3495, %v3522
      %v3535 = vmul.f32 %v3496, %v3522
      %v3536 = vmul.f32 %v3497, %v3522
      %v3537 = vmul.f32 %v3498, %v3522
      %v3538 = vmul.f32 %v3499, %v3522
      %v3539 = vmul.f32 %v3500, %v3522
      %v3540 = vmul.f32 %v3501, %v3522
      %v3541 = vmul.f32 %v3502, %v3522
      %v3542 = vmul.f32 %v3503, %v3522
      %v3543 = vmul.f32 %v3504, %v3522
      %v3544 = vmul.f32 %v3505, %v3522
      %v3545 = vmul.f32 %v3506, %v3522
      %v3546 = vmul.f32 %v3507, %v3522
      %v3547 = vmul.f32 %v3508, %v3522
      %v3548 = vmul.f32 %v3509, %v3522
      %v3549 = vmul.f32 %v3510, %v3522
      %v3550 = vmul.f32 %v3511, %v3522
      %v3551 = vmul.f32 %v3512, %v3522
      %v3552 = vmul.f32 %v3513, %v3522
      %v3553 = vmul.f32 %v3514, %v3522
      %v3554 = vmul.f32 %v3515, %v3522
      %v3555 = vmul.f32 %v3516, %v3522
      %v3556 = vld [vmem:[%s6] sm:$0x1]
      %v3558 = vlaneseq
      %v3559 = vshrl.u32 %v3558, 7
      %v3560 = vsub.s32 0, %v3559
      %v3561 = vrot.slane %v3556, %v3560
      %v3563 = vadd.f32 %v3524, %v3561
      %v3564 = vadd.f32 %v3525, %v3561
      %v3565 = vadd.f32 %v3526, %v3561
      %v3566 = vadd.f32 %v3527, %v3561
      %v3567 = vadd.f32 %v3528, %v3561
      %v3568 = vadd.f32 %v3529, %v3561
      %v3569 = vadd.f32 %v3530, %v3561
      %v3570 = vadd.f32 %v3531, %v3561
      %v3571 = vadd.f32 %v3532, %v3561
      %v3572 = vadd.f32 %v3533, %v3561
      %v3573 = vadd.f32 %v3534, %v3561
      %v3574 = vadd.f32 %v3535, %v3561
      %v3575 = vadd.f32 %v3536, %v3561
      %v3576 = vadd.f32 %v3537, %v3561
      %v3577 = vadd.f32 %v3538, %v3561
      %v3578 = vadd.f32 %v3539, %v3561
      %v3579 = vadd.f32 %v3540, %v3561
      %v3580 = vadd.f32 %v3541, %v3561
      %v3581 = vadd.f32 %v3542, %v3561
      %v3582 = vadd.f32 %v3543, %v3561
      %v3583 = vadd.f32 %v3544, %v3561
      %v3584 = vadd.f32 %v3545, %v3561
      %v3585 = vadd.f32 %v3546, %v3561
      %v3586 = vadd.f32 %v3547, %v3561
      %v3587 = vadd.f32 %v3548, %v3561
      %v3588 = vadd.f32 %v3549, %v3561
      %v3589 = vadd.f32 %v3550, %v3561
      %v3590 = vadd.f32 %v3551, %v3561
      %v3591 = vadd.f32 %v3552, %v3561
      %v3592 = vadd.f32 %v3553, %v3561
      %v3593 = vadd.f32 %v3554, %v3561
      %v3594 = vadd.f32 %v3555, %v3561
      %v3595 = vld [vmem:[%s273] sm:$0xf]
      %v3596 = vld [vmem:[%s273 + $0x4] sm:$0xf]
      %v3597 = vld [vmem:[%s273 + $0x8] sm:$0xf]
      %v3598 = vld [vmem:[%s273 + $0xc] sm:$0xf]
      %v3599 = vld [vmem:[%s273 + $0x10] sm:$0xf]
      %v3600 = vld [vmem:[%s273 + $0x14] sm:$0xf]
      %v3601 = vld [vmem:[%s273 + $0x18] sm:$0xf]
      %v3602 = vld [vmem:[%s273 + $0x1c] sm:$0xf]
      %v3603 = vld [vmem:[%s273 + $0x20] sm:$0xf]
      %v3604 = vld [vmem:[%s273 + $0x24] sm:$0xf]
      %v3605 = vld [vmem:[%s273 + $0x28] sm:$0xf]
      %v3606 = vld [vmem:[%s273 + $0x2c] sm:$0xf]
      %v3607 = vld [vmem:[%s273 + $0x30] sm:$0xf]
      %v3608 = vld [vmem:[%s273 + $0x34] sm:$0xf]
      %v3609 = vld [vmem:[%s273 + $0x38] sm:$0xf]
      %v3610 = vld [vmem:[%s273 + $0x3c] sm:$0xf]
      %v3611 = vld [vmem:[%s273 + $0x40] sm:$0xf]
      %v3612 = vld [vmem:[%s273 + $0x44] sm:$0xf]
      %v3613 = vld [vmem:[%s273 + $0x48] sm:$0xf]
      %v3614 = vld [vmem:[%s273 + $0x4c] sm:$0xf]
      %v3615 = vld [vmem:[%s273 + $0x50] sm:$0xf]
      %v3616 = vld [vmem:[%s273 + $0x54] sm:$0xf]
      %v3617 = vld [vmem:[%s273 + $0x58] sm:$0xf]
      %v3618 = vld [vmem:[%s273 + $0x5c] sm:$0xf]
      %v3619 = vld [vmem:[%s273 + $0x60] sm:$0xf]
      %v3620 = vld [vmem:[%s273 + $0x64] sm:$0xf]
      %v3621 = vld [vmem:[%s273 + $0x68] sm:$0xf]
      %v3622 = vld [vmem:[%s273 + $0x6c] sm:$0xf]
      %v3623 = vld [vmem:[%s273 + $0x70] sm:$0xf]
      %v3624 = vld [vmem:[%s273 + $0x74] sm:$0xf]
      %v3625 = vld [vmem:[%s273 + $0x78] sm:$0xf]
      %v3626 = vld [vmem:[%s273 + $0x7c] sm:$0xf]
      %v3627 = vunpack.c.l.bf16 %v3595
      %v3628 = vunpack.c.l.bf16 %v3596
      %v3629 = vunpack.c.l.bf16 %v3597
      %v3630 = vunpack.c.l.bf16 %v3598
      %v3631 = vunpack.c.l.bf16 %v3599
      %v3632 = vunpack.c.l.bf16 %v3600
      %v3633 = vunpack.c.l.bf16 %v3601
      %v3634 = vunpack.c.l.bf16 %v3602
      %v3635 = vunpack.c.l.bf16 %v3603
      %v3636 = vunpack.c.l.bf16 %v3604
      %v3637 = vunpack.c.l.bf16 %v3605
      %v3638 = vunpack.c.l.bf16 %v3606
      %v3639 = vunpack.c.l.bf16 %v3607
      %v3640 = vunpack.c.l.bf16 %v3608
      %v3641 = vunpack.c.l.bf16 %v3609
      %v3642 = vunpack.c.l.bf16 %v3610
      %v3643 = vunpack.c.l.bf16 %v3611
      %v3644 = vunpack.c.l.bf16 %v3612
      %v3645 = vunpack.c.l.bf16 %v3613
      %v3646 = vunpack.c.l.bf16 %v3614
      %v3647 = vunpack.c.l.bf16 %v3615
      %v3648 = vunpack.c.l.bf16 %v3616
      %v3649 = vunpack.c.l.bf16 %v3617
      %v3650 = vunpack.c.l.bf16 %v3618
      %v3651 = vunpack.c.l.bf16 %v3619
      %v3652 = vunpack.c.l.bf16 %v3620
      %v3653 = vunpack.c.l.bf16 %v3621
      %v3654 = vunpack.c.l.bf16 %v3622
      %v3655 = vunpack.c.l.bf16 %v3623
      %v3656 = vunpack.c.l.bf16 %v3624
      %v3657 = vunpack.c.l.bf16 %v3625
      %v3658 = vunpack.c.l.bf16 %v3626
      %v3659 = vadd.f32 %v3563, %v3627
      %v3660 = vadd.f32 %v3564, %v3628
      %v3661 = vadd.f32 %v3565, %v3629
      %v3662 = vadd.f32 %v3566, %v3630
      %v3663 = vadd.f32 %v3567, %v3631
      %v3664 = vadd.f32 %v3568, %v3632
      %v3665 = vadd.f32 %v3569, %v3633
      %v3666 = vadd.f32 %v3570, %v3634
      %v3667 = vadd.f32 %v3571, %v3635
      %v3668 = vadd.f32 %v3572, %v3636
      %v3669 = vadd.f32 %v3573, %v3637
      %v3670 = vadd.f32 %v3574, %v3638
      %v3671 = vadd.f32 %v3575, %v3639
      %v3672 = vadd.f32 %v3576, %v3640
      %v3673 = vadd.f32 %v3577, %v3641
      %v3674 = vadd.f32 %v3578, %v3642
      %v3675 = vadd.f32 %v3579, %v3643
      %v3676 = vadd.f32 %v3580, %v3644
      %v3677 = vadd.f32 %v3581, %v3645
      %v3678 = vadd.f32 %v3582, %v3646
      %v3679 = vadd.f32 %v3583, %v3647
      %v3680 = vadd.f32 %v3584, %v3648
      %v3681 = vadd.f32 %v3585, %v3649
      %v3682 = vadd.f32 %v3586, %v3650
      %v3683 = vadd.f32 %v3587, %v3651
      %v3684 = vadd.f32 %v3588, %v3652
      %v3685 = vadd.f32 %v3589, %v3653
      %v3686 = vadd.f32 %v3590, %v3654
      %v3687 = vadd.f32 %v3591, %v3655
      %v3688 = vadd.f32 %v3592, %v3656
      %v3689 = vadd.f32 %v3593, %v3657
      %v3690 = vadd.f32 %v3594, %v3658
      %v3691 = vxor.u32 %v3659, 2147483648
      %v3692 = vxor.u32 %v3660, 2147483648
      %v3693 = vxor.u32 %v3661, 2147483648
      %v3694 = vxor.u32 %v3662, 2147483648
      %v3695 = vxor.u32 %v3663, 2147483648
      %v3696 = vxor.u32 %v3664, 2147483648
      %v3697 = vxor.u32 %v3665, 2147483648
      %v3698 = vxor.u32 %v3666, 2147483648
      %v3699 = vxor.u32 %v3667, 2147483648
      %v3700 = vxor.u32 %v3668, 2147483648
      %v3701 = vxor.u32 %v3669, 2147483648
      %v3702 = vxor.u32 %v3670, 2147483648
      %v3703 = vxor.u32 %v3671, 2147483648
      %v3704 = vxor.u32 %v3672, 2147483648
      %v3705 = vxor.u32 %v3673, 2147483648
      %v3706 = vxor.u32 %v3674, 2147483648
      %v3707 = vxor.u32 %v3675, 2147483648
      %v3708 = vxor.u32 %v3676, 2147483648
      %v3709 = vxor.u32 %v3677, 2147483648
      %v3710 = vxor.u32 %v3678, 2147483648
      %v3711 = vxor.u32 %v3679, 2147483648
      %v3712 = vxor.u32 %v3680, 2147483648
      %v3713 = vxor.u32 %v3681, 2147483648
      %v3714 = vxor.u32 %v3682, 2147483648
      %v3715 = vxor.u32 %v3683, 2147483648
      %v3716 = vxor.u32 %v3684, 2147483648
      %v3717 = vxor.u32 %v3685, 2147483648
      %v3718 = vxor.u32 %v3686, 2147483648
      %v3719 = vxor.u32 %v3687, 2147483648
      %v3720 = vxor.u32 %v3688, 2147483648
      %v3721 = vxor.u32 %v3689, 2147483648
      %v3722 = vxor.u32 %v3690, 2147483648
      %v3723 = vmul.f32 %v3691, 1.442695
      %v3724 = vpow.pop %v3723
      %v3725 = vmul.f32 %v3692, 1.442695
      %v3726 = vpow.pop %v3725
      %v3727 = vmul.f32 %v3693, 1.442695
      %v3728 = vpow.pop %v3727
      %v3729 = vmul.f32 %v3694, 1.442695
      %v3730 = vpow.pop %v3729
      %v3731 = vmul.f32 %v3695, 1.442695
      %v3732 = vpow.pop %v3731
      %v3733 = vmul.f32 %v3696, 1.442695
      %v3734 = vpow.pop %v3733
      %v3735 = vmul.f32 %v3697, 1.442695
      %v3736 = vpow.pop %v3735
      %v3737 = vmul.f32 %v3698, 1.442695
      %v3738 = vpow.pop %v3737
      %v3739 = vmul.f32 %v3699, 1.442695
      %v3740 = vpow.pop %v3739
      %v3741 = vmul.f32 %v3700, 1.442695
      %v3742 = vpow.pop %v3741
      %v3743 = vmul.f32 %v3701, 1.442695
      %v3744 = vpow.pop %v3743
      %v3745 = vmul.f32 %v3702, 1.442695
      %v3746 = vpow.pop %v3745
      %v3747 = vmul.f32 %v3703, 1.442695
      %v3748 = vpow.pop %v3747
      %v3749 = vmul.f32 %v3704, 1.442695
      %v3750 = vpow.pop %v3749
      %v3751 = vmul.f32 %v3705, 1.442695
      %v3752 = vpow.pop %v3751
      %v3753 = vmul.f32 %v3706, 1.442695
      %v3754 = vpow.pop %v3753
      %v3755 = vmul.f32 %v3707, 1.442695
      %v3756 = vpow.pop %v3755
      %v3757 = vmul.f32 %v3708, 1.442695
      %v3758 = vpow.pop %v3757
      %v3759 = vmul.f32 %v3709, 1.442695
      %v3760 = vpow.pop %v3759
      %v3761 = vmul.f32 %v3710, 1.442695
      %v3762 = vpow.pop %v3761
      %v3763 = vmul.f32 %v3711, 1.442695
      %v3764 = vpow.pop %v3763
      %v3765 = vmul.f32 %v3712, 1.442695
      %v3766 = vpow.pop %v3765
      %v3767 = vmul.f32 %v3713, 1.442695
      %v3768 = vpow.pop %v3767
      %v3769 = vmul.f32 %v3714, 1.442695
      %v3770 = vpow.pop %v3769
      %v3771 = vmul.f32 %v3715, 1.442695
      %v3772 = vpow.pop %v3771
      %v3773 = vmul.f32 %v3716, 1.442695
      %v3774 = vpow.pop %v3773
      %v3775 = vmul.f32 %v3717, 1.442695
      %v3776 = vpow.pop %v3775
      %v3777 = vmul.f32 %v3718, 1.442695
      %v3778 = vpow.pop %v3777
      %v3779 = vmul.f32 %v3719, 1.442695
      %v3780 = vpow.pop %v3779
      %v3781 = vmul.f32 %v3720, 1.442695
      %v3782 = vpow.pop %v3781
      %v3783 = vmul.f32 %v3721, 1.442695
      %v3784 = vpow.pop %v3783
      %v3785 = vmul.f32 %v3722, 1.442695
      %v3786 = vpow.pop %v3785
      %v3787 = vadd.f32 %v3724, 1.0
      %v3788 = vadd.f32 %v3726, 1.0
      %v3789 = vadd.f32 %v3728, 1.0
      %v3790 = vadd.f32 %v3730, 1.0
      %v3791 = vadd.f32 %v3732, 1.0
      %v3792 = vadd.f32 %v3734, 1.0
      %v3793 = vadd.f32 %v3736, 1.0
      %v3794 = vadd.f32 %v3738, 1.0
      %v3795 = vadd.f32 %v3740, 1.0
      %v3796 = vadd.f32 %v3742, 1.0
      %v3797 = vadd.f32 %v3744, 1.0
      %v3798 = vadd.f32 %v3746, 1.0
      %v3799 = vadd.f32 %v3748, 1.0
      %v3800 = vadd.f32 %v3750, 1.0
      %v3801 = vadd.f32 %v3752, 1.0
      %v3802 = vadd.f32 %v3754, 1.0
      %v3803 = vadd.f32 %v3756, 1.0
      %v3804 = vadd.f32 %v3758, 1.0
      %v3805 = vadd.f32 %v3760, 1.0
      %v3806 = vadd.f32 %v3762, 1.0
      %v3807 = vadd.f32 %v3764, 1.0
      %v3808 = vadd.f32 %v3766, 1.0
      %v3809 = vadd.f32 %v3768, 1.0
      %v3810 = vadd.f32 %v3770, 1.0
      %v3811 = vadd.f32 %v3772, 1.0
      %v3812 = vadd.f32 %v3774, 1.0
      %v3813 = vadd.f32 %v3776, 1.0
      %v3814 = vadd.f32 %v3778, 1.0
      %v3815 = vadd.f32 %v3780, 1.0
      %v3816 = vadd.f32 %v3782, 1.0
      %v3817 = vadd.f32 %v3784, 1.0
      %v3818 = vadd.f32 %v3786, 1.0
      %v3819 = vrcp.pop %v3787
      %v3820 = vmul.f32 1.0, %v3819
      %v3821 = vrcp.pop %v3788
      %v3822 = vmul.f32 1.0, %v3821
      %v3823 = vrcp.pop %v3789
      %v3824 = vmul.f32 1.0, %v3823
      %v3825 = vrcp.pop %v3790
      %v3826 = vmul.f32 1.0, %v3825
      %v3827 = vrcp.pop %v3791
      %v3828 = vmul.f32 1.0, %v3827
      %v3829 = vrcp.pop %v3792
      %v3830 = vmul.f32 1.0, %v3829
      %v3831 = vrcp.pop %v3793
      %v3832 = vmul.f32 1.0, %v3831
      %v3833 = vrcp.pop %v3794
      %v3834 = vmul.f32 1.0, %v3833
      %v3835 = vrcp.pop %v3795
      %v3836 = vmul.f32 1.0, %v3835
      %v3837 = vrcp.pop %v3796
      %v3838 = vmul.f32 1.0, %v3837
      %v3839 = vrcp.pop %v3797
      %v3840 = vmul.f32 1.0, %v3839
      %v3841 = vrcp.pop %v3798
      %v3842 = vmul.f32 1.0, %v3841
      %v3843 = vrcp.pop %v3799
      %v3844 = vmul.f32 1.0, %v3843
      %v3845 = vrcp.pop %v3800
      %v3846 = vmul.f32 1.0, %v3845
      %v3847 = vrcp.pop %v3801
      %v3848 = vmul.f32 1.0, %v3847
      %v3849 = vrcp.pop %v3802
      %v3850 = vmul.f32 1.0, %v3849
      %v3851 = vrcp.pop %v3803
      %v3852 = vmul.f32 1.0, %v3851
      %v3853 = vrcp.pop %v3804
      %v3854 = vmul.f32 1.0, %v3853
      %v3855 = vrcp.pop %v3805
      %v3856 = vmul.f32 1.0, %v3855
      %v3857 = vrcp.pop %v3806
      %v3858 = vmul.f32 1.0, %v3857
      %v3859 = vrcp.pop %v3807
      %v3860 = vmul.f32 1.0, %v3859
      %v3861 = vrcp.pop %v3808
      %v3862 = vmul.f32 1.0, %v3861
      %v3863 = vrcp.pop %v3809
      %v3864 = vmul.f32 1.0, %v3863
      %v3865 = vrcp.pop %v3810
      %v3866 = vmul.f32 1.0, %v3865
      %v3867 = vrcp.pop %v3811
      %v3868 = vmul.f32 1.0, %v3867
      %v3869 = vrcp.pop %v3812
      %v3870 = vmul.f32 1.0, %v3869
      %v3871 = vrcp.pop %v3813
      %v3872 = vmul.f32 1.0, %v3871
      %v3873 = vrcp.pop %v3814
      %v3874 = vmul.f32 1.0, %v3873
      %v3875 = vrcp.pop %v3815
      %v3876 = vmul.f32 1.0, %v3875
      %v3877 = vrcp.pop %v3816
      %v3878 = vmul.f32 1.0, %v3877
      %v3879 = vrcp.pop %v3817
      %v3880 = vmul.f32 1.0, %v3879
      %v3881 = vrcp.pop %v3818
      %v3882 = vmul.f32 1.0, %v3881
      %v3883 = vmul.f32 %v3659, %v3820
      %v3884 = vmul.f32 %v3660, %v3822
      %v3885 = vmul.f32 %v3661, %v3824
      %v3886 = vmul.f32 %v3662, %v3826
      %v3887 = vmul.f32 %v3663, %v3828
      %v3888 = vmul.f32 %v3664, %v3830
      %v3889 = vmul.f32 %v3665, %v3832
      %v3890 = vmul.f32 %v3666, %v3834
      %v3891 = vmul.f32 %v3667, %v3836
      %v3892 = vmul.f32 %v3668, %v3838
      %v3893 = vmul.f32 %v3669, %v3840
      %v3894 = vmul.f32 %v3670, %v3842
      %v3895 = vmul.f32 %v3671, %v3844
      %v3896 = vmul.f32 %v3672, %v3846
      %v3897 = vmul.f32 %v3673, %v3848
      %v3898 = vmul.f32 %v3674, %v3850
      %v3899 = vmul.f32 %v3675, %v3852
      %v3900 = vmul.f32 %v3676, %v3854
      %v3901 = vmul.f32 %v3677, %v3856
      %v3902 = vmul.f32 %v3678, %v3858
      %v3903 = vmul.f32 %v3679, %v3860
      %v3904 = vmul.f32 %v3680, %v3862
      %v3905 = vmul.f32 %v3681, %v3864
      %v3906 = vmul.f32 %v3682, %v3866
      %v3907 = vmul.f32 %v3683, %v3868
      %v3908 = vmul.f32 %v3684, %v3870
      %v3909 = vmul.f32 %v3685, %v3872
      %v3910 = vmul.f32 %v3686, %v3874
      %v3911 = vmul.f32 %v3687, %v3876
      %v3912 = vmul.f32 %v3688, %v3878
      %v3913 = vmul.f32 %v3689, %v3880
      %v3914 = vmul.f32 %v3690, %v3882
      %v3915 = vpack.c.bf16 %v3884, %v3883
      %v3916 = vpack.c.bf16 %v3886, %v3885
      %v3917 = vpack.c.bf16 %v3888, %v3887
      %v3918 = vpack.c.bf16 %v3890, %v3889
      %v3919 = vpack.c.bf16 %v3892, %v3891
      %v3920 = vpack.c.bf16 %v3894, %v3893
      %v3921 = vpack.c.bf16 %v3896, %v3895
      %v3922 = vpack.c.bf16 %v3898, %v3897
      %v3923 = vpack.c.bf16 %v3900, %v3899
      %v3924 = vpack.c.bf16 %v3902, %v3901
      %v3925 = vpack.c.bf16 %v3904, %v3903
      %v3926 = vpack.c.bf16 %v3906, %v3905
      %v3927 = vpack.c.bf16 %v3908, %v3907
      %v3928 = vpack.c.bf16 %v3910, %v3909
      %v3929 = vpack.c.bf16 %v3912, %v3911
      %v3930 = vpack.c.bf16 %v3914, %v3913
      %v3947 = vunpack.c.l.b16 %v3915
      %v3948 = vunpack.c.h.b16 %v3915
      %v3949 = vunpack.c.l.b16 %v3916
      %v3950 = vunpack.c.h.b16 %v3916
      %v3951 = vunpack.c.l.b16 %v3917
      %v3952 = vunpack.c.h.b16 %v3917
      %v3953 = vunpack.c.l.b16 %v3918
      %v3954 = vunpack.c.h.b16 %v3918
      %v3955 = vunpack.c.l.b16 %v3919
      %v3956 = vunpack.c.h.b16 %v3919
      %v3957 = vunpack.c.l.b16 %v3920
      %v3958 = vunpack.c.h.b16 %v3920
      %v3959 = vunpack.c.l.b16 %v3921
      %v3960 = vunpack.c.h.b16 %v3921
      %v3961 = vunpack.c.l.b16 %v3922
      %v3962 = vunpack.c.h.b16 %v3922
      %v3963 = vunpack.c.l.b16 %v3923
      %v3964 = vunpack.c.h.b16 %v3923
      %v3965 = vunpack.c.l.b16 %v3924
      %v3966 = vunpack.c.h.b16 %v3924
      %v3967 = vunpack.c.l.b16 %v3925
      %v3968 = vunpack.c.h.b16 %v3925
      %v3969 = vunpack.c.l.b16 %v3926
      %v3970 = vunpack.c.h.b16 %v3926
      %v3971 = vunpack.c.l.b16 %v3927
      %v3972 = vunpack.c.h.b16 %v3927
      %v3973 = vunpack.c.l.b16 %v3928
      %v3974 = vunpack.c.h.b16 %v3928
      %v3975 = vunpack.c.l.b16 %v3929
      %v3976 = vunpack.c.h.b16 %v3929
      %v3977 = vunpack.c.l.b16 %v3930
      %v3978 = vunpack.c.h.b16 %v3930
      %v3979 = vpack.c.b16 %v3947, %v3947
      %v3980 = vpack.c.b16 %v3948, %v3948
      %v3981 = vpack.c.b16 %v3949, %v3949
      %v3982 = vpack.c.b16 %v3950, %v3950
      %v3983 = vpack.c.b16 %v3951, %v3951
      %v3984 = vpack.c.b16 %v3952, %v3952
      %v3985 = vpack.c.b16 %v3953, %v3953
      %v3986 = vpack.c.b16 %v3954, %v3954
      %v3987 = vpack.c.b16 %v3955, %v3955
      %v3988 = vpack.c.b16 %v3956, %v3956
      %v3989 = vpack.c.b16 %v3957, %v3957
      %v3990 = vpack.c.b16 %v3958, %v3958
      %v3991 = vpack.c.b16 %v3959, %v3959
      %v3992 = vpack.c.b16 %v3960, %v3960
      %v3993 = vpack.c.b16 %v3961, %v3961
      %v3994 = vpack.c.b16 %v3962, %v3962
      %v3995 = vpack.c.b16 %v3963, %v3963
      %v3996 = vpack.c.b16 %v3964, %v3964
      %v3997 = vpack.c.b16 %v3965, %v3965
      %v3998 = vpack.c.b16 %v3966, %v3966
      %v3999 = vpack.c.b16 %v3967, %v3967
      %v4000 = vpack.c.b16 %v3968, %v3968
      %v4001 = vpack.c.b16 %v3969, %v3969
      %v4002 = vpack.c.b16 %v3970, %v3970
      %v4003 = vpack.c.b16 %v3971, %v3971
      %v4004 = vpack.c.b16 %v3972, %v3972
      %v4005 = vpack.c.b16 %v3973, %v3973
      %v4006 = vpack.c.b16 %v3974, %v3974
      %v4007 = vpack.c.b16 %v3975, %v3975
      %v4008 = vpack.c.b16 %v3976, %v3976
      %v4009 = vpack.c.b16 %v3977, %v3977
      %v4010 = vpack.c.b16 %v3978, %v3978
      %vm4043 = vcmask 27648
      %4044 = vst.msk [vmem:[%s278] sm:$0xf] %vm4043, %v3979
      %4045 = vst.msk [vmem:[%s278 + $0x4] sm:$0xf] %vm4043, %v3980
      %4046 = vst.msk [vmem:[%s278 + $0x8] sm:$0xf] %vm4043, %v3981
      %4047 = vst.msk [vmem:[%s278 + $0xc] sm:$0xf] %vm4043, %v3982
      %4048 = vst.msk [vmem:[%s278 + $0x10] sm:$0xf] %vm4043, %v3983
      %4049 = vst.msk [vmem:[%s278 + $0x14] sm:$0xf] %vm4043, %v3984
      %4050 = vst.msk [vmem:[%s278 + $0x18] sm:$0xf] %vm4043, %v3985
      %4051 = vst.msk [vmem:[%s278 + $0x1c] sm:$0xf] %vm4043, %v3986
      %4052 = vst.msk [vmem:[%s278 + $0x20] sm:$0xf] %vm4043, %v3987
      %4053 = vst.msk [vmem:[%s278 + $0x24] sm:$0xf] %vm4043, %v3988
      %4054 = vst.msk [vmem:[%s278 + $0x28] sm:$0xf] %vm4043, %v3989
      %4055 = vst.msk [vmem:[%s278 + $0x2c] sm:$0xf] %vm4043, %v3990
      %4056 = vst.msk [vmem:[%s278 + $0x30] sm:$0xf] %vm4043, %v3991
      %4057 = vst.msk [vmem:[%s278 + $0x34] sm:$0xf] %vm4043, %v3992
      %4058 = vst.msk [vmem:[%s278 + $0x38] sm:$0xf] %vm4043, %v3993
      %4059 = vst.msk [vmem:[%s278 + $0x3c] sm:$0xf] %vm4043, %v3994
      %4060 = vst.msk [vmem:[%s278 + $0x40] sm:$0xf] %vm4043, %v3995
      %4061 = vst.msk [vmem:[%s278 + $0x44] sm:$0xf] %vm4043, %v3996
      %4062 = vst.msk [vmem:[%s278 + $0x48] sm:$0xf] %vm4043, %v3997
      %4063 = vst.msk [vmem:[%s278 + $0x4c] sm:$0xf] %vm4043, %v3998
      %4064 = vst.msk [vmem:[%s278 + $0x50] sm:$0xf] %vm4043, %v3999
      %4065 = vst.msk [vmem:[%s278 + $0x54] sm:$0xf] %vm4043, %v4000
      %4066 = vst.msk [vmem:[%s278 + $0x58] sm:$0xf] %vm4043, %v4001
      %4067 = vst.msk [vmem:[%s278 + $0x5c] sm:$0xf] %vm4043, %v4002
      %4068 = vst.msk [vmem:[%s278 + $0x60] sm:$0xf] %vm4043, %v4003
      %4069 = vst.msk [vmem:[%s278 + $0x64] sm:$0xf] %vm4043, %v4004
      %4070 = vst.msk [vmem:[%s278 + $0x68] sm:$0xf] %vm4043, %v4005
      %4071 = vst.msk [vmem:[%s278 + $0x6c] sm:$0xf] %vm4043, %v4006
      %4072 = vst.msk [vmem:[%s278 + $0x70] sm:$0xf] %vm4043, %v4007
      %4073 = vst.msk [vmem:[%s278 + $0x74] sm:$0xf] %vm4043, %v4008
      %4074 = vst.msk [vmem:[%s278 + $0x78] sm:$0xf] %vm4043, %v4009
      %4075 = vst.msk [vmem:[%s278 + $0x7c] sm:$0xf] %vm4043, %v4010
      %p4076 = scmp.lt.s32.totalorder %s18, 1
      %s4077 = scalar_select %p4076, %s18, 1
      %s4078 = smul.addr %s4077, 32
      %s4079 = smul.addr %s4078, 4
      %s4080 = scalar_lea.vmem %s7, %s4079
      // Predicated region
      $region49: #{tpu_custom_call.1} parent=47 // pred_check
        %p4081 = pneg %p188
      $region50: #{tpu_custom_call.1} parent=47 // pred_check_branch
        %4083 = sbr.rel (%p4081) target = $region52
      $region51: #{tpu_custom_call.1} parent=47 // pred_region
        _
      $region52: #{tpu_custom_call.1} parent=47 // pred_fallthru
        _
    $region48: #{tpu_custom_call.1} parent=5 // pred_fallthru
      _
    %p4084 = scmp.le.s32.totalorder 2, %s13
    // Predicated region
    $region53: #{tpu_custom_call.1} parent=5 // pred_check
      %p4085 = pneg %p4084
    $region54: #{tpu_custom_call.1} parent=5 // pred_check_branch
      %4087 = sbr.rel (%p4085) target = $region56
    $region55: #{tpu_custom_call.1} parent=5 // pred_region
      %s4088 = ssub.s32 %s13, 2
      // Predicated region
      $region57: #{tpu_custom_call.1} parent=55 // pred_check
        %p4089 = pneg %p194
      $region58: #{tpu_custom_call.1} parent=55 // pred_check_branch
        %4091 = sbr.rel (%p4089) target = $region60
      $region59: #{tpu_custom_call.1} parent=55 // pred_region
        %p4092 = scmp.lt.s32.totalorder %s19, 1
        %s4093 = scalar_select %p4092, %s19, 1
        %s4094 = smul.addr %s4093, 32
        %s4095 = smul.addr %s4094, 4
        %s4096 = scalar_lea.vmem %s7, %s4095
      $region60: #{tpu_custom_call.1} parent=55 // pred_fallthru
        _
    $region56: #{tpu_custom_call.1} parent=5 // pred_fallthru
      _
  $region6: #{tpu_custom_call.1} parent=0 // loop_footer
    %s17 = sadd.s32 1, %s13
  $region7: #{tpu_custom_call.1} parent=0 // loop_footer_branch
    %12 = sbr.rel target = $region3
  $region8: #{tpu_custom_call.1} parent=0 // loop_exit
    _

</llo_original>
